<compile_context>
chip_gen: v5e
topology: v5e:2x2
jax: 0.10.0
libtpu: 0.0.40
codegen_flags: <defaults>
</compile_context>

<pallas_src>
import functools

import numpy as np
import jax
import jax.numpy as jnp
from jax.experimental import pallas as pl
from jax.experimental.pallas import tpu as pltpu


# ---------------------------------------------------------------------------
# small helpers
# ---------------------------------------------------------------------------
def _rup(x, m):
    return ((x + m - 1) // m) * m


def _pick_tile(dim, pref, mult):
    """Tile size: `pref` if the dim is big, else the dim rounded up to `mult`."""
    if dim >= pref:
        return pref
    return _rup(max(dim, 1), mult)


def _vmem_limit_bytes():
    # v5e/v6e: 128 MiB physical -> allow 64 MiB scoped; v7x: 64 MiB -> 32 MiB.
    try:
        cap = pltpu.get_tpu_info().vmem_capacity_bytes
    except Exception:
        cap = 128 * 1024 * 1024
    return int(min(64 * 1024 * 1024, max(16 * 1024 * 1024, cap // 2)))


def _cparams(dims):
    return pltpu.CompilerParams(dimension_semantics=dims,
                                vmem_limit_bytes=_vmem_limit_bytes())


# ---------------------------------------------------------------------------
# Pallas kernel 1: tiled matmul + bias + (optional) ReLU
#   grid = (M/TM, N/TN, K/TK); K is the reduction ("arbitrary") axis.
#   bf16 MXU feeds, f32 accumulation in a VMEM scratch, bias/ReLU/output cast
#   applied only in the last-K finalize step.
# ---------------------------------------------------------------------------
def _matmul_kernel(a_ref, b_ref, bias_ref, o_ref, acc_ref, *, apply_relu):
    @pl.when(pl.program_id(2) == 0)
    def _init():
        acc_ref[...] = jnp.zeros_like(acc_ref)

    acc_ref[...] += jnp.dot(a_ref[...], b_ref[...],
                            preferred_element_type=jnp.float32)

    @pl.when(pl.program_id(2) == pl.num_programs(2) - 1)
    def _finalize():
        out = acc_ref[...] + bias_ref[...]
        if apply_relu:
            out = jnp.maximum(out, 0.0)
        o_ref[...] = out.astype(o_ref.dtype)


def pallas_matmul(a, b, bias=None, relu=False, out_dtype=jnp.float32,
                  *, tm=256, tn=256, tk=512):
    """out = (relu?)(a @ b + bias); a:(M,K) b:(K,N) bias:(N,).  bf16 MXU, f32 acc."""
    M, K = a.shape
    K2, N = b.shape
    assert K == K2
    if bias is None:
        bias = jnp.zeros((N,), jnp.float32)

    TM = _pick_tile(M, tm, 16)     # 16: bf16 sublane packing
    TK = _pick_tile(K, tk, 128)
    TN = _pick_tile(N, tn, 128)
    Mp, Kp, Np = _rup(M, TM), _rup(K, TK), _rup(N, TN)

    # zero padding keeps the math exact; result is sliced back down.
    a_p = jnp.pad(a, ((0, Mp - M), (0, Kp - K))).astype(jnp.bfloat16)
    b_p = jnp.pad(b, ((0, Kp - K), (0, Np - N))).astype(jnp.bfloat16)
    bias_p = jnp.pad(bias.astype(jnp.float32), (0, Np - N)).reshape(1, Np)

    kernel = functools.partial(_matmul_kernel, apply_relu=relu)
    out = pl.pallas_call(
        kernel,
        out_shape=jax.ShapeDtypeStruct((Mp, Np), out_dtype),
        grid_spec=pltpu.PrefetchScalarGridSpec(
            num_scalar_prefetch=0,
            grid=(Mp // TM, Np // TN, Kp // TK),
            in_specs=[
                pl.BlockSpec((TM, TK), lambda i, j, k: (i, k)),
                pl.BlockSpec((TK, TN), lambda i, j, k: (k, j)),
                pl.BlockSpec((1, TN), lambda i, j, k: (0, j)),
            ],
            out_specs=pl.BlockSpec((TM, TN), lambda i, j, k: (i, j)),
            scratch_shapes=[pltpu.VMEM((TM, TN), jnp.float32)],
        ),
        compiler_params=_cparams(("parallel", "parallel", "arbitrary")),
    )(a_p, b_p, bias_p)
    return out[:M, :N]


# ---------------------------------------------------------------------------
# Fused conv: stride-phase "slab" layout + in-kernel tap gather.
#
# The wrapper builds, per stride phase, the spatially padded input flattened to
# (rows*cols, C)  -- ~1x input HBM traffic (no im2col).  Inside the kernel,
# tap (dy, dx) is a *contiguous* shifted slice of the slab, so each tap is one
# clean 2-D (M, C) x (C, TN) MXU matmul accumulated in f32.  Output rows carry
# a few wrap-around garbage columns (cols >= OW) that the wrapper slices off.
# ---------------------------------------------------------------------------
def _phase_slabs(x_nhwc, kh, kw, stride, padding):
    """-> (N, stride*stride, PPH*PPW, C) bf16 slabs, plus OH, OW, PPW."""
    N, H, W, C = x_nhwc.shape
    OH = (H + 2 * padding - kh) // stride + 1
    OW = (W + 2 * padding - kw) // stride + 1
    eh = (kh - 1) // stride            # max intra-phase row offset
    ew = (kw - 1) // stride            # max intra-phase col offset
    PPH = OH + eh + 1                  # +1 safety row for slab-slice overrun
    PPW = OW + ew
    xp = jnp.pad(x_nhwc, ((0, 0), (padding, padding), (padding, padding), (0, 0)))
    slabs = []
    for py in range(stride):
        for px in range(stride):
            ph = xp[:, py::stride, px::stride, :]
            ph = ph[:, :PPH, :PPW, :]
            ph = jnp.pad(ph, ((0, 0), (0, PPH - ph.shape[1]),
                              (0, PPW - ph.shape[2]), (0, 0)))
            slabs.append(ph.reshape(N, PPH * PPW, C))
    xs = jnp.stack(slabs, axis=1)      # (N, s*s, PPH*PPW, C)
    return xs, OH, OW, PPW


def _conv_slab_accumulate(xs_ref, w_ref, *, kh, kw, stride, oh, ppw):
    """Sum over taps of a contiguous slab slice @ per-tap weight.  f32 acc."""
    m = oh * ppw
    tn = w_ref.shape[-1]
    acc = jnp.zeros((m, tn), jnp.float32)
    for dy in range(kh):
        for dx in range(kw):
            p = (dy % stride) * stride + (dx % stride)
            start = (dy // stride) * ppw + (dx // stride)
            a = xs_ref[0, p, start:start + m, :]          # (m, Cin) bf16, contiguous
            acc = acc + jnp.dot(a, w_ref[dy * kw + dx],
                                preferred_element_type=jnp.float32)
    return acc


def _conv_kernel(xs_ref, w_ref, b_ref, o_ref, *, kh, kw, stride, oh, ppw, relu):
    acc = _conv_slab_accumulate(xs_ref, w_ref, kh=kh, kw=kw, stride=stride,
                                oh=oh, ppw=ppw)
    out = acc + b_ref[...]
    if relu:
        out = jnp.maximum(out, 0.0)
    o_ref[...] = out.reshape(o_ref.shape).astype(o_ref.dtype)


def conv2d(x_nhwc, w_oihw, b, *, stride, padding, relu, out_dtype=jnp.bfloat16):
    """Conv2d + bias (+ReLU).  bf16 activations out, f32 accumulation inside."""
    N = x_nhwc.shape[0]
    cout, cin, kh, kw = w_oihw.shape
    xs, OH, OW, PPW = _phase_slabs(x_nhwc.astype(jnp.bfloat16), kh, kw,
                                   stride, padding)
    wt = jnp.transpose(w_oihw, (2, 3, 1, 0)).reshape(kh * kw, cin,
                                                     cout).astype(jnp.bfloat16)
    bias = b.astype(jnp.float32)

    # cout tiling: small cout stays unpadded (full-dim block, no write waste).
    if cout <= 256:
        TN, cout_p = cout, cout
    else:
        TN = 256
        cout_p = _rup(cout, TN)
        wt = jnp.pad(wt, ((0, 0), (0, 0), (0, cout_p - cout)))
        bias = jnp.pad(bias, (0, cout_p - cout))
    bias = bias.reshape(1, cout_p)

    M = OH * PPW
    n_phase = stride * stride
    slab_len = xs.shape[2]
    kernel = functools.partial(_conv_kernel, kh=kh, kw=kw, stride=stride,
                               oh=OH, ppw=PPW, relu=relu)
    # TODO(synk): for very large feature maps, add an output-row grid axis with
    # manual halo DMA (pl.ANY + make_async_copy) instead of full-image blocks.
    out = pl.pallas_call(
        kernel,
        out_shape=jax.ShapeDtypeStruct((N, M, cout_p), out_dtype),
        grid=(N, cout_p // TN),
        in_specs=[
            pl.BlockSpec((1, n_phase, slab_len, cin), lambda n, j: (n, 0, 0, 0)),
            pl.BlockSpec((kh * kw, cin, TN), lambda n, j: (0, 0, j)),
            pl.BlockSpec((1, TN), lambda n, j: (0, j)),
        ],
        out_specs=pl.BlockSpec((1, M, TN), lambda n, j: (n, 0, j)),
        compiler_params=_cparams(("parallel", "parallel")),
    )(xs, wt, bias)
    out = out.reshape(N, OH, PPW, cout_p)[:, :, :OW, :cout]
    return out


# ---------------------------------------------------------------------------
# Pallas kernel 2: fused classification head
#   [3x3 conv + bias + ReLU] -> [1x1 conv + bias] in ONE kernel; the
#   intermediate activation stays in VMEM, output written with unpadded
#   num_classes lanes (no padded-write waste).
# ---------------------------------------------------------------------------
def _head_kernel(xs_ref, w1_ref, b1_ref, w2_ref, b2_ref, o_ref, *, oh, ppw):
    h = _conv_slab_accumulate(xs_ref, w1_ref, kh=3, kw=3, stride=1,
                              oh=oh, ppw=ppw)
    h = jnp.maximum(h + b1_ref[...], 0.0)
    out = jnp.dot(h.astype(jnp.bfloat16), w2_ref[...],
                  preferred_element_type=jnp.float32) + b2_ref[...]
    o_ref[...] = out.reshape(o_ref.shape).astype(o_ref.dtype)


def classifier_head(feat_nhwc, w1_oihw, b1, w2_oihw, b2,
                    out_dtype=jnp.bfloat16):
    N = feat_nhwc.shape[0]
    cmid, cin, _, _ = w1_oihw.shape
    ncls = w2_oihw.shape[0]
    xs, OH, OW, PPW = _phase_slabs(feat_nhwc.astype(jnp.bfloat16), 3, 3, 1, 1)
    w1 = jnp.transpose(w1_oihw, (2, 3, 1, 0)).reshape(9, cin,
                                                      cmid).astype(jnp.bfloat16)
    w2 = jnp.transpose(w2_oihw, (2, 3, 1, 0)).reshape(cmid,
                                                      ncls).astype(jnp.bfloat16)
    b1m = b1.astype(jnp.float32).reshape(1, cmid)
    b2m = b2.astype(jnp.float32).reshape(1, ncls)

    M = OH * PPW
    slab_len = xs.shape[2]
    kernel = functools.partial(_head_kernel, oh=OH, ppw=PPW)
    # TODO(synk): at very large spatial sizes, tile M (spatial) to keep the
    # (M, cmid) hidden activation within vreg/VMEM budget.
    out = pl.pallas_call(
        kernel,
        out_shape=jax.ShapeDtypeStruct((N, M, ncls), out_dtype),
        grid=(N,),
        in_specs=[
            pl.BlockSpec((1, 1, slab_len, cin), lambda n: (n, 0, 0, 0)),
            pl.BlockSpec((9, cin, cmid), lambda n: (0, 0, 0)),
            pl.BlockSpec((1, cmid), lambda n: (0, 0)),
            pl.BlockSpec((cmid, ncls), lambda n: (0, 0)),
            pl.BlockSpec((1, ncls), lambda n: (0, 0)),
        ],
        out_specs=pl.BlockSpec((1, M, ncls), lambda n: (n, 0, 0)),
        compiler_params=_cparams(("parallel",)),
    )(xs, w1, b1m, w2, b2m)
    return out.reshape(N, OH, PPW, ncls)[:, :, :OW, :]


# ---------------------------------------------------------------------------
# Bilinear resize (align_corners=False) as two separable dense interpolation
# matmuls on the MXU (RH @ X along H, then RW @ . along W).  Lane-dense
# stores, single read of the input, and the second pass directly yields the
# layout that transposes to NCHW.
# ---------------------------------------------------------------------------
def _interp_matrix(out_size, in_size):
    """Dense (out_size, in_size) bilinear matrix matching PyTorch
    F.interpolate(mode='bilinear', align_corners=False)."""
    scale = in_size / out_size
    o = np.arange(out_size, dtype=np.float64)
    src = np.maximum((o + 0.5) * scale - 0.5, 0.0)
    i0 = np.minimum(np.floor(src).astype(np.int64), in_size - 1)
    i1 = np.minimum(i0 + 1, in_size - 1)
    l1 = src - i0
    m = np.zeros((out_size, in_size), np.float32)
    np.add.at(m, (np.arange(out_size), i0), 1.0 - l1)
    np.add.at(m, (np.arange(out_size), i1), l1)
    return m


def bilinear_resize_to_nchw(x_nhwc, out_h, out_w, out_dtype=jnp.float32):
    """(N, Hs, Ws, C) -> bilinear resize -> (N, C, out_h, out_w)."""
    N, Hs, Ws, C = x_nhwc.shape
    RH = jnp.asarray(_interp_matrix(out_h, Hs))          # (out_h, Hs)
    RW = jnp.asarray(_interp_matrix(out_w, Ws))          # (out_w, Ws)

    # H pass: (out_h, Hs) @ (Hs, N*Ws*C)
    ym = jnp.transpose(x_nhwc, (1, 0, 2, 3)).reshape(Hs, N * Ws * C)
    z = pallas_matmul(RH, ym, out_dtype=jnp.bfloat16)     # (out_h, N*Ws*C)

    # W pass: (out_w, Ws) @ (Ws, out_h*N*C)
    zm = z.reshape(out_h, N, Ws, C).transpose(2, 0, 1, 3).reshape(Ws,
                                                                  out_h * N * C)
    o = pallas_matmul(RW, zm, out_dtype=out_dtype)        # (out_w, out_h*N*C)
    o = o.reshape(out_w, out_h, N, C)
    return jnp.transpose(o, (2, 3, 1, 0))                 # (N, C, out_h, out_w)


# ---------------------------------------------------------------------------
# Deterministic parameter init (synthetic; shapes chosen small)
# ---------------------------------------------------------------------------
def init_params(key, num_classes=5):
    keys = jax.random.split(key, 14)

    def conv_w(k, cout, cin, kh, kw):
        return 0.1 * jax.random.normal(k, (cout, cin, kh, kw), jnp.float32)

    def conv_b(k, cout):
        return 0.01 * jax.random.normal(k, (cout,), jnp.float32)

    return {
        "backbone": {
            "conv1_w": conv_w(keys[0], 8, 4, 3, 3),   "conv1_b": conv_b(keys[1], 8),
            "conv2_w": conv_w(keys[2], 16, 8, 3, 3),  "conv2_b": conv_b(keys[3], 16),
            "conv3_w": conv_w(keys[4], 32, 16, 3, 3), "conv3_b": conv_b(keys[5], 32),
        },
        "classifier": {
            "conv1_w": conv_w(keys[6], 32, 32, 3, 3), "conv1_b": conv_b(keys[7], 32),
            "conv2_w": conv_w(keys[8], num_classes, 32, 1, 1),
            "conv2_b": conv_b(keys[9], num_classes),
        },
        "aux_classifier": {
            "conv1_w": conv_w(keys[10], 16, 16, 3, 3), "conv1_b": conv_b(keys[11], 16),
            "conv2_w": conv_w(keys[12], num_classes, 16, 1, 1),
            "conv2_b": conv_b(keys[13], num_classes),
        },
    }


# ---------------------------------------------------------------------------
# DeepLabV3 forward
# ---------------------------------------------------------------------------
def deeplabv3_forward(params, x_nchw):
    N, C, H, W = x_nchw.shape
    x = jnp.transpose(x_nchw, (0, 2, 3, 1))               # NCHW -> NHWC

    # backbone -> features {'out', 'aux'}  (bf16 activations, f32 accum inside)
    bb = params["backbone"]
    h1 = conv2d(x, bb["conv1_w"], bb["conv1_b"], stride=2, padding=1, relu=True)
    aux_feat = conv2d(h1, bb["conv2_w"], bb["conv2_b"], stride=2, padding=1, relu=True)
    out_feat = conv2d(aux_feat, bb["conv3_w"], bb["conv3_b"], stride=2, padding=1, relu=True)

    # classifier on 'out' (fused 3x3+ReLU -> 1x1) + separable bilinear upsample
    cl = params["classifier"]
    y = classifier_head(out_feat, cl["conv1_w"], cl["conv1_b"],
                        cl["conv2_w"], cl["conv2_b"])
    y = bilinear_resize_to_nchw(y, H, W)                   # (N, ncls, H, W) f32

    # aux_classifier on 'aux' + bilinear upsample
    ax = params["aux_classifier"]
    z = classifier_head(aux_feat, ax["conv1_w"], ax["conv1_b"],
                        ax["conv2_w"], ax["conv2_b"])
    z = bilinear_resize_to_nchw(z, H, W)                   # (N, ncls, H, W) f32

    # matches (result['out'], result['aux'])
    return y, z


if __name__ == "__main__":
    key = jax.random.PRNGKey(0)
    pkey, xkey = jax.random.split(key)
    num_classes = 5
    params = init_params(pkey, num_classes=num_classes)

    x = jax.random.normal(xkey, (2, 4, 16, 16), dtype=jnp.float32)  # NCHW

    fwd = jax.jit(deeplabv3_forward)
    out, aux = fwd(params, x)
    jax.block_until_ready((out, aux))

    assert out.shape == (2, num_classes, 16, 16)
    assert aux.shape == (2, num_classes, 16, 16)
    assert bool(jnp.all(jnp.isfinite(out))) and bool(jnp.all(jnp.isfinite(aux)))
    print("KERNEL_OK")
</pallas_src>

<mosaic_0001>
module attributes {stable_mosaic.version = 11 : i64} {
  func.func @_conv_kernel(%arg0: i32, %arg1: i32, %arg2: memref<1x4x90x4xbf16, #tpu.memory_space<vmem>>, %arg3: memref<9x4x8xbf16, #tpu.memory_space<vmem>>, %arg4: memref<1x8xf32, #tpu.memory_space<vmem>>, %arg5: memref<1x72x8xbf16, #tpu.memory_space<vmem>>) attributes {dimension_semantics = [#tpu.dimension_semantics<parallel>, #tpu.dimension_semantics<parallel>], iteration_bounds = array<i64: 2, 1>, scalar_prefetch = 0 : i64, scratch_operands = 0 : i64, tpu.core_type = #tpu.core_type<tc>, window_params = [{transform_indices = @transform_0, window_bounds = array<i64: 1, 4, 90, 4>}, {transform_indices = @transform_1, window_bounds = array<i64: 9, 4, 8>}, {transform_indices = @transform_2, window_bounds = array<i64: 1, 8>}, {transform_indices = @transform_3, window_bounds = array<i64: 1, 72, 8>}]} {
    %cst = arith.constant 0.000000e+00 : f32
    %0 = vector.broadcast %cst : f32 to vector<72x8xf32>
    %c0 = arith.constant 0 : index
    %c0_0 = arith.constant 0 : index
    %c0_1 = arith.constant 0 : index
    %c0_2 = arith.constant 0 : index
    %1 = vector.load %arg2[%c0, %c0_0, %c0_1, %c0_2] : memref<1x4x90x4xbf16, #tpu.memory_space<vmem>>, vector<1x1x72x4xbf16>
    %2 = vector.shape_cast %1 : vector<1x1x72x4xbf16> to vector<72x4xbf16>
    %c0_3 = arith.constant 0 : index
    %c0_4 = arith.constant 0 : index
    %c0_5 = arith.constant 0 : index
    %3 = vector.load %arg3[%c0_3, %c0_4, %c0_5] : memref<9x4x8xbf16, #tpu.memory_space<vmem>>, vector<1x4x8xbf16>
    %4 = vector.shape_cast %3 : vector<1x4x8xbf16> to vector<4x8xbf16>
    %cst_6 = arith.constant dense<0.000000e+00> : vector<72x8xf32>
    %5 = tpu.matmul %2, %4, %cst_6 {dimension_numbers = #tpu.dot_dimension_numbers<[1], [0], [0], [1], [0, 0, 1, 1], [], []>} : vector<72x4xbf16>, vector<4x8xbf16>, vector<72x8xf32> -> vector<72x8xf32>
    %6 = arith.addf %0, %5 : vector<72x8xf32>
    %c0_7 = arith.constant 0 : index
    %c1 = arith.constant 1 : index
    %c0_8 = arith.constant 0 : index
    %c0_9 = arith.constant 0 : index
    %7 = vector.load %arg2[%c0_7, %c1, %c0_8, %c0_9] : memref<1x4x90x4xbf16, #tpu.memory_space<vmem>>, vector<1x1x72x4xbf16>
    %8 = vector.shape_cast %7 : vector<1x1x72x4xbf16> to vector<72x4xbf16>
    %c1_10 = arith.constant 1 : index
    %c0_11 = arith.constant 0 : index
    %c0_12 = arith.constant 0 : index
    %9 = vector.load %arg3[%c1_10, %c0_11, %c0_12] : memref<9x4x8xbf16, #tpu.memory_space<vmem>>, vector<1x4x8xbf16>
    %10 = vector.shape_cast %9 : vector<1x4x8xbf16> to vector<4x8xbf16>
    %cst_13 = arith.constant dense<0.000000e+00> : vector<72x8xf32>
    %11 = tpu.matmul %8, %10, %cst_13 {dimension_numbers = #tpu.dot_dimension_numbers<[1], [0], [0], [1], [0, 0, 1, 1], [], []>} : vector<72x4xbf16>, vector<4x8xbf16>, vector<72x8xf32> -> vector<72x8xf32>
    %12 = arith.addf %6, %11 : vector<72x8xf32>
    %c0_14 = arith.constant 0 : index
    %c0_15 = arith.constant 0 : index
    %c1_16 = arith.constant 1 : index
    %c0_17 = arith.constant 0 : index
    %13 = vector.load %arg2[%c0_14, %c0_15, %c1_16, %c0_17] : memref<1x4x90x4xbf16, #tpu.memory_space<vmem>>, vector<1x1x72x4xbf16>
    %14 = vector.shape_cast %13 : vector<1x1x72x4xbf16> to vector<72x4xbf16>
    %c2 = arith.constant 2 : index
    %c0_18 = arith.constant 0 : index
    %c0_19 = arith.constant 0 : index
    %15 = vector.load %arg3[%c2, %c0_18, %c0_19] : memref<9x4x8xbf16, #tpu.memory_space<vmem>>, vector<1x4x8xbf16>
    %16 = vector.shape_cast %15 : vector<1x4x8xbf16> to vector<4x8xbf16>
    %cst_20 = arith.constant dense<0.000000e+00> : vector<72x8xf32>
    %17 = tpu.matmul %14, %16, %cst_20 {dimension_numbers = #tpu.dot_dimension_numbers<[1], [0], [0], [1], [0, 0, 1, 1], [], []>} : vector<72x4xbf16>, vector<4x8xbf16>, vector<72x8xf32> -> vector<72x8xf32>
    %18 = arith.addf %12, %17 : vector<72x8xf32>
    %c0_21 = arith.constant 0 : index
    %c2_22 = arith.constant 2 : index
    %c0_23 = arith.constant 0 : index
    %c0_24 = arith.constant 0 : index
    %19 = vector.load %arg2[%c0_21, %c2_22, %c0_23, %c0_24] : memref<1x4x90x4xbf16, #tpu.memory_space<vmem>>, vector<1x1x72x4xbf16>
    %20 = vector.shape_cast %19 : vector<1x1x72x4xbf16> to vector<72x4xbf16>
    %c3 = arith.constant 3 : index
    %c0_25 = arith.constant 0 : index
    %c0_26 = arith.constant 0 : index
    %21 = vector.load %arg3[%c3, %c0_25, %c0_26] : memref<9x4x8xbf16, #tpu.memory_space<vmem>>, vector<1x4x8xbf16>
    %22 = vector.shape_cast %21 : vector<1x4x8xbf16> to vector<4x8xbf16>
    %cst_27 = arith.constant dense<0.000000e+00> : vector<72x8xf32>
    %23 = tpu.matmul %20, %22, %cst_27 {dimension_numbers = #tpu.dot_dimension_numbers<[1], [0], [0], [1], [0, 0, 1, 1], [], []>} : vector<72x4xbf16>, vector<4x8xbf16>, vector<72x8xf32> -> vector<72x8xf32>
    %24 = arith.addf %18, %23 : vector<72x8xf32>
    %c0_28 = arith.constant 0 : index
    %c3_29 = arith.constant 3 : index
    %c0_30 = arith.constant 0 : index
    %c0_31 = arith.constant 0 : index
    %25 = vector.load %arg2[%c0_28, %c3_29, %c0_30, %c0_31] : memref<1x4x90x4xbf16, #tpu.memory_space<vmem>>, vector<1x1x72x4xbf16>
    %26 = vector.shape_cast %25 : vector<1x1x72x4xbf16> to vector<72x4xbf16>
    %c4 = arith.constant 4 : index
    %c0_32 = arith.constant 0 : index
    %c0_33 = arith.constant 0 : index
    %27 = vector.load %arg3[%c4, %c0_32, %c0_33] : memref<9x4x8xbf16, #tpu.memory_space<vmem>>, vector<1x4x8xbf16>
    %28 = vector.shape_cast %27 : vector<1x4x8xbf16> to vector<4x8xbf16>
    %cst_34 = arith.constant dense<0.000000e+00> : vector<72x8xf32>
    %29 = tpu.matmul %26, %28, %cst_34 {dimension_numbers = #tpu.dot_dimension_numbers<[1], [0], [0], [1], [0, 0, 1, 1], [], []>} : vector<72x4xbf16>, vector<4x8xbf16>, vector<72x8xf32> -> vector<72x8xf32>
    %30 = arith.addf %24, %29 : vector<72x8xf32>
    %c0_35 = arith.constant 0 : index
    %c2_36 = arith.constant 2 : index
    %c1_37 = arith.constant 1 : index
    %c0_38 = arith.constant 0 : index
    %31 = vector.load %arg2[%c0_35, %c2_36, %c1_37, %c0_38] : memref<1x4x90x4xbf16, #tpu.memory_space<vmem>>, vector<1x1x72x4xbf16>
    %32 = vector.shape_cast %31 : vector<1x1x72x4xbf16> to vector<72x4xbf16>
    %c5 = arith.constant 5 : index
    %c0_39 = arith.constant 0 : index
    %c0_40 = arith.constant 0 : index
    %33 = vector.load %arg3[%c5, %c0_39, %c0_40] : memref<9x4x8xbf16, #tpu.memory_space<vmem>>, vector<1x4x8xbf16>
    %34 = vector.shape_cast %33 : vector<1x4x8xbf16> to vector<4x8xbf16>
    %cst_41 = arith.constant dense<0.000000e+00> : vector<72x8xf32>
    %35 = tpu.matmul %32, %34, %cst_41 {dimension_numbers = #tpu.dot_dimension_numbers<[1], [0], [0], [1], [0, 0, 1, 1], [], []>} : vector<72x4xbf16>, vector<4x8xbf16>, vector<72x8xf32> -> vector<72x8xf32>
    %36 = arith.addf %30, %35 : vector<72x8xf32>
    %c0_42 = arith.constant 0 : index
    %c0_43 = arith.constant 0 : index
    %c9 = arith.constant 9 : index
    %c0_44 = arith.constant 0 : index
    %37 = vector.load %arg2[%c0_42, %c0_43, %c9, %c0_44] : memref<1x4x90x4xbf16, #tpu.memory_space<vmem>>, vector<1x1x72x4xbf16>
    %38 = vector.shape_cast %37 : vector<1x1x72x4xbf16> to vector<72x4xbf16>
    %c6 = arith.constant 6 : index
    %c0_45 = arith.constant 0 : index
    %c0_46 = arith.constant 0 : index
    %39 = vector.load %arg3[%c6, %c0_45, %c0_46] : memref<9x4x8xbf16, #tpu.memory_space<vmem>>, vector<1x4x8xbf16>
    %40 = vector.shape_cast %39 : vector<1x4x8xbf16> to vector<4x8xbf16>
    %cst_47 = arith.constant dense<0.000000e+00> : vector<72x8xf32>
    %41 = tpu.matmul %38, %40, %cst_47 {dimension_numbers = #tpu.dot_dimension_numbers<[1], [0], [0], [1], [0, 0, 1, 1], [], []>} : vector<72x4xbf16>, vector<4x8xbf16>, vector<72x8xf32> -> vector<72x8xf32>
    %42 = arith.addf %36, %41 : vector<72x8xf32>
    %c0_48 = arith.constant 0 : index
    %c1_49 = arith.constant 1 : index
    %c9_50 = arith.constant 9 : index
    %c0_51 = arith.constant 0 : index
    %43 = vector.load %arg2[%c0_48, %c1_49, %c9_50, %c0_51] : memref<1x4x90x4xbf16, #tpu.memory_space<vmem>>, vector<1x1x72x4xbf16>
    %44 = vector.shape_cast %43 : vector<1x1x72x4xbf16> to vector<72x4xbf16>
    %c7 = arith.constant 7 : index
    %c0_52 = arith.constant 0 : index
    %c0_53 = arith.constant 0 : index
    %45 = vector.load %arg3[%c7, %c0_52, %c0_53] : memref<9x4x8xbf16, #tpu.memory_space<vmem>>, vector<1x4x8xbf16>
    %46 = vector.shape_cast %45 : vector<1x4x8xbf16> to vector<4x8xbf16>
    %cst_54 = arith.constant dense<0.000000e+00> : vector<72x8xf32>
    %47 = tpu.matmul %44, %46, %cst_54 {dimension_numbers = #tpu.dot_dimension_numbers<[1], [0], [0], [1], [0, 0, 1, 1], [], []>} : vector<72x4xbf16>, vector<4x8xbf16>, vector<72x8xf32> -> vector<72x8xf32>
    %48 = arith.addf %42, %47 : vector<72x8xf32>
    %c0_55 = arith.constant 0 : index
    %c0_56 = arith.constant 0 : index
    %c10 = arith.constant 10 : index
    %c0_57 = arith.constant 0 : index
    %49 = vector.load %arg2[%c0_55, %c0_56, %c10, %c0_57] : memref<1x4x90x4xbf16, #tpu.memory_space<vmem>>, vector<1x1x72x4xbf16>
    %50 = vector.shape_cast %49 : vector<1x1x72x4xbf16> to vector<72x4xbf16>
    %c8 = arith.constant 8 : index
    %c0_58 = arith.constant 0 : index
    %c0_59 = arith.constant 0 : index
    %51 = vector.load %arg3[%c8, %c0_58, %c0_59] : memref<9x4x8xbf16, #tpu.memory_space<vmem>>, vector<1x4x8xbf16>
    %52 = vector.shape_cast %51 : vector<1x4x8xbf16> to vector<4x8xbf16>
    %cst_60 = arith.constant dense<0.000000e+00> : vector<72x8xf32>
    %53 = tpu.matmul %50, %52, %cst_60 {dimension_numbers = #tpu.dot_dimension_numbers<[1], [0], [0], [1], [0, 0, 1, 1], [], []>} : vector<72x4xbf16>, vector<4x8xbf16>, vector<72x8xf32> -> vector<72x8xf32>
    %54 = arith.addf %48, %53 : vector<72x8xf32>
    %c0_61 = arith.constant 0 : index
    %c0_62 = arith.constant 0 : index
    %55 = vector.load %arg4[%c0_61, %c0_62] : memref<1x8xf32, #tpu.memory_space<vmem>>, vector<1x8xf32>
    %56 = vector.broadcast %55 : vector<1x8xf32> to vector<72x8xf32>
    %57 = arith.addf %54, %56 : vector<72x8xf32>
    %cst_63 = arith.constant 0.000000e+00 : f32
    %58 = vector.broadcast %cst_63 : f32 to vector<72x8xf32>
    %59 = arith.maximumf %57, %58 : vector<72x8xf32>
    %60 = vector.shape_cast %59 : vector<72x8xf32> to vector<1x72x8xf32>
    %61 = arith.truncf %60 : vector<1x72x8xf32> to vector<1x72x8xbf16>
    %c0_64 = arith.constant 0 : index
    %c0_65 = arith.constant 0 : index
    %c0_66 = arith.constant 0 : index
    %62 = vector.load %arg5[%c0_64, %c0_65, %c0_66] : memref<1x72x8xbf16, #tpu.memory_space<vmem>>, vector<1x72x8xbf16>
    tpu.vector_store %arg5[%c0_64, %c0_65, %c0_66], %61 {strides = array<i32>} : memref<1x72x8xbf16, #tpu.memory_space<vmem>>, vector<1x72x8xbf16>,
    return
  }
  func.func @transform_0(%arg0: i32, %arg1: i32) -> (i32, i32, i32, i32) {
    %c0_i32 = arith.constant 0 : i32
    %c0_i32_0 = arith.constant 0 : i32
    %c0_i32_1 = arith.constant 0 : i32
    %c0_i32_2 = arith.constant 0 : i32
    return %arg0, %c0_i32, %c0_i32_0, %c0_i32_1 : i32, i32, i32, i32
  }
  func.func @transform_1(%arg0: i32, %arg1: i32) -> (i32, i32, i32) {
    %c0_i32 = arith.constant 0 : i32
    %c0_i32_0 = arith.constant 0 : i32
    %c0_i32_1 = arith.constant 0 : i32
    return %c0_i32, %c0_i32_0, %arg1 : i32, i32, i32
  }
  func.func @transform_2(%arg0: i32, %arg1: i32) -> (i32, i32) {
    %c0_i32 = arith.constant 0 : i32
    %c0_i32_0 = arith.constant 0 : i32
    return %c0_i32, %arg1 : i32, i32
  }
  func.func @transform_3(%arg0: i32, %arg1: i32) -> (i32, i32, i32) {
    %c0_i32 = arith.constant 0 : i32
    %c0_i32_0 = arith.constant 0 : i32
    return %arg0, %c0_i32, %arg1 : i32, i32, i32
  }
}

module attributes {stable_mosaic.version = 11 : i64} {
  func.func @_conv_kernel(%arg0: i32, %arg1: i32, %arg2: memref<1x4x30x8xbf16, #tpu.memory_space<vmem>>, %arg3: memref<9x8x16xbf16, #tpu.memory_space<vmem>>, %arg4: memref<1x16xf32, #tpu.memory_space<vmem>>, %arg5: memref<1x20x16xbf16, #tpu.memory_space<vmem>>) attributes {dimension_semantics = [#tpu.dimension_semantics<parallel>, #tpu.dimension_semantics<parallel>], iteration_bounds = array<i64: 2, 1>, scalar_prefetch = 0 : i64, scratch_operands = 0 : i64, tpu.core_type = #tpu.core_type<tc>, window_params = [{transform_indices = @transform_0, window_bounds = array<i64: 1, 4, 30, 8>}, {transform_indices = @transform_1, window_bounds = array<i64: 9, 8, 16>}, {transform_indices = @transform_2, window_bounds = array<i64: 1, 16>}, {transform_indices = @transform_3, window_bounds = array<i64: 1, 20, 16>}]} {
    %cst = arith.constant 0.000000e+00 : f32
    %0 = vector.broadcast %cst : f32 to vector<20x16xf32>
    %c0 = arith.constant 0 : index
    %c0_0 = arith.constant 0 : index
    %c0_1 = arith.constant 0 : index
    %c0_2 = arith.constant 0 : index
    %1 = vector.load %arg2[%c0, %c0_0, %c0_1, %c0_2] : memref<1x4x30x8xbf16, #tpu.memory_space<vmem>>, vector<1x1x20x8xbf16>
    %2 = vector.shape_cast %1 : vector<1x1x20x8xbf16> to vector<20x8xbf16>
    %c0_3 = arith.constant 0 : index
    %c0_4 = arith.constant 0 : index
    %c0_5 = arith.constant 0 : index
    %3 = vector.load %arg3[%c0_3, %c0_4, %c0_5] : memref<9x8x16xbf16, #tpu.memory_space<vmem>>, vector<1x8x16xbf16>
    %4 = vector.shape_cast %3 : vector<1x8x16xbf16> to vector<8x16xbf16>
    %cst_6 = arith.constant dense<0.000000e+00> : vector<20x16xf32>
    %5 = tpu.matmul %2, %4, %cst_6 {dimension_numbers = #tpu.dot_dimension_numbers<[1], [0], [0], [1], [0, 0, 1, 1], [], []>} : vector<20x8xbf16>, vector<8x16xbf16>, vector<20x16xf32> -> vector<20x16xf32>
    %6 = arith.addf %0, %5 : vector<20x16xf32>
    %c0_7 = arith.constant 0 : index
    %c1 = arith.constant 1 : index
    %c0_8 = arith.constant 0 : index
    %c0_9 = arith.constant 0 : index
    %7 = vector.load %arg2[%c0_7, %c1, %c0_8, %c0_9] : memref<1x4x30x8xbf16, #tpu.memory_space<vmem>>, vector<1x1x20x8xbf16>
    %8 = vector.shape_cast %7 : vector<1x1x20x8xbf16> to vector<20x8xbf16>
    %c1_10 = arith.constant 1 : index
    %c0_11 = arith.constant 0 : index
    %c0_12 = arith.constant 0 : index
    %9 = vector.load %arg3[%c1_10, %c0_11, %c0_12] : memref<9x8x16xbf16, #tpu.memory_space<vmem>>, vector<1x8x16xbf16>
    %10 = vector.shape_cast %9 : vector<1x8x16xbf16> to vector<8x16xbf16>
    %cst_13 = arith.constant dense<0.000000e+00> : vector<20x16xf32>
    %11 = tpu.matmul %8, %10, %cst_13 {dimension_numbers = #tpu.dot_dimension_numbers<[1], [0], [0], [1], [0, 0, 1, 1], [], []>} : vector<20x8xbf16>, vector<8x16xbf16>, vector<20x16xf32> -> vector<20x16xf32>
    %12 = arith.addf %6, %11 : vector<20x16xf32>
    %c0_14 = arith.constant 0 : index
    %c0_15 = arith.constant 0 : index
    %c1_16 = arith.constant 1 : index
    %c0_17 = arith.constant 0 : index
    %13 = vector.load %arg2[%c0_14, %c0_15, %c1_16, %c0_17] : memref<1x4x30x8xbf16, #tpu.memory_space<vmem>>, vector<1x1x20x8xbf16>
    %14 = vector.shape_cast %13 : vector<1x1x20x8xbf16> to vector<20x8xbf16>
    %c2 = arith.constant 2 : index
    %c0_18 = arith.constant 0 : index
    %c0_19 = arith.constant 0 : index
    %15 = vector.load %arg3[%c2, %c0_18, %c0_19] : memref<9x8x16xbf16, #tpu.memory_space<vmem>>, vector<1x8x16xbf16>
    %16 = vector.shape_cast %15 : vector<1x8x16xbf16> to vector<8x16xbf16>
    %cst_20 = arith.constant dense<0.000000e+00> : vector<20x16xf32>
    %17 = tpu.matmul %14, %16, %cst_20 {dimension_numbers = #tpu.dot_dimension_numbers<[1], [0], [0], [1], [0, 0, 1, 1], [], []>} : vector<20x8xbf16>, vector<8x16xbf16>, vector<20x16xf32> -> vector<20x16xf32>
    %18 = arith.addf %12, %17 : vector<20x16xf32>
    %c0_21 = arith.constant 0 : index
    %c2_22 = arith.constant 2 : index
    %c0_23 = arith.constant 0 : index
    %c0_24 = arith.constant 0 : index
    %19 = vector.load %arg2[%c0_21, %c2_22, %c0_23, %c0_24] : memref<1x4x30x8xbf16, #tpu.memory_space<vmem>>, vector<1x1x20x8xbf16>
    %20 = vector.shape_cast %19 : vector<1x1x20x8xbf16> to vector<20x8xbf16>
    %c3 = arith.constant 3 : index
    %c0_25 = arith.constant 0 : index
    %c0_26 = arith.constant 0 : index
    %21 = vector.load %arg3[%c3, %c0_25, %c0_26] : memref<9x8x16xbf16, #tpu.memory_space<vmem>>, vector<1x8x16xbf16>
    %22 = vector.shape_cast %21 : vector<1x8x16xbf16> to vector<8x16xbf16>
    %cst_27 = arith.constant dense<0.000000e+00> : vector<20x16xf32>
    %23 = tpu.matmul %20, %22, %cst_27 {dimension_numbers = #tpu.dot_dimension_numbers<[1], [0], [0], [1], [0, 0, 1, 1], [], []>} : vector<20x8xbf16>, vector<8x16xbf16>, vector<20x16xf32> -> vector<20x16xf32>
    %24 = arith.addf %18, %23 : vector<20x16xf32>
    %c0_28 = arith.constant 0 : index
    %c3_29 = arith.constant 3 : index
    %c0_30 = arith.constant 0 : index
    %c0_31 = arith.constant 0 : index
    %25 = vector.load %arg2[%c0_28, %c3_29, %c0_30, %c0_31] : memref<1x4x30x8xbf16, #tpu.memory_space<vmem>>, vector<1x1x20x8xbf16>
    %26 = vector.shape_cast %25 : vector<1x1x20x8xbf16> to vector<20x8xbf16>
    %c4 = arith.constant 4 : index
    %c0_32 = arith.constant 0 : index
    %c0_33 = arith.constant 0 : index
    %27 = vector.load %arg3[%c4, %c0_32, %c0_33] : memref<9x8x16xbf16, #tpu.memory_space<vmem>>, vector<1x8x16xbf16>
    %28 = vector.shape_cast %27 : vector<1x8x16xbf16> to vector<8x16xbf16>
    %cst_34 = arith.constant dense<0.000000e+00> : vector<20x16xf32>
    %29 = tpu.matmul %26, %28, %cst_34 {dimension_numbers = #tpu.dot_dimension_numbers<[1], [0], [0], [1], [0, 0, 1, 1], [], []>} : vector<20x8xbf16>, vector<8x16xbf16>, vector<20x16xf32> -> vector<20x16xf32>
    %30 = arith.addf %24, %29 : vector<20x16xf32>
    %c0_35 = arith.constant 0 : index
    %c2_36 = arith.constant 2 : index
    %c1_37 = arith.constant 1 : index
    %c0_38 = arith.constant 0 : index
    %31 = vector.load %arg2[%c0_35, %c2_36, %c1_37, %c0_38] : memref<1x4x30x8xbf16, #tpu.memory_space<vmem>>, vector<1x1x20x8xbf16>
    %32 = vector.shape_cast %31 : vector<1x1x20x8xbf16> to vector<20x8xbf16>
    %c5 = arith.constant 5 : index
    %c0_39 = arith.constant 0 : index
    %c0_40 = arith.constant 0 : index
    %33 = vector.load %arg3[%c5, %c0_39, %c0_40] : memref<9x8x16xbf16, #tpu.memory_space<vmem>>, vector<1x8x16xbf16>
    %34 = vector.shape_cast %33 : vector<1x8x16xbf16> to vector<8x16xbf16>
    %cst_41 = arith.constant dense<0.000000e+00> : vector<20x16xf32>
    %35 = tpu.matmul %32, %34, %cst_41 {dimension_numbers = #tpu.dot_dimension_numbers<[1], [0], [0], [1], [0, 0, 1, 1], [], []>} : vector<20x8xbf16>, vector<8x16xbf16>, vector<20x16xf32> -> vector<20x16xf32>
    %36 = arith.addf %30, %35 : vector<20x16xf32>
    %c0_42 = arith.constant 0 : index
    %c0_43 = arith.constant 0 : index
    %c5_44 = arith.constant 5 : index
    %c0_45 = arith.constant 0 : index
    %37 = vector.load %arg2[%c0_42, %c0_43, %c5_44, %c0_45] : memref<1x4x30x8xbf16, #tpu.memory_space<vmem>>, vector<1x1x20x8xbf16>
    %38 = vector.shape_cast %37 : vector<1x1x20x8xbf16> to vector<20x8xbf16>
    %c6 = arith.constant 6 : index
    %c0_46 = arith.constant 0 : index
    %c0_47 = arith.constant 0 : index
    %39 = vector.load %arg3[%c6, %c0_46, %c0_47] : memref<9x8x16xbf16, #tpu.memory_space<vmem>>, vector<1x8x16xbf16>
    %40 = vector.shape_cast %39 : vector<1x8x16xbf16> to vector<8x16xbf16>
    %cst_48 = arith.constant dense<0.000000e+00> : vector<20x16xf32>
    %41 = tpu.matmul %38, %40, %cst_48 {dimension_numbers = #tpu.dot_dimension_numbers<[1], [0], [0], [1], [0, 0, 1, 1], [], []>} : vector<20x8xbf16>, vector<8x16xbf16>, vector<20x16xf32> -> vector<20x16xf32>
    %42 = arith.addf %36, %41 : vector<20x16xf32>
    %c0_49 = arith.constant 0 : index
    %c1_50 = arith.constant 1 : index
    %c5_51 = arith.constant 5 : index
    %c0_52 = arith.constant 0 : index
    %43 = vector.load %arg2[%c0_49, %c1_50, %c5_51, %c0_52] : memref<1x4x30x8xbf16, #tpu.memory_space<vmem>>, vector<1x1x20x8xbf16>
    %44 = vector.shape_cast %43 : vector<1x1x20x8xbf16> to vector<20x8xbf16>
    %c7 = arith.constant 7 : index
    %c0_53 = arith.constant 0 : index
    %c0_54 = arith.constant 0 : index
    %45 = vector.load %arg3[%c7, %c0_53, %c0_54] : memref<9x8x16xbf16, #tpu.memory_space<vmem>>, vector<1x8x16xbf16>
    %46 = vector.shape_cast %45 : vector<1x8x16xbf16> to vector<8x16xbf16>
    %cst_55 = arith.constant dense<0.000000e+00> : vector<20x16xf32>
    %47 = tpu.matmul %44, %46, %cst_55 {dimension_numbers = #tpu.dot_dimension_numbers<[1], [0], [0], [1], [0, 0, 1, 1], [], []>} : vector<20x8xbf16>, vector<8x16xbf16>, vector<20x16xf32> -> vector<20x16xf32>
    %48 = arith.addf %42, %47 : vector<20x16xf32>
    %c0_56 = arith.constant 0 : index
    %c0_57 = arith.constant 0 : index
    %c6_58 = arith.constant 6 : index
    %c0_59 = arith.constant 0 : index
    %49 = vector.load %arg2[%c0_56, %c0_57, %c6_58, %c0_59] : memref<1x4x30x8xbf16, #tpu.memory_space<vmem>>, vector<1x1x20x8xbf16>
    %50 = vector.shape_cast %49 : vector<1x1x20x8xbf16> to vector<20x8xbf16>
    %c8 = arith.constant 8 : index
    %c0_60 = arith.constant 0 : index
    %c0_61 = arith.constant 0 : index
    %51 = vector.load %arg3[%c8, %c0_60, %c0_61] : memref<9x8x16xbf16, #tpu.memory_space<vmem>>, vector<1x8x16xbf16>
    %52 = vector.shape_cast %51 : vector<1x8x16xbf16> to vector<8x16xbf16>
    %cst_62 = arith.constant dense<0.000000e+00> : vector<20x16xf32>
    %53 = tpu.matmul %50, %52, %cst_62 {dimension_numbers = #tpu.dot_dimension_numbers<[1], [0], [0], [1], [0, 0, 1, 1], [], []>} : vector<20x8xbf16>, vector<8x16xbf16>, vector<20x16xf32> -> vector<20x16xf32>
    %54 = arith.addf %48, %53 : vector<20x16xf32>
    %c0_63 = arith.constant 0 : index
    %c0_64 = arith.constant 0 : index
    %55 = vector.load %arg4[%c0_63, %c0_64] : memref<1x16xf32, #tpu.memory_space<vmem>>, vector<1x16xf32>
    %56 = vector.broadcast %55 : vector<1x16xf32> to vector<20x16xf32>
    %57 = arith.addf %54, %56 : vector<20x16xf32>
    %cst_65 = arith.constant 0.000000e+00 : f32
    %58 = vector.broadcast %cst_65 : f32 to vector<20x16xf32>
    %59 = arith.maximumf %57, %58 : vector<20x16xf32>
    %60 = vector.shape_cast %59 : vector<20x16xf32> to vector<1x20x16xf32>
    %61 = arith.truncf %60 : vector<1x20x16xf32> to vector<1x20x16xbf16>
    %c0_66 = arith.constant 0 : index
    %c0_67 = arith.constant 0 : index
    %c0_68 = arith.constant 0 : index
    %62 = vector.load %arg5[%c0_66, %c0_67, %c0_68] : memref<1x20x16xbf16, #tpu.memory_space<vmem>>, vector<1x20x16xbf16>
    tpu.vector_store %arg5[%c0_66, %c0_67, %c0_68], %61 {strides = array<i32>} : memref<1x20x16xbf16, #tpu.memory_space<vmem>>, vector<1x20x16xbf16>,
    return
  }
  func.func @transform_0(%arg0: i32, %arg1: i32) -> (i32, i32, i32, i32) {
    %c0_i32 = arith.constant 0 : i32
    %c0_i32_0 = arith.constant 0 : i32
    %c0_i32_1 = arith.constant 0 : i32
    %c0_i32_2 = arith.constant 0 : i32
    return %arg0, %c0_i32, %c0_i32_0, %c0_i32_1 : i32, i32, i32, i32
  }
  func.func @transform_1(%arg0: i32, %arg1: i32) -> (i32, i32, i32) {
    %c0_i32 = arith.constant 0 : i32
    %c0_i32_0 = arith.constant 0 : i32
    %c0_i32_1 = arith.constant 0 : i32
    return %c0_i32, %c0_i32_0, %arg1 : i32, i32, i32
  }
  func.func @transform_2(%arg0: i32, %arg1: i32) -> (i32, i32) {
    %c0_i32 = arith.constant 0 : i32
    %c0_i32_0 = arith.constant 0 : i32
    return %c0_i32, %arg1 : i32, i32
  }
  func.func @transform_3(%arg0: i32, %arg1: i32) -> (i32, i32, i32) {
    %c0_i32 = arith.constant 0 : i32
    %c0_i32_0 = arith.constant 0 : i32
    return %arg0, %c0_i32, %arg1 : i32, i32, i32
  }
}

module attributes {stable_mosaic.version = 11 : i64} {
  func.func @_conv_kernel(%arg0: i32, %arg1: i32, %arg2: memref<1x4x12x16xbf16, #tpu.memory_space<vmem>>, %arg3: memref<9x16x32xbf16, #tpu.memory_space<vmem>>, %arg4: memref<1x32xf32, #tpu.memory_space<vmem>>, %arg5: memref<1x6x32xbf16, #tpu.memory_space<vmem>>) attributes {dimension_semantics = [#tpu.dimension_semantics<parallel>, #tpu.dimension_semantics<parallel>], iteration_bounds = array<i64: 2, 1>, scalar_prefetch = 0 : i64, scratch_operands = 0 : i64, tpu.core_type = #tpu.core_type<tc>, window_params = [{transform_indices = @transform_0, window_bounds = array<i64: 1, 4, 12, 16>}, {transform_indices = @transform_1, window_bounds = array<i64: 9, 16, 32>}, {transform_indices = @transform_2, window_bounds = array<i64: 1, 32>}, {transform_indices = @transform_3, window_bounds = array<i64: 1, 6, 32>}]} {
    %cst = arith.constant 0.000000e+00 : f32
    %0 = vector.broadcast %cst : f32 to vector<6x32xf32>
    %c0 = arith.constant 0 : index
    %c0_0 = arith.constant 0 : index
    %c0_1 = arith.constant 0 : index
    %c0_2 = arith.constant 0 : index
    %1 = vector.load %arg2[%c0, %c0_0, %c0_1, %c0_2] : memref<1x4x12x16xbf16, #tpu.memory_space<vmem>>, vector<1x1x6x16xbf16>
    %2 = vector.shape_cast %1 : vector<1x1x6x16xbf16> to vector<6x16xbf16>
    %c0_3 = arith.constant 0 : index
    %c0_4 = arith.constant 0 : index
    %c0_5 = arith.constant 0 : index
    %3 = vector.load %arg3[%c0_3, %c0_4, %c0_5] : memref<9x16x32xbf16, #tpu.memory_space<vmem>>, vector<1x16x32xbf16>
    %4 = vector.shape_cast %3 : vector<1x16x32xbf16> to vector<16x32xbf16>
    %cst_6 = arith.constant dense<0.000000e+00> : vector<6x32xf32>
    %5 = tpu.matmul %2, %4, %cst_6 {dimension_numbers = #tpu.dot_dimension_numbers<[1], [0], [0], [1], [0, 0, 1, 1], [], []>} : vector<6x16xbf16>, vector<16x32xbf16>, vector<6x32xf32> -> vector<6x32xf32>
    %6 = arith.addf %0, %5 : vector<6x32xf32>
    %c0_7 = arith.constant 0 : index
    %c1 = arith.constant 1 : index
    %c0_8 = arith.constant 0 : index
    %c0_9 = arith.constant 0 : index
    %7 = vector.load %arg2[%c0_7, %c1, %c0_8, %c0_9] : memref<1x4x12x16xbf16, #tpu.memory_space<vmem>>, vector<1x1x6x16xbf16>
    %8 = vector.shape_cast %7 : vector<1x1x6x16xbf16> to vector<6x16xbf16>
    %c1_10 = arith.constant 1 : index
    %c0_11 = arith.constant 0 : index
    %c0_12 = arith.constant 0 : index
    %9 = vector.load %arg3[%c1_10, %c0_11, %c0_12] : memref<9x16x32xbf16, #tpu.memory_space<vmem>>, vector<1x16x32xbf16>
    %10 = vector.shape_cast %9 : vector<1x16x32xbf16> to vector<16x32xbf16>
    %cst_13 = arith.constant dense<0.000000e+00> : vector<6x32xf32>
    %11 = tpu.matmul %8, %10, %cst_13 {dimension_numbers = #tpu.dot_dimension_numbers<[1], [0], [0], [1], [0, 0, 1, 1], [], []>} : vector<6x16xbf16>, vector<16x32xbf16>, vector<6x32xf32> -> vector<6x32xf32>
    %12 = arith.addf %6, %11 : vector<6x32xf32>
    %c0_14 = arith.constant 0 : index
    %c0_15 = arith.constant 0 : index
    %c1_16 = arith.constant 1 : index
    %c0_17 = arith.constant 0 : index
    %13 = vector.load %arg2[%c0_14, %c0_15, %c1_16, %c0_17] : memref<1x4x12x16xbf16, #tpu.memory_space<vmem>>, vector<1x1x6x16xbf16>
    %14 = vector.shape_cast %13 : vector<1x1x6x16xbf16> to vector<6x16xbf16>
    %c2 = arith.constant 2 : index
    %c0_18 = arith.constant 0 : index
    %c0_19 = arith.constant 0 : index
    %15 = vector.load %arg3[%c2, %c0_18, %c0_19] : memref<9x16x32xbf16, #tpu.memory_space<vmem>>, vector<1x16x32xbf16>
    %16 = vector.shape_cast %15 : vector<1x16x32xbf16> to vector<16x32xbf16>
    %cst_20 = arith.constant dense<0.000000e+00> : vector<6x32xf32>
    %17 = tpu.matmul %14, %16, %cst_20 {dimension_numbers = #tpu.dot_dimension_numbers<[1], [0], [0], [1], [0, 0, 1, 1], [], []>} : vector<6x16xbf16>, vector<16x32xbf16>, vector<6x32xf32> -> vector<6x32xf32>
    %18 = arith.addf %12, %17 : vector<6x32xf32>
    %c0_21 = arith.constant 0 : index
    %c2_22 = arith.constant 2 : index
    %c0_23 = arith.constant 0 : index
    %c0_24 = arith.constant 0 : index
    %19 = vector.load %arg2[%c0_21, %c2_22, %c0_23, %c0_24] : memref<1x4x12x16xbf16, #tpu.memory_space<vmem>>, vector<1x1x6x16xbf16>
    %20 = vector.shape_cast %19 : vector<1x1x6x16xbf16> to vector<6x16xbf16>
    %c3 = arith.constant 3 : index
    %c0_25 = arith.constant 0 : index
    %c0_26 = arith.constant 0 : index
    %21 = vector.load %arg3[%c3, %c0_25, %c0_26] : memref<9x16x32xbf16, #tpu.memory_space<vmem>>, vector<1x16x32xbf16>
    %22 = vector.shape_cast %21 : vector<1x16x32xbf16> to vector<16x32xbf16>
    %cst_27 = arith.constant dense<0.000000e+00> : vector<6x32xf32>
    %23 = tpu.matmul %20, %22, %cst_27 {dimension_numbers = #tpu.dot_dimension_numbers<[1], [0], [0], [1], [0, 0, 1, 1], [], []>} : vector<6x16xbf16>, vector<16x32xbf16>, vector<6x32xf32> -> vector<6x32xf32>
    %24 = arith.addf %18, %23 : vector<6x32xf32>
    %c0_28 = arith.constant 0 : index
    %c3_29 = arith.constant 3 : index
    %c0_30 = arith.constant 0 : index
    %c0_31 = arith.constant 0 : index
    %25 = vector.load %arg2[%c0_28, %c3_29, %c0_30, %c0_31] : memref<1x4x12x16xbf16, #tpu.memory_space<vmem>>, vector<1x1x6x16xbf16>
    %26 = vector.shape_cast %25 : vector<1x1x6x16xbf16> to vector<6x16xbf16>
    %c4 = arith.constant 4 : index
    %c0_32 = arith.constant 0 : index
    %c0_33 = arith.constant 0 : index
    %27 = vector.load %arg3[%c4, %c0_32, %c0_33] : memref<9x16x32xbf16, #tpu.memory_space<vmem>>, vector<1x16x32xbf16>
    %28 = vector.shape_cast %27 : vector<1x16x32xbf16> to vector<16x32xbf16>
    %cst_34 = arith.constant dense<0.000000e+00> : vector<6x32xf32>
    %29 = tpu.matmul %26, %28, %cst_34 {dimension_numbers = #tpu.dot_dimension_numbers<[1], [0], [0], [1], [0, 0, 1, 1], [], []>} : vector<6x16xbf16>, vector<16x32xbf16>, vector<6x32xf32> -> vector<6x32xf32>
    %30 = arith.addf %24, %29 : vector<6x32xf32>
    %c0_35 = arith.constant 0 : index
    %c2_36 = arith.constant 2 : index
    %c1_37 = arith.constant 1 : index
    %c0_38 = arith.constant 0 : index
    %31 = vector.load %arg2[%c0_35, %c2_36, %c1_37, %c0_38] : memref<1x4x12x16xbf16, #tpu.memory_space<vmem>>, vector<1x1x6x16xbf16>
    %32 = vector.shape_cast %31 : vector<1x1x6x16xbf16> to vector<6x16xbf16>
    %c5 = arith.constant 5 : index
    %c0_39 = arith.constant 0 : index
    %c0_40 = arith.constant 0 : index
    %33 = vector.load %arg3[%c5, %c0_39, %c0_40] : memref<9x16x32xbf16, #tpu.memory_space<vmem>>, vector<1x16x32xbf16>
    %34 = vector.shape_cast %33 : vector<1x16x32xbf16> to vector<16x32xbf16>
    %cst_41 = arith.constant dense<0.000000e+00> : vector<6x32xf32>
    %35 = tpu.matmul %32, %34, %cst_41 {dimension_numbers = #tpu.dot_dimension_numbers<[1], [0], [0], [1], [0, 0, 1, 1], [], []>} : vector<6x16xbf16>, vector<16x32xbf16>, vector<6x32xf32> -> vector<6x32xf32>
    %36 = arith.addf %30, %35 : vector<6x32xf32>
    %c0_42 = arith.constant 0 : index
    %c0_43 = arith.constant 0 : index
    %c3_44 = arith.constant 3 : index
    %c0_45 = arith.constant 0 : index
    %37 = vector.load %arg2[%c0_42, %c0_43, %c3_44, %c0_45] : memref<1x4x12x16xbf16, #tpu.memory_space<vmem>>, vector<1x1x6x16xbf16>
    %38 = vector.shape_cast %37 : vector<1x1x6x16xbf16> to vector<6x16xbf16>
    %c6 = arith.constant 6 : index
    %c0_46 = arith.constant 0 : index
    %c0_47 = arith.constant 0 : index
    %39 = vector.load %arg3[%c6, %c0_46, %c0_47] : memref<9x16x32xbf16, #tpu.memory_space<vmem>>, vector<1x16x32xbf16>
    %40 = vector.shape_cast %39 : vector<1x16x32xbf16> to vector<16x32xbf16>
    %cst_48 = arith.constant dense<0.000000e+00> : vector<6x32xf32>
    %41 = tpu.matmul %38, %40, %cst_48 {dimension_numbers = #tpu.dot_dimension_numbers<[1], [0], [0], [1], [0, 0, 1, 1], [], []>} : vector<6x16xbf16>, vector<16x32xbf16>, vector<6x32xf32> -> vector<6x32xf32>
    %42 = arith.addf %36, %41 : vector<6x32xf32>
    %c0_49 = arith.constant 0 : index
    %c1_50 = arith.constant 1 : index
    %c3_51 = arith.constant 3 : index
    %c0_52 = arith.constant 0 : index
    %43 = vector.load %arg2[%c0_49, %c1_50, %c3_51, %c0_52] : memref<1x4x12x16xbf16, #tpu.memory_space<vmem>>, vector<1x1x6x16xbf16>
    %44 = vector.shape_cast %43 : vector<1x1x6x16xbf16> to vector<6x16xbf16>
    %c7 = arith.constant 7 : index
    %c0_53 = arith.constant 0 : index
    %c0_54 = arith.constant 0 : index
    %45 = vector.load %arg3[%c7, %c0_53, %c0_54] : memref<9x16x32xbf16, #tpu.memory_space<vmem>>, vector<1x16x32xbf16>
    %46 = vector.shape_cast %45 : vector<1x16x32xbf16> to vector<16x32xbf16>
    %cst_55 = arith.constant dense<0.000000e+00> : vector<6x32xf32>
    %47 = tpu.matmul %44, %46, %cst_55 {dimension_numbers = #tpu.dot_dimension_numbers<[1], [0], [0], [1], [0, 0, 1, 1], [], []>} : vector<6x16xbf16>, vector<16x32xbf16>, vector<6x32xf32> -> vector<6x32xf32>
    %48 = arith.addf %42, %47 : vector<6x32xf32>
    %c0_56 = arith.constant 0 : index
    %c0_57 = arith.constant 0 : index
    %c4_58 = arith.constant 4 : index
    %c0_59 = arith.constant 0 : index
    %49 = vector.load %arg2[%c0_56, %c0_57, %c4_58, %c0_59] : memref<1x4x12x16xbf16, #tpu.memory_space<vmem>>, vector<1x1x6x16xbf16>
    %50 = vector.shape_cast %49 : vector<1x1x6x16xbf16> to vector<6x16xbf16>
    %c8 = arith.constant 8 : index
    %c0_60 = arith.constant 0 : index
    %c0_61 = arith.constant 0 : index
    %51 = vector.load %arg3[%c8, %c0_60, %c0_61] : memref<9x16x32xbf16, #tpu.memory_space<vmem>>, vector<1x16x32xbf16>
    %52 = vector.shape_cast %51 : vector<1x16x32xbf16> to vector<16x32xbf16>
    %cst_62 = arith.constant dense<0.000000e+00> : vector<6x32xf32>
    %53 = tpu.matmul %50, %52, %cst_62 {dimension_numbers = #tpu.dot_dimension_numbers<[1], [0], [0], [1], [0, 0, 1, 1], [], []>} : vector<6x16xbf16>, vector<16x32xbf16>, vector<6x32xf32> -> vector<6x32xf32>
    %54 = arith.addf %48, %53 : vector<6x32xf32>
    %c0_63 = arith.constant 0 : index
    %c0_64 = arith.constant 0 : index
    %55 = vector.load %arg4[%c0_63, %c0_64] : memref<1x32xf32, #tpu.memory_space<vmem>>, vector<1x32xf32>
    %56 = vector.broadcast %55 : vector<1x32xf32> to vector<6x32xf32>
    %57 = arith.addf %54, %56 : vector<6x32xf32>
    %cst_65 = arith.constant 0.000000e+00 : f32
    %58 = vector.broadcast %cst_65 : f32 to vector<6x32xf32>
    %59 = arith.maximumf %57, %58 : vector<6x32xf32>
    %60 = vector.shape_cast %59 : vector<6x32xf32> to vector<1x6x32xf32>
    %61 = arith.truncf %60 : vector<1x6x32xf32> to vector<1x6x32xbf16>
    %c0_66 = arith.constant 0 : index
    %c0_67 = arith.constant 0 : index
    %c0_68 = arith.constant 0 : index
    %62 = vector.load %arg5[%c0_66, %c0_67, %c0_68] : memref<1x6x32xbf16, #tpu.memory_space<vmem>>, vector<1x6x32xbf16>
    tpu.vector_store %arg5[%c0_66, %c0_67, %c0_68], %61 {strides = array<i32>} : memref<1x6x32xbf16, #tpu.memory_space<vmem>>, vector<1x6x32xbf16>,
    return
  }
  func.func @transform_0(%arg0: i32, %arg1: i32) -> (i32, i32, i32, i32) {
    %c0_i32 = arith.constant 0 : i32
    %c0_i32_0 = arith.constant 0 : i32
    %c0_i32_1 = arith.constant 0 : i32
    %c0_i32_2 = arith.constant 0 : i32
    return %arg0, %c0_i32, %c0_i32_0, %c0_i32_1 : i32, i32, i32, i32
  }
  func.func @transform_1(%arg0: i32, %arg1: i32) -> (i32, i32, i32) {
    %c0_i32 = arith.constant 0 : i32
    %c0_i32_0 = arith.constant 0 : i32
    %c0_i32_1 = arith.constant 0 : i32
    return %c0_i32, %c0_i32_0, %arg1 : i32, i32, i32
  }
  func.func @transform_2(%arg0: i32, %arg1: i32) -> (i32, i32) {
    %c0_i32 = arith.constant 0 : i32
    %c0_i32_0 = arith.constant 0 : i32
    return %c0_i32, %arg1 : i32, i32
  }
  func.func @transform_3(%arg0: i32, %arg1: i32) -> (i32, i32, i32) {
    %c0_i32 = arith.constant 0 : i32
    %c0_i32_0 = arith.constant 0 : i32
    return %arg0, %c0_i32, %arg1 : i32, i32, i32
  }
}

module attributes {stable_mosaic.version = 11 : i64} {
  func.func @_head_kernel(%arg0: i32, %arg1: memref<1x1x20x32xbf16, #tpu.memory_space<vmem>>, %arg2: memref<9x32x32xbf16, #tpu.memory_space<vmem>>, %arg3: memref<1x32xf32, #tpu.memory_space<vmem>>, %arg4: memref<32x5xbf16, #tpu.memory_space<vmem>>, %arg5: memref<1x5xf32, #tpu.memory_space<vmem>>, %arg6: memref<1x8x5xbf16, #tpu.memory_space<vmem>>) attributes {dimension_semantics = [#tpu.dimension_semantics<parallel>], iteration_bounds = array<i64: 2>, scalar_prefetch = 0 : i64, scratch_operands = 0 : i64, tpu.core_type = #tpu.core_type<tc>, window_params = [{transform_indices = @transform_0, window_bounds = array<i64: 1, 1, 20, 32>}, {pipeline_mode = #tpu.pipeline_mode<synchronous>, transform_indices = @transform_1, window_bounds = array<i64: 9, 32, 32>}, {pipeline_mode = #tpu.pipeline_mode<synchronous>, transform_indices = @transform_2, window_bounds = array<i64: 1, 32>}, {pipeline_mode = #tpu.pipeline_mode<synchronous>, transform_indices = @transform_3, window_bounds = array<i64: 32, 5>}, {pipeline_mode = #tpu.pipeline_mode<synchronous>, transform_indices = @transform_4, window_bounds = array<i64: 1, 5>}, {transform_indices = @transform_5, window_bounds = array<i64: 1, 8, 5>}]} {
    %cst = arith.constant 0.000000e+00 : f32
    %0 = vector.broadcast %cst : f32 to vector<8x32xf32>
    %c0 = arith.constant 0 : index
    %c0_0 = arith.constant 0 : index
    %c0_1 = arith.constant 0 : index
    %c0_2 = arith.constant 0 : index
    %1 = vector.load %arg1[%c0, %c0_0, %c0_1, %c0_2] : memref<1x1x20x32xbf16, #tpu.memory_space<vmem>>, vector<1x1x8x32xbf16>
    %2 = vector.shape_cast %1 : vector<1x1x8x32xbf16> to vector<8x32xbf16>
    %c0_3 = arith.constant 0 : index
    %c0_4 = arith.constant 0 : index
    %c0_5 = arith.constant 0 : index
    %3 = vector.load %arg2[%c0_3, %c0_4, %c0_5] : memref<9x32x32xbf16, #tpu.memory_space<vmem>>, vector<1x32x32xbf16>
    %4 = vector.shape_cast %3 : vector<1x32x32xbf16> to vector<32x32xbf16>
    %cst_6 = arith.constant dense<0.000000e+00> : vector<8x32xf32>
    %5 = tpu.matmul %2, %4, %cst_6 {dimension_numbers = #tpu.dot_dimension_numbers<[1], [0], [0], [1], [0, 0, 1, 1], [], []>} : vector<8x32xbf16>, vector<32x32xbf16>, vector<8x32xf32> -> vector<8x32xf32>
    %6 = arith.addf %0, %5 : vector<8x32xf32>
    %c0_7 = arith.constant 0 : index
    %c0_8 = arith.constant 0 : index
    %c1 = arith.constant 1 : index
    %c0_9 = arith.constant 0 : index
    %7 = vector.load %arg1[%c0_7, %c0_8, %c1, %c0_9] : memref<1x1x20x32xbf16, #tpu.memory_space<vmem>>, vector<1x1x8x32xbf16>
    %8 = vector.shape_cast %7 : vector<1x1x8x32xbf16> to vector<8x32xbf16>
    %c1_10 = arith.constant 1 : index
    %c0_11 = arith.constant 0 : index
    %c0_12 = arith.constant 0 : index
    %9 = vector.load %arg2[%c1_10, %c0_11, %c0_12] : memref<9x32x32xbf16, #tpu.memory_space<vmem>>, vector<1x32x32xbf16>
    %10 = vector.shape_cast %9 : vector<1x32x32xbf16> to vector<32x32xbf16>
    %cst_13 = arith.constant dense<0.000000e+00> : vector<8x32xf32>
    %11 = tpu.matmul %8, %10, %cst_13 {dimension_numbers = #tpu.dot_dimension_numbers<[1], [0], [0], [1], [0, 0, 1, 1], [], []>} : vector<8x32xbf16>, vector<32x32xbf16>, vector<8x32xf32> -> vector<8x32xf32>
    %12 = arith.addf %6, %11 : vector<8x32xf32>
    %c0_14 = arith.constant 0 : index
    %c0_15 = arith.constant 0 : index
    %c2 = arith.constant 2 : index
    %c0_16 = arith.constant 0 : index
    %13 = vector.load %arg1[%c0_14, %c0_15, %c2, %c0_16] : memref<1x1x20x32xbf16, #tpu.memory_space<vmem>>, vector<1x1x8x32xbf16>
    %14 = vector.shape_cast %13 : vector<1x1x8x32xbf16> to vector<8x32xbf16>
    %c2_17 = arith.constant 2 : index
    %c0_18 = arith.constant 0 : index
    %c0_19 = arith.constant 0 : index
    %15 = vector.load %arg2[%c2_17, %c0_18, %c0_19] : memref<9x32x32xbf16, #tpu.memory_space<vmem>>, vector<1x32x32xbf16>
    %16 = vector.shape_cast %15 : vector<1x32x32xbf16> to vector<32x32xbf16>
    %cst_20 = arith.constant dense<0.000000e+00> : vector<8x32xf32>
    %17 = tpu.matmul %14, %16, %cst_20 {dimension_numbers = #tpu.dot_dimension_numbers<[1], [0], [0], [1], [0, 0, 1, 1], [], []>} : vector<8x32xbf16>, vector<32x32xbf16>, vector<8x32xf32> -> vector<8x32xf32>
    %18 = arith.addf %12, %17 : vector<8x32xf32>
    %c0_21 = arith.constant 0 : index
    %c0_22 = arith.constant 0 : index
    %c4 = arith.constant 4 : index
    %c0_23 = arith.constant 0 : index
    %19 = vector.load %arg1[%c0_21, %c0_22, %c4, %c0_23] : memref<1x1x20x32xbf16, #tpu.memory_space<vmem>>, vector<1x1x8x32xbf16>
    %20 = vector.shape_cast %19 : vector<1x1x8x32xbf16> to vector<8x32xbf16>
    %c3 = arith.constant 3 : index
    %c0_24 = arith.constant 0 : index
    %c0_25 = arith.constant 0 : index
    %21 = vector.load %arg2[%c3, %c0_24, %c0_25] : memref<9x32x32xbf16, #tpu.memory_space<vmem>>, vector<1x32x32xbf16>
    %22 = vector.shape_cast %21 : vector<1x32x32xbf16> to vector<32x32xbf16>
    %cst_26 = arith.constant dense<0.000000e+00> : vector<8x32xf32>
    %23 = tpu.matmul %20, %22, %cst_26 {dimension_numbers = #tpu.dot_dimension_numbers<[1], [0], [0], [1], [0, 0, 1, 1], [], []>} : vector<8x32xbf16>, vector<32x32xbf16>, vector<8x32xf32> -> vector<8x32xf32>
    %24 = arith.addf %18, %23 : vector<8x32xf32>
    %c0_27 = arith.constant 0 : index
    %c0_28 = arith.constant 0 : index
    %c5 = arith.constant 5 : index
    %c0_29 = arith.constant 0 : index
    %25 = vector.load %arg1[%c0_27, %c0_28, %c5, %c0_29] : memref<1x1x20x32xbf16, #tpu.memory_space<vmem>>, vector<1x1x8x32xbf16>
    %26 = vector.shape_cast %25 : vector<1x1x8x32xbf16> to vector<8x32xbf16>
    %c4_30 = arith.constant 4 : index
    %c0_31 = arith.constant 0 : index
    %c0_32 = arith.constant 0 : index
    %27 = vector.load %arg2[%c4_30, %c0_31, %c0_32] : memref<9x32x32xbf16, #tpu.memory_space<vmem>>, vector<1x32x32xbf16>
    %28 = vector.shape_cast %27 : vector<1x32x32xbf16> to vector<32x32xbf16>
    %cst_33 = arith.constant dense<0.000000e+00> : vector<8x32xf32>
    %29 = tpu.matmul %26, %28, %cst_33 {dimension_numbers = #tpu.dot_dimension_numbers<[1], [0], [0], [1], [0, 0, 1, 1], [], []>} : vector<8x32xbf16>, vector<32x32xbf16>, vector<8x32xf32> -> vector<8x32xf32>
    %30 = arith.addf %24, %29 : vector<8x32xf32>
    %c0_34 = arith.constant 0 : index
    %c0_35 = arith.constant 0 : index
    %c6 = arith.constant 6 : index
    %c0_36 = arith.constant 0 : index
    %31 = vector.load %arg1[%c0_34, %c0_35, %c6, %c0_36] : memref<1x1x20x32xbf16, #tpu.memory_space<vmem>>, vector<1x1x8x32xbf16>
    %32 = vector.shape_cast %31 : vector<1x1x8x32xbf16> to vector<8x32xbf16>
    %c5_37 = arith.constant 5 : index
    %c0_38 = arith.constant 0 : index
    %c0_39 = arith.constant 0 : index
    %33 = vector.load %arg2[%c5_37, %c0_38, %c0_39] : memref<9x32x32xbf16, #tpu.memory_space<vmem>>, vector<1x32x32xbf16>
    %34 = vector.shape_cast %33 : vector<1x32x32xbf16> to vector<32x32xbf16>
    %cst_40 = arith.constant dense<0.000000e+00> : vector<8x32xf32>
    %35 = tpu.matmul %32, %34, %cst_40 {dimension_numbers = #tpu.dot_dimension_numbers<[1], [0], [0], [1], [0, 0, 1, 1], [], []>} : vector<8x32xbf16>, vector<32x32xbf16>, vector<8x32xf32> -> vector<8x32xf32>
    %36 = arith.addf %30, %35 : vector<8x32xf32>
    %c0_41 = arith.constant 0 : index
    %c0_42 = arith.constant 0 : index
    %c8 = arith.constant 8 : index
    %c0_43 = arith.constant 0 : index
    %37 = vector.load %arg1[%c0_41, %c0_42, %c8, %c0_43] : memref<1x1x20x32xbf16, #tpu.memory_space<vmem>>, vector<1x1x8x32xbf16>
    %38 = vector.shape_cast %37 : vector<1x1x8x32xbf16> to vector<8x32xbf16>
    %c6_44 = arith.constant 6 : index
    %c0_45 = arith.constant 0 : index
    %c0_46 = arith.constant 0 : index
    %39 = vector.load %arg2[%c6_44, %c0_45, %c0_46] : memref<9x32x32xbf16, #tpu.memory_space<vmem>>, vector<1x32x32xbf16>
    %40 = vector.shape_cast %39 : vector<1x32x32xbf16> to vector<32x32xbf16>
    %cst_47 = arith.constant dense<0.000000e+00> : vector<8x32xf32>
    %41 = tpu.matmul %38, %40, %cst_47 {dimension_numbers = #tpu.dot_dimension_numbers<[1], [0], [0], [1], [0, 0, 1, 1], [], []>} : vector<8x32xbf16>, vector<32x32xbf16>, vector<8x32xf32> -> vector<8x32xf32>
    %42 = arith.addf %36, %41 : vector<8x32xf32>
    %c0_48 = arith.constant 0 : index
    %c0_49 = arith.constant 0 : index
    %c9 = arith.constant 9 : index
    %c0_50 = arith.constant 0 : index
    %43 = vector.load %arg1[%c0_48, %c0_49, %c9, %c0_50] : memref<1x1x20x32xbf16, #tpu.memory_space<vmem>>, vector<1x1x8x32xbf16>
    %44 = vector.shape_cast %43 : vector<1x1x8x32xbf16> to vector<8x32xbf16>
    %c7 = arith.constant 7 : index
    %c0_51 = arith.constant 0 : index
    %c0_52 = arith.constant 0 : index
    %45 = vector.load %arg2[%c7, %c0_51, %c0_52] : memref<9x32x32xbf16, #tpu.memory_space<vmem>>, vector<1x32x32xbf16>
    %46 = vector.shape_cast %45 : vector<1x32x32xbf16> to vector<32x32xbf16>
    %cst_53 = arith.constant dense<0.000000e+00> : vector<8x32xf32>
    %47 = tpu.matmul %44, %46, %cst_53 {dimension_numbers = #tpu.dot_dimension_numbers<[1], [0], [0], [1], [0, 0, 1, 1], [], []>} : vector<8x32xbf16>, vector<32x32xbf16>, vector<8x32xf32> -> vector<8x32xf32>
    %48 = arith.addf %42, %47 : vector<8x32xf32>
    %c0_54 = arith.constant 0 : index
    %c0_55 = arith.constant 0 : index
    %c10 = arith.constant 10 : index
    %c0_56 = arith.constant 0 : index
    %49 = vector.load %arg1[%c0_54, %c0_55, %c10, %c0_56] : memref<1x1x20x32xbf16, #tpu.memory_space<vmem>>, vector<1x1x8x32xbf16>
    %50 = vector.shape_cast %49 : vector<1x1x8x32xbf16> to vector<8x32xbf16>
    %c8_57 = arith.constant 8 : index
    %c0_58 = arith.constant 0 : index
    %c0_59 = arith.constant 0 : index
    %51 = vector.load %arg2[%c8_57, %c0_58, %c0_59] : memref<9x32x32xbf16, #tpu.memory_space<vmem>>, vector<1x32x32xbf16>
    %52 = vector.shape_cast %51 : vector<1x32x32xbf16> to vector<32x32xbf16>
    %cst_60 = arith.constant dense<0.000000e+00> : vector<8x32xf32>
    %53 = tpu.matmul %50, %52, %cst_60 {dimension_numbers = #tpu.dot_dimension_numbers<[1], [0], [0], [1], [0, 0, 1, 1], [], []>} : vector<8x32xbf16>, vector<32x32xbf16>, vector<8x32xf32> -> vector<8x32xf32>
    %54 = arith.addf %48, %53 : vector<8x32xf32>
    %c0_61 = arith.constant 0 : index
    %c0_62 = arith.constant 0 : index
    %55 = vector.load %arg3[%c0_61, %c0_62] : memref<1x32xf32, #tpu.memory_space<vmem>>, vector<1x32xf32>
    %56 = vector.broadcast %55 : vector<1x32xf32> to vector<8x32xf32>
    %57 = arith.addf %54, %56 : vector<8x32xf32>
    %cst_63 = arith.constant 0.000000e+00 : f32
    %58 = vector.broadcast %cst_63 : f32 to vector<8x32xf32>
    %59 = arith.maximumf %57, %58 : vector<8x32xf32>
    %60 = arith.truncf %59 : vector<8x32xf32> to vector<8x32xbf16>
    %c0_64 = arith.constant 0 : index
    %c0_65 = arith.constant 0 : index
    %61 = vector.load %arg4[%c0_64, %c0_65] : memref<32x5xbf16, #tpu.memory_space<vmem>>, vector<32x5xbf16>
    %cst_66 = arith.constant dense<0.000000e+00> : vector<8x5xf32>
    %62 = tpu.matmul %60, %61, %cst_66 {dimension_numbers = #tpu.dot_dimension_numbers<[1], [0], [0], [1], [0, 0, 1, 1], [], []>} : vector<8x32xbf16>, vector<32x5xbf16>, vector<8x5xf32> -> vector<8x5xf32>
    %c0_67 = arith.constant 0 : index
    %c0_68 = arith.constant 0 : index
    %63 = vector.load %arg5[%c0_67, %c0_68] : memref<1x5xf32, #tpu.memory_space<vmem>>, vector<1x5xf32>
    %64 = vector.broadcast %63 : vector<1x5xf32> to vector<8x5xf32>
    %65 = arith.addf %62, %64 : vector<8x5xf32>
    %66 = vector.shape_cast %65 : vector<8x5xf32> to vector<1x8x5xf32>
    %67 = arith.truncf %66 : vector<1x8x5xf32> to vector<1x8x5xbf16>
    %c0_69 = arith.constant 0 : index
    %c0_70 = arith.constant 0 : index
    %c0_71 = arith.constant 0 : index
    %68 = vector.load %arg6[%c0_69, %c0_70, %c0_71] : memref<1x8x5xbf16, #tpu.memory_space<vmem>>, vector<1x8x5xbf16>
    tpu.vector_store %arg6[%c0_69, %c0_70, %c0_71], %67 {strides = array<i32>} : memref<1x8x5xbf16, #tpu.memory_space<vmem>>, vector<1x8x5xbf16>,
    return
  }
  func.func @transform_0(%arg0: i32) -> (i32, i32, i32, i32) {
    %c0_i32 = arith.constant 0 : i32
    %c0_i32_0 = arith.constant 0 : i32
    %c0_i32_1 = arith.constant 0 : i32
    %c0_i32_2 = arith.constant 0 : i32
    return %arg0, %c0_i32, %c0_i32_0, %c0_i32_1 : i32, i32, i32, i32
  }
  func.func @transform_1(%arg0: i32) -> (i32, i32, i32) {
    %c0_i32 = arith.constant 0 : i32
    %c0_i32_0 = arith.constant 0 : i32
    %c0_i32_1 = arith.constant 0 : i32
    %c0_i32_2 = arith.constant 0 : i32
    return %c0_i32, %c0_i32_0, %c0_i32_1 : i32, i32, i32
  }
  func.func @transform_2(%arg0: i32) -> (i32, i32) {
    %c0_i32 = arith.constant 0 : i32
    %c0_i32_0 = arith.constant 0 : i32
    %c0_i32_1 = arith.constant 0 : i32
    return %c0_i32, %c0_i32_0 : i32, i32
  }
  func.func @transform_3(%arg0: i32) -> (i32, i32) {
    %c0_i32 = arith.constant 0 : i32
    %c0_i32_0 = arith.constant 0 : i32
    %c0_i32_1 = arith.constant 0 : i32
    return %c0_i32, %c0_i32_0 : i32, i32
  }
  func.func @transform_4(%arg0: i32) -> (i32, i32) {
    %c0_i32 = arith.constant 0 : i32
    %c0_i32_0 = arith.constant 0 : i32
    %c0_i32_1 = arith.constant 0 : i32
    return %c0_i32, %c0_i32_0 : i32, i32
  }
  func.func @transform_5(%arg0: i32) -> (i32, i32, i32) {
    %c0_i32 = arith.constant 0 : i32
    %c0_i32_0 = arith.constant 0 : i32
    %c0_i32_1 = arith.constant 0 : i32
    return %arg0, %c0_i32, %c0_i32_0 : i32, i32, i32
  }
}

module attributes {stable_mosaic.version = 11 : i64} {
  func.func @_matmul_kernel(%arg0: i32, %arg1: i32, %arg2: i32, %arg3: memref<16x128xbf16, #tpu.memory_space<vmem>>, %arg4: memref<128x256xbf16, #tpu.memory_space<vmem>>, %arg5: memref<1x256xf32, #tpu.memory_space<vmem>>, %arg6: memref<16x256xf32, #tpu.memory_space<vmem>>, %arg7: memref<16x256xf32, #tpu.memory_space<vmem>>) attributes {dimension_semantics = [#tpu.dimension_semantics<parallel>, #tpu.dimension_semantics<parallel>, #tpu.dimension_semantics<arbitrary>], iteration_bounds = array<i64: 1, 1, 1>, scalar_prefetch = 0 : i64, scratch_operands = 1 : i64, tpu.core_type = #tpu.core_type<tc>, window_params = [{transform_indices = @transform_0, window_bounds = array<i64: 16, 128>}, {transform_indices = @transform_1, window_bounds = array<i64: 128, 256>}, {transform_indices = @transform_2, window_bounds = array<i64: 1, 256>}, {transform_indices = @transform_3, window_bounds = array<i64: 16, 256>}]} {
    %c0_i32 = arith.constant 0 : i32
    %0 = arith.cmpi eq, %arg2, %c0_i32 : i32
    %1 = arith.extui %0 : i1 to i32
    %c0_i32_0 = arith.constant 0 : i32
    %2 = arith.cmpi ne, %1, %c0_i32_0 : i32
    scf.if %2 {
      %cst_10 = arith.constant 0.000000e+00 : f32
      %12 = vector.broadcast %cst_10 : f32 to vector<16x256xf32>
      %c0_11 = arith.constant 0 : index
      %c0_12 = arith.constant 0 : index
      %13 = vector.load %arg7[%c0_11, %c0_12] : memref<16x256xf32, #tpu.memory_space<vmem>>, vector<16x256xf32>
      tpu.vector_store %arg7[%c0_11, %c0_12], %12 {strides = array<i32>} : memref<16x256xf32, #tpu.memory_space<vmem>>, vector<16x256xf32>,
    } else {
    }
    %c0 = arith.constant 0 : index
    %c0_1 = arith.constant 0 : index
    %3 = vector.load %arg7[%c0, %c0_1] : memref<16x256xf32, #tpu.memory_space<vmem>>, vector<16x256xf32>
    %c0_2 = arith.constant 0 : index
    %c0_3 = arith.constant 0 : index
    %4 = vector.load %arg3[%c0_2, %c0_3] : memref<16x128xbf16, #tpu.memory_space<vmem>>, vector<16x128xbf16>
    %c0_4 = arith.constant 0 : index
    %c0_5 = arith.constant 0 : index
    %5 = vector.load %arg4[%c0_4, %c0_5] : memref<128x256xbf16, #tpu.memory_space<vmem>>, vector<128x256xbf16>
    %cst = arith.constant dense<0.000000e+00> : vector<16x256xf32>
    %6 = tpu.matmul %4, %5, %cst {dimension_numbers = #tpu.dot_dimension_numbers<[1], [0], [0], [1], [0, 0, 1, 1], [], []>} : vector<16x128xbf16>, vector<128x256xbf16>, vector<16x256xf32> -> vector<16x256xf32>
    %7 = arith.addf %3, %6 : vector<16x256xf32>
    %c0_6 = arith.constant 0 : index
    %c0_7 = arith.constant 0 : index
    %8 = vector.load %arg7[%c0_6, %c0_7] : memref<16x256xf32, #tpu.memory_space<vmem>>, vector<16x256xf32>
    tpu.vector_store %arg7[%c0_6, %c0_7], %7 {strides = array<i32>} : memref<16x256xf32, #tpu.memory_space<vmem>>, vector<16x256xf32>,
    %c0_i32_8 = arith.constant 0 : i32
    %9 = arith.cmpi eq, %arg2, %c0_i32_8 : i32
    %10 = arith.extui %9 : i1 to i32
    %c0_i32_9 = arith.constant 0 : i32
    %11 = arith.cmpi ne, %10, %c0_i32_9 : i32
    scf.if %11 {
      %c0_10 = arith.constant 0 : index
      %c0_11 = arith.constant 0 : index
      %12 = vector.load %arg7[%c0_10, %c0_11] : memref<16x256xf32, #tpu.memory_space<vmem>>, vector<16x256xf32>
      %c0_12 = arith.constant 0 : index
      %c0_13 = arith.constant 0 : index
      %13 = vector.load %arg5[%c0_12, %c0_13] : memref<1x256xf32, #tpu.memory_space<vmem>>, vector<1x256xf32>
      %14 = vector.broadcast %13 : vector<1x256xf32> to vector<16x256xf32>
      %15 = arith.addf %12, %14 : vector<16x256xf32>
      %c0_14 = arith.constant 0 : index
      %c0_15 = arith.constant 0 : index
      %16 = vector.load %arg6[%c0_14, %c0_15] : memref<16x256xf32, #tpu.memory_space<vmem>>, vector<16x256xf32>
      tpu.vector_store %arg6[%c0_14, %c0_15], %15 {strides = array<i32>} : memref<16x256xf32, #tpu.memory_space<vmem>>, vector<16x256xf32>,
    } else {
    }
    return
  }
  func.func @transform_0(%arg0: i32, %arg1: i32, %arg2: i32) -> (i32, i32) {
    %c0_i32 = arith.constant 0 : i32
    return %arg0, %arg2 : i32, i32
  }
  func.func @transform_1(%arg0: i32, %arg1: i32, %arg2: i32) -> (i32, i32) {
    %c0_i32 = arith.constant 0 : i32
    return %arg2, %arg1 : i32, i32
  }
  func.func @transform_2(%arg0: i32, %arg1: i32, %arg2: i32) -> (i32, i32) {
    %c0_i32 = arith.constant 0 : i32
    %c0_i32_0 = arith.constant 0 : i32
    return %c0_i32, %arg1 : i32, i32
  }
  func.func @transform_3(%arg0: i32, %arg1: i32, %arg2: i32) -> (i32, i32) {
    %c0_i32 = arith.constant 0 : i32
    return %arg0, %arg1 : i32, i32
  }
}

module attributes {stable_mosaic.version = 11 : i64} {
  func.func @_matmul_kernel(%arg0: i32, %arg1: i32, %arg2: i32, %arg3: memref<16x128xbf16, #tpu.memory_space<vmem>>, %arg4: memref<128x128xbf16, #tpu.memory_space<vmem>>, %arg5: memref<1x128xf32, #tpu.memory_space<vmem>>, %arg6: memref<16x128xbf16, #tpu.memory_space<vmem>>, %arg7: memref<16x128xf32, #tpu.memory_space<vmem>>) attributes {dimension_semantics = [#tpu.dimension_semantics<parallel>, #tpu.dimension_semantics<parallel>, #tpu.dimension_semantics<arbitrary>], iteration_bounds = array<i64: 1, 1, 1>, scalar_prefetch = 0 : i64, scratch_operands = 1 : i64, tpu.core_type = #tpu.core_type<tc>, window_params = [{transform_indices = @transform_0, window_bounds = array<i64: 16, 128>}, {transform_indices = @transform_1, window_bounds = array<i64: 128, 128>}, {transform_indices = @transform_2, window_bounds = array<i64: 1, 128>}, {transform_indices = @transform_3, window_bounds = array<i64: 16, 128>}]} {
    %c0_i32 = arith.constant 0 : i32
    %0 = arith.cmpi eq, %arg2, %c0_i32 : i32
    %1 = arith.extui %0 : i1 to i32
    %c0_i32_0 = arith.constant 0 : i32
    %2 = arith.cmpi ne, %1, %c0_i32_0 : i32
    scf.if %2 {
      %cst_10 = arith.constant 0.000000e+00 : f32
      %12 = vector.broadcast %cst_10 : f32 to vector<16x128xf32>
      %c0_11 = arith.constant 0 : index
      %c0_12 = arith.constant 0 : index
      %13 = vector.load %arg7[%c0_11, %c0_12] : memref<16x128xf32, #tpu.memory_space<vmem>>, vector<16x128xf32>
      tpu.vector_store %arg7[%c0_11, %c0_12], %12 {strides = array<i32>} : memref<16x128xf32, #tpu.memory_space<vmem>>, vector<16x128xf32>,
    } else {
    }
    %c0 = arith.constant 0 : index
    %c0_1 = arith.constant 0 : index
    %3 = vector.load %arg7[%c0, %c0_1] : memref<16x128xf32, #tpu.memory_space<vmem>>, vector<16x128xf32>
    %c0_2 = arith.constant 0 : index
    %c0_3 = arith.constant 0 : index
    %4 = vector.load %arg3[%c0_2, %c0_3] : memref<16x128xbf16, #tpu.memory_space<vmem>>, vector<16x128xbf16>
    %c0_4 = arith.constant 0 : index
    %c0_5 = arith.constant 0 : index
    %5 = vector.load %arg4[%c0_4, %c0_5] : memref<128x128xbf16, #tpu.memory_space<vmem>>, vector<128x128xbf16>
    %cst = arith.constant dense<0.000000e+00> : vector<16x128xf32>
    %6 = tpu.matmul %4, %5, %cst {dimension_numbers = #tpu.dot_dimension_numbers<[1], [0], [0], [1], [0, 0, 1, 1], [], []>} : vector<16x128xbf16>, vector<128x128xbf16>, vector<16x128xf32> -> vector<16x128xf32>
    %7 = arith.addf %3, %6 : vector<16x128xf32>
    %c0_6 = arith.constant 0 : index
    %c0_7 = arith.constant 0 : index
    %8 = vector.load %arg7[%c0_6, %c0_7] : memref<16x128xf32, #tpu.memory_space<vmem>>, vector<16x128xf32>
    tpu.vector_store %arg7[%c0_6, %c0_7], %7 {strides = array<i32>} : memref<16x128xf32, #tpu.memory_space<vmem>>, vector<16x128xf32>,
    %c0_i32_8 = arith.constant 0 : i32
    %9 = arith.cmpi eq, %arg2, %c0_i32_8 : i32
    %10 = arith.extui %9 : i1 to i32
    %c0_i32_9 = arith.constant 0 : i32
    %11 = arith.cmpi ne, %10, %c0_i32_9 : i32
    scf.if %11 {
      %c0_10 = arith.constant 0 : index
      %c0_11 = arith.constant 0 : index
      %12 = vector.load %arg7[%c0_10, %c0_11] : memref<16x128xf32, #tpu.memory_space<vmem>>, vector<16x128xf32>
      %c0_12 = arith.constant 0 : index
      %c0_13 = arith.constant 0 : index
      %13 = vector.load %arg5[%c0_12, %c0_13] : memref<1x128xf32, #tpu.memory_space<vmem>>, vector<1x128xf32>
      %14 = vector.broadcast %13 : vector<1x128xf32> to vector<16x128xf32>
      %15 = arith.addf %12, %14 : vector<16x128xf32>
      %16 = arith.truncf %15 : vector<16x128xf32> to vector<16x128xbf16>
      %c0_14 = arith.constant 0 : index
      %c0_15 = arith.constant 0 : index
      %17 = vector.load %arg6[%c0_14, %c0_15] : memref<16x128xbf16, #tpu.memory_space<vmem>>, vector<16x128xbf16>
      tpu.vector_store %arg6[%c0_14, %c0_15], %16 {strides = array<i32>} : memref<16x128xbf16, #tpu.memory_space<vmem>>, vector<16x128xbf16>,
    } else {
    }
    return
  }
  func.func @transform_0(%arg0: i32, %arg1: i32, %arg2: i32) -> (i32, i32) {
    %c0_i32 = arith.constant 0 : i32
    return %arg0, %arg2 : i32, i32
  }
  func.func @transform_1(%arg0: i32, %arg1: i32, %arg2: i32) -> (i32, i32) {
    %c0_i32 = arith.constant 0 : i32
    return %arg2, %arg1 : i32, i32
  }
  func.func @transform_2(%arg0: i32, %arg1: i32, %arg2: i32) -> (i32, i32) {
    %c0_i32 = arith.constant 0 : i32
    %c0_i32_0 = arith.constant 0 : i32
    return %c0_i32, %arg1 : i32, i32
  }
  func.func @transform_3(%arg0: i32, %arg1: i32, %arg2: i32) -> (i32, i32) {
    %c0_i32 = arith.constant 0 : i32
    return %arg0, %arg1 : i32, i32
  }
}

module attributes {stable_mosaic.version = 11 : i64} {
  func.func @_head_kernel(%arg0: i32, %arg1: memref<1x1x42x16xbf16, #tpu.memory_space<vmem>>, %arg2: memref<9x16x16xbf16, #tpu.memory_space<vmem>>, %arg3: memref<1x16xf32, #tpu.memory_space<vmem>>, %arg4: memref<16x5xbf16, #tpu.memory_space<vmem>>, %arg5: memref<1x5xf32, #tpu.memory_space<vmem>>, %arg6: memref<1x24x5xbf16, #tpu.memory_space<vmem>>) attributes {dimension_semantics = [#tpu.dimension_semantics<parallel>], iteration_bounds = array<i64: 2>, scalar_prefetch = 0 : i64, scratch_operands = 0 : i64, tpu.core_type = #tpu.core_type<tc>, window_params = [{transform_indices = @transform_0, window_bounds = array<i64: 1, 1, 42, 16>}, {pipeline_mode = #tpu.pipeline_mode<synchronous>, transform_indices = @transform_1, window_bounds = array<i64: 9, 16, 16>}, {pipeline_mode = #tpu.pipeline_mode<synchronous>, transform_indices = @transform_2, window_bounds = array<i64: 1, 16>}, {pipeline_mode = #tpu.pipeline_mode<synchronous>, transform_indices = @transform_3, window_bounds = array<i64: 16, 5>}, {pipeline_mode = #tpu.pipeline_mode<synchronous>, transform_indices = @transform_4, window_bounds = array<i64: 1, 5>}, {transform_indices = @transform_5, window_bounds = array<i64: 1, 24, 5>}]} {
    %cst = arith.constant 0.000000e+00 : f32
    %0 = vector.broadcast %cst : f32 to vector<24x16xf32>
    %c0 = arith.constant 0 : index
    %c0_0 = arith.constant 0 : index
    %c0_1 = arith.constant 0 : index
    %c0_2 = arith.constant 0 : index
    %1 = vector.load %arg1[%c0, %c0_0, %c0_1, %c0_2] : memref<1x1x42x16xbf16, #tpu.memory_space<vmem>>, vector<1x1x24x16xbf16>
    %2 = vector.shape_cast %1 : vector<1x1x24x16xbf16> to vector<24x16xbf16>
    %c0_3 = arith.constant 0 : index
    %c0_4 = arith.constant 0 : index
    %c0_5 = arith.constant 0 : index
    %3 = vector.load %arg2[%c0_3, %c0_4, %c0_5] : memref<9x16x16xbf16, #tpu.memory_space<vmem>>, vector<1x16x16xbf16>
    %4 = vector.shape_cast %3 : vector<1x16x16xbf16> to vector<16x16xbf16>
    %cst_6 = arith.constant dense<0.000000e+00> : vector<24x16xf32>
    %5 = tpu.matmul %2, %4, %cst_6 {dimension_numbers = #tpu.dot_dimension_numbers<[1], [0], [0], [1], [0, 0, 1, 1], [], []>} : vector<24x16xbf16>, vector<16x16xbf16>, vector<24x16xf32> -> vector<24x16xf32>
    %6 = arith.addf %0, %5 : vector<24x16xf32>
    %c0_7 = arith.constant 0 : index
    %c0_8 = arith.constant 0 : index
    %c1 = arith.constant 1 : index
    %c0_9 = arith.constant 0 : index
    %7 = vector.load %arg1[%c0_7, %c0_8, %c1, %c0_9] : memref<1x1x42x16xbf16, #tpu.memory_space<vmem>>, vector<1x1x24x16xbf16>
    %8 = vector.shape_cast %7 : vector<1x1x24x16xbf16> to vector<24x16xbf16>
    %c1_10 = arith.constant 1 : index
    %c0_11 = arith.constant 0 : index
    %c0_12 = arith.constant 0 : index
    %9 = vector.load %arg2[%c1_10, %c0_11, %c0_12] : memref<9x16x16xbf16, #tpu.memory_space<vmem>>, vector<1x16x16xbf16>
    %10 = vector.shape_cast %9 : vector<1x16x16xbf16> to vector<16x16xbf16>
    %cst_13 = arith.constant dense<0.000000e+00> : vector<24x16xf32>
    %11 = tpu.matmul %8, %10, %cst_13 {dimension_numbers = #tpu.dot_dimension_numbers<[1], [0], [0], [1], [0, 0, 1, 1], [], []>} : vector<24x16xbf16>, vector<16x16xbf16>, vector<24x16xf32> -> vector<24x16xf32>
    %12 = arith.addf %6, %11 : vector<24x16xf32>
    %c0_14 = arith.constant 0 : index
    %c0_15 = arith.constant 0 : index
    %c2 = arith.constant 2 : index
    %c0_16 = arith.constant 0 : index
    %13 = vector.load %arg1[%c0_14, %c0_15, %c2, %c0_16] : memref<1x1x42x16xbf16, #tpu.memory_space<vmem>>, vector<1x1x24x16xbf16>
    %14 = vector.shape_cast %13 : vector<1x1x24x16xbf16> to vector<24x16xbf16>
    %c2_17 = arith.constant 2 : index
    %c0_18 = arith.constant 0 : index
    %c0_19 = arith.constant 0 : index
    %15 = vector.load %arg2[%c2_17, %c0_18, %c0_19] : memref<9x16x16xbf16, #tpu.memory_space<vmem>>, vector<1x16x16xbf16>
    %16 = vector.shape_cast %15 : vector<1x16x16xbf16> to vector<16x16xbf16>
    %cst_20 = arith.constant dense<0.000000e+00> : vector<24x16xf32>
    %17 = tpu.matmul %14, %16, %cst_20 {dimension_numbers = #tpu.dot_dimension_numbers<[1], [0], [0], [1], [0, 0, 1, 1], [], []>} : vector<24x16xbf16>, vector<16x16xbf16>, vector<24x16xf32> -> vector<24x16xf32>
    %18 = arith.addf %12, %17 : vector<24x16xf32>
    %c0_21 = arith.constant 0 : index
    %c0_22 = arith.constant 0 : index
    %c6 = arith.constant 6 : index
    %c0_23 = arith.constant 0 : index
    %19 = vector.load %arg1[%c0_21, %c0_22, %c6, %c0_23] : memref<1x1x42x16xbf16, #tpu.memory_space<vmem>>, vector<1x1x24x16xbf16>
    %20 = vector.shape_cast %19 : vector<1x1x24x16xbf16> to vector<24x16xbf16>
    %c3 = arith.constant 3 : index
    %c0_24 = arith.constant 0 : index
    %c0_25 = arith.constant 0 : index
    %21 = vector.load %arg2[%c3, %c0_24, %c0_25] : memref<9x16x16xbf16, #tpu.memory_space<vmem>>, vector<1x16x16xbf16>
    %22 = vector.shape_cast %21 : vector<1x16x16xbf16> to vector<16x16xbf16>
    %cst_26 = arith.constant dense<0.000000e+00> : vector<24x16xf32>
    %23 = tpu.matmul %20, %22, %cst_26 {dimension_numbers = #tpu.dot_dimension_numbers<[1], [0], [0], [1], [0, 0, 1, 1], [], []>} : vector<24x16xbf16>, vector<16x16xbf16>, vector<24x16xf32> -> vector<24x16xf32>
    %24 = arith.addf %18, %23 : vector<24x16xf32>
    %c0_27 = arith.constant 0 : index
    %c0_28 = arith.constant 0 : index
    %c7 = arith.constant 7 : index
    %c0_29 = arith.constant 0 : index
    %25 = vector.load %arg1[%c0_27, %c0_28, %c7, %c0_29] : memref<1x1x42x16xbf16, #tpu.memory_space<vmem>>, vector<1x1x24x16xbf16>
    %26 = vector.shape_cast %25 : vector<1x1x24x16xbf16> to vector<24x16xbf16>
    %c4 = arith.constant 4 : index
    %c0_30 = arith.constant 0 : index
    %c0_31 = arith.constant 0 : index
    %27 = vector.load %arg2[%c4, %c0_30, %c0_31] : memref<9x16x16xbf16, #tpu.memory_space<vmem>>, vector<1x16x16xbf16>
    %28 = vector.shape_cast %27 : vector<1x16x16xbf16> to vector<16x16xbf16>
    %cst_32 = arith.constant dense<0.000000e+00> : vector<24x16xf32>
    %29 = tpu.matmul %26, %28, %cst_32 {dimension_numbers = #tpu.dot_dimension_numbers<[1], [0], [0], [1], [0, 0, 1, 1], [], []>} : vector<24x16xbf16>, vector<16x16xbf16>, vector<24x16xf32> -> vector<24x16xf32>
    %30 = arith.addf %24, %29 : vector<24x16xf32>
    %c0_33 = arith.constant 0 : index
    %c0_34 = arith.constant 0 : index
    %c8 = arith.constant 8 : index
    %c0_35 = arith.constant 0 : index
    %31 = vector.load %arg1[%c0_33, %c0_34, %c8, %c0_35] : memref<1x1x42x16xbf16, #tpu.memory_space<vmem>>, vector<1x1x24x16xbf16>
    %32 = vector.shape_cast %31 : vector<1x1x24x16xbf16> to vector<24x16xbf16>
    %c5 = arith.constant 5 : index
    %c0_36 = arith.constant 0 : index
    %c0_37 = arith.constant 0 : index
    %33 = vector.load %arg2[%c5, %c0_36, %c0_37] : memref<9x16x16xbf16, #tpu.memory_space<vmem>>, vector<1x16x16xbf16>
    %34 = vector.shape_cast %33 : vector<1x16x16xbf16> to vector<16x16xbf16>
    %cst_38 = arith.constant dense<0.000000e+00> : vector<24x16xf32>
    %35 = tpu.matmul %32, %34, %cst_38 {dimension_numbers = #tpu.dot_dimension_numbers<[1], [0], [0], [1], [0, 0, 1, 1], [], []>} : vector<24x16xbf16>, vector<16x16xbf16>, vector<24x16xf32> -> vector<24x16xf32>
    %36 = arith.addf %30, %35 : vector<24x16xf32>
    %c0_39 = arith.constant 0 : index
    %c0_40 = arith.constant 0 : index
    %c12 = arith.constant 12 : index
    %c0_41 = arith.constant 0 : index
    %37 = vector.load %arg1[%c0_39, %c0_40, %c12, %c0_41] : memref<1x1x42x16xbf16, #tpu.memory_space<vmem>>, vector<1x1x24x16xbf16>
    %38 = vector.shape_cast %37 : vector<1x1x24x16xbf16> to vector<24x16xbf16>
    %c6_42 = arith.constant 6 : index
    %c0_43 = arith.constant 0 : index
    %c0_44 = arith.constant 0 : index
    %39 = vector.load %arg2[%c6_42, %c0_43, %c0_44] : memref<9x16x16xbf16, #tpu.memory_space<vmem>>, vector<1x16x16xbf16>
    %40 = vector.shape_cast %39 : vector<1x16x16xbf16> to vector<16x16xbf16>
    %cst_45 = arith.constant dense<0.000000e+00> : vector<24x16xf32>
    %41 = tpu.matmul %38, %40, %cst_45 {dimension_numbers = #tpu.dot_dimension_numbers<[1], [0], [0], [1], [0, 0, 1, 1], [], []>} : vector<24x16xbf16>, vector<16x16xbf16>, vector<24x16xf32> -> vector<24x16xf32>
    %42 = arith.addf %36, %41 : vector<24x16xf32>
    %c0_46 = arith.constant 0 : index
    %c0_47 = arith.constant 0 : index
    %c13 = arith.constant 13 : index
    %c0_48 = arith.constant 0 : index
    %43 = vector.load %arg1[%c0_46, %c0_47, %c13, %c0_48] : memref<1x1x42x16xbf16, #tpu.memory_space<vmem>>, vector<1x1x24x16xbf16>
    %44 = vector.shape_cast %43 : vector<1x1x24x16xbf16> to vector<24x16xbf16>
    %c7_49 = arith.constant 7 : index
    %c0_50 = arith.constant 0 : index
    %c0_51 = arith.constant 0 : index
    %45 = vector.load %arg2[%c7_49, %c0_50, %c0_51] : memref<9x16x16xbf16, #tpu.memory_space<vmem>>, vector<1x16x16xbf16>
    %46 = vector.shape_cast %45 : vector<1x16x16xbf16> to vector<16x16xbf16>
    %cst_52 = arith.constant dense<0.000000e+00> : vector<24x16xf32>
    %47 = tpu.matmul %44, %46, %cst_52 {dimension_numbers = #tpu.dot_dimension_numbers<[1], [0], [0], [1], [0, 0, 1, 1], [], []>} : vector<24x16xbf16>, vector<16x16xbf16>, vector<24x16xf32> -> vector<24x16xf32>
    %48 = arith.addf %42, %47 : vector<24x16xf32>
    %c0_53 = arith.constant 0 : index
    %c0_54 = arith.constant 0 : index
    %c14 = arith.constant 14 : index
    %c0_55 = arith.constant 0 : index
    %49 = vector.load %arg1[%c0_53, %c0_54, %c14, %c0_55] : memref<1x1x42x16xbf16, #tpu.memory_space<vmem>>, vector<1x1x24x16xbf16>
    %50 = vector.shape_cast %49 : vector<1x1x24x16xbf16> to vector<24x16xbf16>
    %c8_56 = arith.constant 8 : index
    %c0_57 = arith.constant 0 : index
    %c0_58 = arith.constant 0 : index
    %51 = vector.load %arg2[%c8_56, %c0_57, %c0_58] : memref<9x16x16xbf16, #tpu.memory_space<vmem>>, vector<1x16x16xbf16>
    %52 = vector.shape_cast %51 : vector<1x16x16xbf16> to vector<16x16xbf16>
    %cst_59 = arith.constant dense<0.000000e+00> : vector<24x16xf32>
    %53 = tpu.matmul %50, %52, %cst_59 {dimension_numbers = #tpu.dot_dimension_numbers<[1], [0], [0], [1], [0, 0, 1, 1], [], []>} : vector<24x16xbf16>, vector<16x16xbf16>, vector<24x16xf32> -> vector<24x16xf32>
    %54 = arith.addf %48, %53 : vector<24x16xf32>
    %c0_60 = arith.constant 0 : index
    %c0_61 = arith.constant 0 : index
    %55 = vector.load %arg3[%c0_60, %c0_61] : memref<1x16xf32, #tpu.memory_space<vmem>>, vector<1x16xf32>
    %56 = vector.broadcast %55 : vector<1x16xf32> to vector<24x16xf32>
    %57 = arith.addf %54, %56 : vector<24x16xf32>
    %cst_62 = arith.constant 0.000000e+00 : f32
    %58 = vector.broadcast %cst_62 : f32 to vector<24x16xf32>
    %59 = arith.maximumf %57, %58 : vector<24x16xf32>
    %60 = arith.truncf %59 : vector<24x16xf32> to vector<24x16xbf16>
    %c0_63 = arith.constant 0 : index
    %c0_64 = arith.constant 0 : index
    %61 = vector.load %arg4[%c0_63, %c0_64] : memref<16x5xbf16, #tpu.memory_space<vmem>>, vector<16x5xbf16>
    %cst_65 = arith.constant dense<0.000000e+00> : vector<24x5xf32>
    %62 = tpu.matmul %60, %61, %cst_65 {dimension_numbers = #tpu.dot_dimension_numbers<[1], [0], [0], [1], [0, 0, 1, 1], [], []>} : vector<24x16xbf16>, vector<16x5xbf16>, vector<24x5xf32> -> vector<24x5xf32>
    %c0_66 = arith.constant 0 : index
    %c0_67 = arith.constant 0 : index
    %63 = vector.load %arg5[%c0_66, %c0_67] : memref<1x5xf32, #tpu.memory_space<vmem>>, vector<1x5xf32>
    %64 = vector.broadcast %63 : vector<1x5xf32> to vector<24x5xf32>
    %65 = arith.addf %62, %64 : vector<24x5xf32>
    %66 = vector.shape_cast %65 : vector<24x5xf32> to vector<1x24x5xf32>
    %67 = arith.truncf %66 : vector<1x24x5xf32> to vector<1x24x5xbf16>
    %c0_68 = arith.constant 0 : index
    %c0_69 = arith.constant 0 : index
    %c0_70 = arith.constant 0 : index
    %68 = vector.load %arg6[%c0_68, %c0_69, %c0_70] : memref<1x24x5xbf16, #tpu.memory_space<vmem>>, vector<1x24x5xbf16>
    tpu.vector_store %arg6[%c0_68, %c0_69, %c0_70], %67 {strides = array<i32>} : memref<1x24x5xbf16, #tpu.memory_space<vmem>>, vector<1x24x5xbf16>,
    return
  }
  func.func @transform_0(%arg0: i32) -> (i32, i32, i32, i32) {
    %c0_i32 = arith.constant 0 : i32
    %c0_i32_0 = arith.constant 0 : i32
    %c0_i32_1 = arith.constant 0 : i32
    %c0_i32_2 = arith.constant 0 : i32
    return %arg0, %c0_i32, %c0_i32_0, %c0_i32_1 : i32, i32, i32, i32
  }
  func.func @transform_1(%arg0: i32) -> (i32, i32, i32) {
    %c0_i32 = arith.constant 0 : i32
    %c0_i32_0 = arith.constant 0 : i32
    %c0_i32_1 = arith.constant 0 : i32
    %c0_i32_2 = arith.constant 0 : i32
    return %c0_i32, %c0_i32_0, %c0_i32_1 : i32, i32, i32
  }
  func.func @transform_2(%arg0: i32) -> (i32, i32) {
    %c0_i32 = arith.constant 0 : i32
    %c0_i32_0 = arith.constant 0 : i32
    %c0_i32_1 = arith.constant 0 : i32
    return %c0_i32, %c0_i32_0 : i32, i32
  }
  func.func @transform_3(%arg0: i32) -> (i32, i32) {
    %c0_i32 = arith.constant 0 : i32
    %c0_i32_0 = arith.constant 0 : i32
    %c0_i32_1 = arith.constant 0 : i32
    return %c0_i32, %c0_i32_0 : i32, i32
  }
  func.func @transform_4(%arg0: i32) -> (i32, i32) {
    %c0_i32 = arith.constant 0 : i32
    %c0_i32_0 = arith.constant 0 : i32
    %c0_i32_1 = arith.constant 0 : i32
    return %c0_i32, %c0_i32_0 : i32, i32
  }
  func.func @transform_5(%arg0: i32) -> (i32, i32, i32) {
    %c0_i32 = arith.constant 0 : i32
    %c0_i32_0 = arith.constant 0 : i32
    %c0_i32_1 = arith.constant 0 : i32
    return %arg0, %c0_i32, %c0_i32_0 : i32, i32, i32
  }
}

</mosaic_0001>

<llo_original>
// kernel: deeplabv3_forward.10
$region0: #{deeplabv3_forward.10}
  #allocation0 [shape = 'u32[]', space=smem, size = 0x4, offset = 0x4, fixed_abs, tag = 'smem constant byte address 0x4 - core index']
  #allocation1 [shape = 'u32[72,128]{1,0:T(1,128)}', space=vmem, size = 0x9000, scoped, tag = 'internal scratch']
  %s0 = inlined_call_operand.vmem [shape: bf16[2,4,30,8], index: 0, kind: input, shape index: {}]
  %s1 = inlined_call_operand.vmem [shape: bf16[9,8,16], index: 1, kind: input, shape index: {}]
  %s2 = inlined_call_operand.vmem [shape: f32[1,16], index: 2, kind: input, shape index: {}]
  %s3 = inlined_call_operand.vmem [shape: bf16[2,20,16], index: 3, kind: output, shape index: {}]
  %s4 = sld [smem:[#allocation0]]
  $region45: #{deeplabv3_forward.10} parent=0
    _
  %s6 = ssub.s32 1, %s4
  %s7 = scalar_select 0, %s6, %s4
  loop: start=0, step=1, limit=4
  $region2: #{deeplabv3_forward.10} parent=0 // loop_pre_header
    _
  $region3: #{deeplabv3_forward.10} parent=0 // loop_header
    %s9 = sphi 0, %s13
    %p10 = scmp.ge.s32.totalorder %s9, 4
    %s16 = sphi 0, %s28
    %s17 = sphi 0, %s24
    %s18 = sphi 0, %s16
    %s19 = sphi 0, %s17
    %s20 = sphi 0, %s18
    %s21 = sphi 0, %s19
    %s31 = sphi 0, %s33
    %s34 = sphi 0, %s31
    %s35 = sphi 0, %s34
    %s51 = sphi 0, %s35
    %s57 = sphi 0, %s59
    %s60 = sphi 0, %s57
    %s61 = sphi 0, %s60
    %s77 = sphi 0, %s61
    %s83 = sphi 0, %s85
    %s86 = sphi 0, %s83
    %s87 = sphi 0, %s86
    %s103 = sphi 0, %s87
    %s111 = sphi 0, %s113
    %s114 = sphi 0, %s111
    %s115 = sphi 0, %s114
    %s131 = sphi 0, %s115
  $region4: #{deeplabv3_forward.10} parent=0 // loop_header_branch
    %12 = sbr.rel (%p10) target = $region8
  $region5: #{deeplabv3_forward.10} parent=0 // loop_body
    %s14 = ssub.s32 %s9, 1
    %s15 = ssub.s32 %s9, 2
    %s22 = sadd.s32 1, %s17
    %p23 = scmp.ge.s32.totalorder %s22, 1
    %s24 = scalar_select %p23, 0, %s22
    %s25 = sadd.s32 1, %s16
    %s26 = scalar_select %p23, %s25, %s16
    %p27 = scmp.ge.s32.totalorder %s26, 2
    %s28 = scalar_select %p27, 0, %s26
    %s29 = ssub.s32 %s16, %s28
    %p30 = scmp.eq.s32.totalorder %s29, 0
    %s32 = sadd.s32 %s31, 1
    %s33 = scalar_select %p30, %s31, %s32
    %p36 = pneg %p30
    %p37 = scmp.eq.s32.totalorder %s9, 1
    %p38 = por %p36, %p37
    %p39 = scmp.ne.s32.totalorder %s31, %s34
    %p40 = scmp.eq.s32.totalorder %s9, 0
    %p41 = por %p39, %p40
    %p42 = scmp.ne.s32.totalorder %s31, %s34
    %p43 = scmp.eq.s32.totalorder %s14, 1
    %p44 = por %p42, %p43
    %p45 = scmp.ne.s32.totalorder %s34, %s35
    %p46 = scmp.eq.s32.totalorder %s14, 0
    %p47 = por %p45, %p46
    %p48 = scmp.ne.s32.totalorder %s34, %s35
    %p49 = scmp.eq.s32.totalorder %s15, 1
    %p50 = por %p48, %p49
    %p52 = scmp.ne.s32.totalorder %s35, %s51
    %p53 = scmp.eq.s32.totalorder %s15, 0
    %p54 = por %p52, %p53
    %s55 = ssub.s32 %s17, %s24
    %p56 = scmp.eq.s32.totalorder %s55, 0
    %s58 = sadd.s32 %s57, 1
    %s59 = scalar_select %p56, %s57, %s58
    %p62 = pneg %p56
    %p63 = scmp.eq.s32.totalorder %s9, 1
    %p64 = por %p62, %p63
    %p65 = scmp.ne.s32.totalorder %s57, %s60
    %p66 = scmp.eq.s32.totalorder %s9, 0
    %p67 = por %p65, %p66
    %p68 = scmp.ne.s32.totalorder %s57, %s60
    %p69 = scmp.eq.s32.totalorder %s14, 1
    %p70 = por %p68, %p69
    %p71 = scmp.ne.s32.totalorder %s60, %s61
    %p72 = scmp.eq.s32.totalorder %s14, 0
    %p73 = por %p71, %p72
    %p74 = scmp.ne.s32.totalorder %s60, %s61
    %p75 = scmp.eq.s32.totalorder %s15, 1
    %p76 = por %p74, %p75
    %p78 = scmp.ne.s32.totalorder %s61, %s77
    %p79 = scmp.eq.s32.totalorder %s15, 0
    %p80 = por %p78, %p79
    %s81 = ssub.s32 %s17, %s24
    %p82 = scmp.eq.s32.totalorder %s81, 0
    %s84 = sadd.s32 %s83, 1
    %s85 = scalar_select %p82, %s83, %s84
    %p88 = pneg %p82
    %p89 = scmp.eq.s32.totalorder %s9, 1
    %p90 = por %p88, %p89
    %p91 = scmp.ne.s32.totalorder %s83, %s86
    %p92 = scmp.eq.s32.totalorder %s9, 0
    %p93 = por %p91, %p92
    %p94 = scmp.ne.s32.totalorder %s83, %s86
    %p95 = scmp.eq.s32.totalorder %s14, 1
    %p96 = por %p94, %p95
    %p97 = scmp.ne.s32.totalorder %s86, %s87
    %p98 = scmp.eq.s32.totalorder %s14, 0
    %p99 = por %p97, %p98
    %p100 = scmp.ne.s32.totalorder %s86, %s87
    %p101 = scmp.eq.s32.totalorder %s15, 1
    %p102 = por %p100, %p101
    %p104 = scmp.ne.s32.totalorder %s87, %s103
    %p105 = scmp.eq.s32.totalorder %s15, 0
    %p106 = por %p104, %p105
    %s107 = ssub.s32 %s16, %s28
    %s108 = ssub.s32 %s17, %s24
    %s109 = sor.u32 %s107, %s108
    %p110 = scmp.eq.s32.totalorder %s109, 0
    %s112 = sadd.s32 %s111, 1
    %s113 = scalar_select %p110, %s111, %s112
    %p116 = pneg %p110
    %p117 = scmp.eq.s32.totalorder %s9, 1
    %p118 = por %p116, %p117
    %p119 = scmp.ne.s32.totalorder %s111, %s114
    %p120 = scmp.eq.s32.totalorder %s9, 0
    %p121 = por %p119, %p120
    %p122 = scmp.ne.s32.totalorder %s111, %s114
    %p123 = scmp.eq.s32.totalorder %s14, 1
    %p124 = por %p122, %p123
    %p125 = scmp.ne.s32.totalorder %s114, %s115
    %p126 = scmp.eq.s32.totalorder %s14, 0
    %p127 = por %p125, %p126
    %p128 = scmp.ne.s32.totalorder %s114, %s115
    %p129 = scmp.eq.s32.totalorder %s15, 1
    %p130 = por %p128, %p129
    %p132 = scmp.ne.s32.totalorder %s115, %s131
    %p133 = scmp.eq.s32.totalorder %s15, 0
    %p134 = por %p132, %p133
    %p135 = scmp.le.s32.totalorder 1, %s9
    %p136 = scmp.lt.s32.totalorder %s9, 3
    %p137 = pnand %p135, %p136
    %p138 = pneg %p137
    // Predicated region
    $region9: #{deeplabv3_forward.10} parent=5 // pred_check
      _
    $region10: #{deeplabv3_forward.10} parent=5 // pred_check_branch
      %140 = sbr.rel (%p137) target = $region12
    $region11: #{deeplabv3_forward.10} parent=5 // pred_region
      %s141 = ssub.s32 %s9, 1
      // Predicated region
      $region13: #{deeplabv3_forward.10} parent=11 // pred_check
        %p142 = pneg %p73
      $region14: #{deeplabv3_forward.10} parent=11 // pred_check_branch
        %144 = sbr.rel (%p142) target = $region16
      $region15: #{deeplabv3_forward.10} parent=11 // pred_region
        %p145 = scmp.lt.s32.totalorder %s19, 0
        %s146 = scalar_select %p145, %s19, 0
        %s147 = smul.addr %s146, 4
        %s148 = scalar_lea.vmem %s1, %s147
      $region16: #{deeplabv3_forward.10} parent=11 // pred_fallthru
        _
      // Predicated region
      $region17: #{deeplabv3_forward.10} parent=11 // pred_check
        %p149 = pneg %p99
      $region18: #{deeplabv3_forward.10} parent=11 // pred_check_branch
        %151 = sbr.rel (%p149) target = $region20
      $region19: #{deeplabv3_forward.10} parent=11 // pred_region
        %p152 = scmp.lt.s32.totalorder %s19, 0
        %s153 = scalar_select %p152, %s19, 0
        %s154 = scalar_lea.vmem %s2, %s153
      $region20: #{deeplabv3_forward.10} parent=11 // pred_fallthru
        _
    $region12: #{deeplabv3_forward.10} parent=5 // pred_fallthru
      _
    %p155 = scmp.lt.s32.totalorder %s9, 2
    // Predicated region
    $region21: #{deeplabv3_forward.10} parent=5 // pred_check
      %p156 = pneg %p155
    $region22: #{deeplabv3_forward.10} parent=5 // pred_check_branch
      %158 = sbr.rel (%p156) target = $region24
    $region23: #{deeplabv3_forward.10} parent=5 // pred_region
      // Predicated region
      $region25: #{deeplabv3_forward.10} parent=23 // pred_check
        %p159 = pneg %p41
      $region26: #{deeplabv3_forward.10} parent=23 // pred_check_branch
        %161 = sbr.rel (%p159) target = $region28
      $region27: #{deeplabv3_forward.10} parent=23 // pred_region
        %p162 = scmp.lt.s32.totalorder %s16, 1
        %s163 = scalar_select %p162, %s16, 1
        %s164 = smul.addr %s163, 16
        %s165 = smul.addr %s164, 4
        %s166 = scalar_lea.vmem %s0, %s165
      $region28: #{deeplabv3_forward.10} parent=23 // pred_fallthru
        _
    $region24: #{deeplabv3_forward.10} parent=5 // pred_fallthru
      _
    %p167 = scmp.le.s32.totalorder 1, %s9
    %p168 = scmp.lt.s32.totalorder %s9, 3
    %p169 = pnand %p167, %p168
    %p170 = pneg %p169
    // Predicated region
    $region29: #{deeplabv3_forward.10} parent=5 // pred_check
      _
    $region30: #{deeplabv3_forward.10} parent=5 // pred_check_branch
      %172 = sbr.rel (%p169) target = $region32
    $region31: #{deeplabv3_forward.10} parent=5 // pred_region
      %s173 = ssub.s32 %s9, 1
      %p174 = scmp.lt.s32.totalorder %s18, 1
      %s175 = scalar_select %p174, %s18, 1
      %s176 = smul.addr %s175, 16
      %s177 = smul.addr %s176, 4
      %s178 = scalar_lea.vmem %s0, %s177
      %p179 = pneg %p47
      %p180 = pneg %p44
      %p181 = scmp.lt.s32.totalorder %s19, 0
      %s182 = scalar_select %p181, %s19, 0
      %s183 = smul.addr %s182, 4
      %s184 = scalar_lea.vmem %s1, %s183
      %p185 = pneg %p73
      %p186 = pneg %p70
      %p187 = scmp.lt.s32.totalorder %s19, 0
      %s188 = scalar_select %p187, %s19, 0
      %s189 = scalar_lea.vmem %s2, %s188
      %p190 = pneg %p99
      %p191 = pneg %p96
      %p192 = pneg %p127
      %p193 = pneg %p124
      %p194 = scmp.lt.s32.totalorder %s18, 1
      %s195 = scalar_select %p194, %s18, 1
      %p196 = scmp.lt.s32.totalorder %s19, 0
      %s197 = scalar_select %p196, %s19, 0
      %s198 = smul.addr %s195, 3
      %s199 = sadd.s32 %s197, %s198
      %s200 = smul.addr %s199, 4
      %s201 = scalar_lea.vmem %s3, %s200
      %p202 = scmp.lt.s32.totalorder %s18, 1
      %s203 = scalar_select %p202, %s18, 1
      %s204 = smul.addr %s203, 16
      %s205 = smul.addr %s204, 4
      %s206 = scalar_lea.vmem %s0, %s205
      %p207 = scmp.lt.s32.totalorder %s19, 0
      %s208 = scalar_select %p207, %s19, 0
      %s209 = smul.addr %s208, 4
      %s210 = scalar_lea.vmem %s1, %s209
      %p211 = scmp.lt.s32.totalorder %s19, 0
      %s212 = scalar_select %p211, %s19, 0
      %s213 = scalar_lea.vmem %s2, %s212
      %p214 = scmp.lt.s32.totalorder %s18, 1
      %s215 = scalar_select %p214, %s18, 1
      %p216 = scmp.lt.s32.totalorder %s19, 0
      %s217 = scalar_select %p216, %s19, 0
      %s218 = smul.addr %s215, 3
      %s219 = sadd.s32 %s217, %s218
      %s220 = smul.addr %s219, 4
      %s221 = scalar_lea.vmem %s3, %s220
      %v223 = vld [vmem:[%s206] sm:$0xf]
      %v224 = vld [vmem:[%s206 + $0x4] sm:$0xf]
      %v225 = vld [vmem:[%s206 + $0x8] sm:$0x3]
      %v226 = vld [vmem:[%s210] sm:$0xf]
      %s227 = scalar_lea.vmem %s206, 16
      %v228 = vld [vmem:[%s227] sm:$0xf]
      %v229 = vld [vmem:[%s227 + $0x4] sm:$0xf]
      %v230 = vld [vmem:[%s227 + $0x8] sm:$0x3]
      %s231 = scalar_lea.vmem %s210, 4
      %v232 = vld [vmem:[%s231] sm:$0xf]
      %v236 = vunpack.c.l.b16 %v228
      %v237 = vunpack.c.l.b16 %v229
      %v238 = vunpack.c.l.b16 %v230
      %v239 = vpack.c.b16 %v237, %v236
      %v240 = vpack.c.b16 %v238, %v238
      %vm241 = vcmask 64512
      %v243 = vsel %vm241, %v239, 0
      %v246 = vsel %vm241, %v240, 0
      %vm248 = vcmask 1043456
      %v250 = vsel %vm248, %v232, 0
      %252 = vmatpush.bf16.msra.mxu0 0
      %253 = vmatpush.bf16.msra.mxu0 0
      %254 = vmatpush.bf16.msra.mxu0 0
      %255 = vmatpush.bf16.msra.mxu0 0
      %256 = vmatpush.bf16.msra.mxu0 0
      %257 = vmatpush.bf16.msra.mxu0 0
      %258 = vmatpush.bf16.msra.mxu0 0
      %259 = vmatpush.bf16.msra.mxu0 %v250
      %260 = vmatmul.bf16.gmra.mxu0 %v243
      %v261 = vpop.f32.mrf.mxu0
      %v262 = vadd.f32 0.0, %v261
      %v263 = vpop.f32.mrf.mxu0
      %v264 = vadd.f32 0.0, %v263
      %265 = vmatmul.bf16.gmra.mxu0 %v246
      %v266 = vpop.f32.mrf.mxu0
      %v267 = vadd.f32 0.0, %v266
      %v268 = vpop.f32.mrf.mxu0
      %269 = vdwg.mxu0
      %v273 = vunpack.c.l.b16 %v223
      %v274 = vunpack.c.l.b16 %v224
      %v275 = vunpack.c.l.b16 %v225
      %v276 = vpack.c.b16 %v274, %v273
      %v277 = vpack.c.b16 %v275, %v275
      %v279 = vsel %vm241, %v276, 0
      %v282 = vsel %vm241, %v277, 0
      %v285 = vsel %vm248, %v226, 0
      %287 = vmatpush.bf16.msra.mxu0 0
      %288 = vmatpush.bf16.msra.mxu0 0
      %289 = vmatpush.bf16.msra.mxu0 0
      %290 = vmatpush.bf16.msra.mxu0 0
      %291 = vmatpush.bf16.msra.mxu0 0
      %292 = vmatpush.bf16.msra.mxu0 0
      %293 = vmatpush.bf16.msra.mxu0 0
      %294 = vmatpush.bf16.msra.mxu0 %v285
      %295 = vmatmul.bf16.gmra.mxu0 %v279
      %v296 = vpop.f32.mrf.mxu0
      %v297 = vadd.f32 %v262, %v296
      %v298 = vpop.f32.mrf.mxu0
      %v299 = vadd.f32 %v264, %v298
      %300 = vmatmul.bf16.gmra.mxu0 %v282
      %v301 = vpop.f32.mrf.mxu0
      %v302 = vadd.f32 %v267, %v301
      %v303 = vpop.f32.mrf.mxu0
      %304 = vdwg.mxu0
      %v305 = vld [vmem:[%s206 + $0x8] sm:$0x7]
      %s306 = scalar_lea.vmem %s210, 8
      %v307 = vld [vmem:[%s306] sm:$0xf]
      %v309 = vunpack.c.l.b16 %v305
      %v310 = vpack.c.b16 %v309, %v309
      %vm311 = vsmask.f32 7424
      %v312 = vshrl.u32 %v276, 16
      %v314 = vshll.u32 %v276, 16
      %v316 = vrot.slane %v314, 1
      %v317 = vor.u32 %v312, %v316
      %v319 = vshll.u32 %v310, 16
      %v321 = vrot.slane %v319, 1
      %v322 = vsel %vm311, %v317, %v321
      %v323 = vshrl.u32 %v310, 16
      %v325 = vor.u32 %v323, %v321
      %v327 = vsel %vm241, %v322, 0
      %v330 = vsel %vm241, %v325, 0
      %v333 = vsel %vm248, %v307, 0
      %335 = vmatpush.bf16.msra.mxu0 0
      %336 = vmatpush.bf16.msra.mxu0 0
      %337 = vmatpush.bf16.msra.mxu0 0
      %338 = vmatpush.bf16.msra.mxu0 0
      %339 = vmatpush.bf16.msra.mxu0 0
      %340 = vmatpush.bf16.msra.mxu0 0
      %341 = vmatpush.bf16.msra.mxu0 0
      %342 = vmatpush.bf16.msra.mxu0 %v333
      %343 = vmatmul.bf16.gmra.mxu0 %v327
      %v344 = vpop.f32.mrf.mxu0
      %v345 = vadd.f32 0.0, %v344
      %v346 = vpop.f32.mrf.mxu0
      %v347 = vadd.f32 0.0, %v346
      %348 = vmatmul.bf16.gmra.mxu0 %v330
      %v349 = vpop.f32.mrf.mxu0
      %v350 = vadd.f32 0.0, %v349
      %v351 = vpop.f32.mrf.mxu0
      %352 = vdwg.mxu0
      %v353 = vadd.f32 %v297, %v345
      %v354 = vadd.f32 %v299, %v347
      %v355 = vadd.f32 %v302, %v350
      %s356 = scalar_lea.vmem %s206, 32
      %v357 = vld [vmem:[%s356] sm:$0xf]
      %v358 = vld [vmem:[%s356 + $0x4] sm:$0xf]
      %v359 = vld [vmem:[%s356 + $0x8] sm:$0x3]
      %s360 = scalar_lea.vmem %s210, 12
      %v361 = vld [vmem:[%s360] sm:$0xf]
      %v365 = vunpack.c.l.b16 %v357
      %v366 = vunpack.c.l.b16 %v358
      %v367 = vunpack.c.l.b16 %v359
      %v368 = vpack.c.b16 %v366, %v365
      %v369 = vpack.c.b16 %v367, %v367
      %v371 = vsel %vm241, %v368, 0
      %v374 = vsel %vm241, %v369, 0
      %v377 = vsel %vm248, %v361, 0
      %379 = vmatpush.bf16.msra.mxu0 0
      %380 = vmatpush.bf16.msra.mxu0 0
      %381 = vmatpush.bf16.msra.mxu0 0
      %382 = vmatpush.bf16.msra.mxu0 0
      %383 = vmatpush.bf16.msra.mxu0 0
      %384 = vmatpush.bf16.msra.mxu0 0
      %385 = vmatpush.bf16.msra.mxu0 0
      %386 = vmatpush.bf16.msra.mxu0 %v377
      %387 = vmatmul.bf16.gmra.mxu0 %v371
      %v388 = vpop.f32.mrf.mxu0
      %v389 = vadd.f32 0.0, %v388
      %v390 = vpop.f32.mrf.mxu0
      %v391 = vadd.f32 0.0, %v390
      %392 = vmatmul.bf16.gmra.mxu0 %v374
      %v393 = vpop.f32.mrf.mxu0
      %v394 = vadd.f32 0.0, %v393
      %v395 = vpop.f32.mrf.mxu0
      %396 = vdwg.mxu0
      %v397 = vadd.f32 %v353, %v389
      %v398 = vadd.f32 %v354, %v391
      %v399 = vadd.f32 %v355, %v394
      %s400 = scalar_lea.vmem %s206, 48
      %v401 = vld [vmem:[%s400] sm:$0xf]
      %v402 = vld [vmem:[%s400 + $0x4] sm:$0xf]
      %v403 = vld [vmem:[%s400 + $0x8] sm:$0x3]
      %s404 = scalar_lea.vmem %s210, 16
      %v405 = vld [vmem:[%s404] sm:$0xf]
      %v409 = vunpack.c.l.b16 %v401
      %v410 = vunpack.c.l.b16 %v402
      %v411 = vunpack.c.l.b16 %v403
      %v412 = vpack.c.b16 %v410, %v409
      %v413 = vpack.c.b16 %v411, %v411
      %v415 = vsel %vm241, %v412, 0
      %v418 = vsel %vm241, %v413, 0
      %v421 = vsel %vm248, %v405, 0
      %423 = vmatpush.bf16.msra.mxu0 0
      %424 = vmatpush.bf16.msra.mxu0 0
      %425 = vmatpush.bf16.msra.mxu0 0
      %426 = vmatpush.bf16.msra.mxu0 0
      %427 = vmatpush.bf16.msra.mxu0 0
      %428 = vmatpush.bf16.msra.mxu0 0
      %429 = vmatpush.bf16.msra.mxu0 0
      %430 = vmatpush.bf16.msra.mxu0 %v421
      %431 = vmatmul.bf16.gmra.mxu0 %v415
      %v432 = vpop.f32.mrf.mxu0
      %v433 = vadd.f32 0.0, %v432
      %v434 = vpop.f32.mrf.mxu0
      %v435 = vadd.f32 0.0, %v434
      %436 = vmatmul.bf16.gmra.mxu0 %v418
      %v437 = vpop.f32.mrf.mxu0
      %v438 = vadd.f32 0.0, %v437
      %v439 = vpop.f32.mrf.mxu0
      %440 = vdwg.mxu0
      %v441 = vadd.f32 %v397, %v433
      %v442 = vadd.f32 %v398, %v435
      %v443 = vadd.f32 %v399, %v438
      %v444 = vld [vmem:[%s356 + $0x8] sm:$0x7]
      %s445 = scalar_lea.vmem %s210, 20
      %v446 = vld [vmem:[%s445] sm:$0xf]
      %v448 = vunpack.c.l.b16 %v444
      %v449 = vpack.c.b16 %v448, %v448
      %v450 = vshrl.u32 %v368, 16
      %v452 = vshll.u32 %v368, 16
      %v454 = vrot.slane %v452, 1
      %v455 = vor.u32 %v450, %v454
      %v457 = vshll.u32 %v449, 16
      %v459 = vrot.slane %v457, 1
      %v460 = vsel %vm311, %v455, %v459
      %v461 = vshrl.u32 %v449, 16
      %v463 = vor.u32 %v461, %v459
      %v465 = vsel %vm241, %v460, 0
      %v468 = vsel %vm241, %v463, 0
      %v471 = vsel %vm248, %v446, 0
      %473 = vmatpush.bf16.msra.mxu0 0
      %474 = vmatpush.bf16.msra.mxu0 0
      %475 = vmatpush.bf16.msra.mxu0 0
      %476 = vmatpush.bf16.msra.mxu0 0
      %477 = vmatpush.bf16.msra.mxu0 0
      %478 = vmatpush.bf16.msra.mxu0 0
      %479 = vmatpush.bf16.msra.mxu0 0
      %480 = vmatpush.bf16.msra.mxu0 %v471
      %481 = vmatmul.bf16.gmra.mxu0 %v465
      %v482 = vpop.f32.mrf.mxu0
      %v483 = vadd.f32 0.0, %v482
      %v484 = vpop.f32.mrf.mxu0
      %v485 = vadd.f32 0.0, %v484
      %486 = vmatmul.bf16.gmra.mxu0 %v468
      %v487 = vpop.f32.mrf.mxu0
      %v488 = vadd.f32 0.0, %v487
      %v489 = vpop.f32.mrf.mxu0
      %490 = vdwg.mxu0
      %v491 = vadd.f32 %v441, %v483
      %v492 = vadd.f32 %v442, %v485
      %v493 = vadd.f32 %v443, %v488
      %v494 = vld [vmem:[%s206] sm:$0xc]
      %v495 = vld [vmem:[%s206 + $0x4] sm:$0xf]
      %v496 = vld [vmem:[%s206 + $0x8] sm:$0xf]
      %v497 = vld [vmem:[%s206 + $0xc] sm:$0x1]
      %s498 = scalar_lea.vmem %s210, 24
      %v499 = vld [vmem:[%s498] sm:$0xf]
      %v504 = vunpack.c.l.b16 %v494
      %v505 = vunpack.c.l.b16 %v495
      %v506 = vunpack.c.l.b16 %v496
      %v507 = vunpack.c.l.b16 %v497
      %v508 = vpack.c.b16 %v505, %v504
      %v509 = vpack.c.b16 %v507, %v506
      %vm510 = vsmask.f32 5376
      %v512 = vshrl.u32 %v508, 16
      %v514 = vrot.slane %v512, 2
      %v515 = vshll.u32 %v508, 16
      %v517 = vrot.slane %v515, 3
      %v518 = vor.u32 %v514, %v517
      %v520 = vshrl.u32 %v509, 16
      %v522 = vrot.slane %v520, 2
      %v523 = vshll.u32 %v509, 16
      %v525 = vrot.slane %v523, 3
      %v526 = vor.u32 %v522, %v525
      %v527 = vsel %vm510, %v518, %v526
      %v529 = vsel %vm241, %v527, 0
      %v532 = vsel %vm241, %v526, 0
      %v535 = vsel %vm248, %v499, 0
      %537 = vmatpush.bf16.msra.mxu0 0
      %538 = vmatpush.bf16.msra.mxu0 0
      %539 = vmatpush.bf16.msra.mxu0 0
      %540 = vmatpush.bf16.msra.mxu0 0
      %541 = vmatpush.bf16.msra.mxu0 0
      %542 = vmatpush.bf16.msra.mxu0 0
      %543 = vmatpush.bf16.msra.mxu0 0
      %544 = vmatpush.bf16.msra.mxu0 %v535
      %545 = vmatmul.bf16.gmra.mxu0 %v529
      %v546 = vpop.f32.mrf.mxu0
      %v547 = vadd.f32 0.0, %v546
      %v548 = vpop.f32.mrf.mxu0
      %v549 = vadd.f32 0.0, %v548
      %550 = vmatmul.bf16.gmra.mxu0 %v532
      %v551 = vpop.f32.mrf.mxu0
      %v552 = vadd.f32 0.0, %v551
      %v553 = vpop.f32.mrf.mxu0
      %554 = vdwg.mxu0
      %v555 = vadd.f32 %v491, %v547
      %v556 = vadd.f32 %v492, %v549
      %v557 = vadd.f32 %v493, %v552
      %v558 = vld [vmem:[%s227] sm:$0xc]
      %v559 = vld [vmem:[%s227 + $0x4] sm:$0xf]
      %v560 = vld [vmem:[%s227 + $0x8] sm:$0xf]
      %v561 = vld [vmem:[%s227 + $0xc] sm:$0x1]
      %s562 = scalar_lea.vmem %s210, 28
      %v563 = vld [vmem:[%s562] sm:$0xf]
      %v568 = vunpack.c.l.b16 %v558
      %v569 = vunpack.c.l.b16 %v559
      %v570 = vunpack.c.l.b16 %v560
      %v571 = vunpack.c.l.b16 %v561
      %v572 = vpack.c.b16 %v569, %v568
      %v573 = vpack.c.b16 %v571, %v570
      %v575 = vshrl.u32 %v572, 16
      %v577 = vrot.slane %v575, 2
      %v578 = vshll.u32 %v572, 16
      %v580 = vrot.slane %v578, 3
      %v581 = vor.u32 %v577, %v580
      %v583 = vshrl.u32 %v573, 16
      %v585 = vrot.slane %v583, 2
      %v586 = vshll.u32 %v573, 16
      %v588 = vrot.slane %v586, 3
      %v589 = vor.u32 %v585, %v588
      %v590 = vsel %vm510, %v581, %v589
      %v592 = vsel %vm241, %v590, 0
      %v595 = vsel %vm241, %v589, 0
      %v598 = vsel %vm248, %v563, 0
      %600 = vmatpush.bf16.msra.mxu0 0
      %601 = vmatpush.bf16.msra.mxu0 0
      %602 = vmatpush.bf16.msra.mxu0 0
      %603 = vmatpush.bf16.msra.mxu0 0
      %604 = vmatpush.bf16.msra.mxu0 0
      %605 = vmatpush.bf16.msra.mxu0 0
      %606 = vmatpush.bf16.msra.mxu0 0
      %607 = vmatpush.bf16.msra.mxu0 %v598
      %608 = vmatmul.bf16.gmra.mxu0 %v592
      %v609 = vpop.f32.mrf.mxu0
      %v610 = vadd.f32 0.0, %v609
      %v611 = vpop.f32.mrf.mxu0
      %v612 = vadd.f32 0.0, %v611
      %613 = vmatmul.bf16.gmra.mxu0 %v595
      %v614 = vpop.f32.mrf.mxu0
      %v615 = vadd.f32 0.0, %v614
      %v616 = vpop.f32.mrf.mxu0
      %617 = vdwg.mxu0
      %v618 = vadd.f32 %v555, %v610
      %v619 = vadd.f32 %v556, %v612
      %v620 = vadd.f32 %v557, %v615
      %v621 = vld [vmem:[%s206] sm:$0x8]
      %s622 = scalar_lea.vmem %s210, 32
      %v623 = vld [vmem:[%s622] sm:$0xf]
      %v625 = vunpack.c.l.b16 %v621
      %v626 = vpack.c.b16 %v505, %v625
      %vm627 = vcmask 1044480
      %v628 = vrot.slane %v626, 3
      %v629 = vrot.slane %v509, 3
      %v630 = vsel %vm627, %v628, %v629
      %v632 = vsel %vm241, %v630, 0
      %v635 = vsel %vm241, %v629, 0
      %v638 = vsel %vm248, %v623, 0
      %640 = vmatpush.bf16.msra.mxu0 0
      %641 = vmatpush.bf16.msra.mxu0 0
      %642 = vmatpush.bf16.msra.mxu0 0
      %643 = vmatpush.bf16.msra.mxu0 0
      %644 = vmatpush.bf16.msra.mxu0 0
      %645 = vmatpush.bf16.msra.mxu0 0
      %646 = vmatpush.bf16.msra.mxu0 0
      %647 = vmatpush.bf16.msra.mxu0 %v638
      %648 = vmatmul.bf16.gmra.mxu0 %v632
      %v649 = vpop.f32.mrf.mxu0
      %v650 = vadd.f32 0.0, %v649
      %v651 = vpop.f32.mrf.mxu0
      %v652 = vadd.f32 0.0, %v651
      %653 = vmatmul.bf16.gmra.mxu0 %v635
      %v654 = vpop.f32.mrf.mxu0
      %v655 = vadd.f32 0.0, %v654
      %v656 = vpop.f32.mrf.mxu0
      %657 = vdwg.mxu0
      %v658 = vadd.f32 %v618, %v650
      %v659 = vadd.f32 %v619, %v652
      %v660 = vadd.f32 %v620, %v655
      %v661 = vld [vmem:[%s213] sm:$0x1]
      %v663 = vperm.slane %v661, 0
      %v665 = vadd.f32 %v658, %v663
      %v666 = vadd.f32 %v659, %v663
      %v667 = vadd.f32 %v660, %v663
      %v668 = vmax.f32 %v665, 0.0
      %v669 = vmax.f32 %v666, 0.0
      %v670 = vmax.f32 %v667, 0.0
      %v671 = vpack.c.bf16 %v668, %v668
      %v672 = vpack.c.bf16 %v669, %v669
      %v673 = vpack.c.bf16 %v670, %v670
      %vm674 = vcmask 125952
      %675 = vst.msk [vmem:[%s221] sm:$0xf] %vm674, %v671
      %676 = vst.msk [vmem:[%s221 + $0x4] sm:$0xf] %vm674, %v672
      %vm677 = vcmask 123904
      %678 = vst.msk [vmem:[%s221 + $0x8] sm:$0x3] %vm677, %v673
      %p679 = scmp.lt.s32.totalorder %s18, 1
      %s680 = scalar_select %p679, %s18, 1
      %p681 = scmp.lt.s32.totalorder %s19, 0
      %s682 = scalar_select %p681, %s19, 0
      %s683 = smul.addr %s680, 3
      %s684 = sadd.s32 %s682, %s683
      %s685 = smul.addr %s684, 4
      %s686 = scalar_lea.vmem %s3, %s685
      // Predicated region
      $region33: #{deeplabv3_forward.10} parent=31 // pred_check
        %p687 = pneg %p124
      $region34: #{deeplabv3_forward.10} parent=31 // pred_check_branch
        %689 = sbr.rel (%p687) target = $region36
      $region35: #{deeplabv3_forward.10} parent=31 // pred_region
        _
      $region36: #{deeplabv3_forward.10} parent=31 // pred_fallthru
        _
    $region32: #{deeplabv3_forward.10} parent=5 // pred_fallthru
      _
    %p690 = scmp.le.s32.totalorder 2, %s9
    // Predicated region
    $region37: #{deeplabv3_forward.10} parent=5 // pred_check
      %p691 = pneg %p690
    $region38: #{deeplabv3_forward.10} parent=5 // pred_check_branch
      %693 = sbr.rel (%p691) target = $region40
    $region39: #{deeplabv3_forward.10} parent=5 // pred_region
      %s694 = ssub.s32 %s9, 2
      // Predicated region
      $region41: #{deeplabv3_forward.10} parent=39 // pred_check
        %p695 = pneg %p130
      $region42: #{deeplabv3_forward.10} parent=39 // pred_check_branch
        %697 = sbr.rel (%p695) target = $region44
      $region43: #{deeplabv3_forward.10} parent=39 // pred_region
        %p698 = scmp.lt.s32.totalorder %s20, 1
        %s699 = scalar_select %p698, %s20, 1
        %p700 = scmp.lt.s32.totalorder %s21, 0
        %s701 = scalar_select %p700, %s21, 0
        %s702 = smul.addr %s699, 3
        %s703 = sadd.s32 %s701, %s702
        %s704 = smul.addr %s703, 4
        %s705 = scalar_lea.vmem %s3, %s704
      $region44: #{deeplabv3_forward.10} parent=39 // pred_fallthru
        _
    $region40: #{deeplabv3_forward.10} parent=5 // pred_fallthru
      _
  $region6: #{deeplabv3_forward.10} parent=0 // loop_footer
    %s13 = sadd.s32 1, %s9
  $region7: #{deeplabv3_forward.10} parent=0 // loop_footer_branch
    %8 = sbr.rel target = $region3
  $region8: #{deeplabv3_forward.10} parent=0 // loop_exit
    _

// kernel: deeplabv3_forward.11
$region0: #{deeplabv3_forward.11}
  #allocation0 [shape = 'u32[]', space=smem, size = 0x4, offset = 0x4, fixed_abs, tag = 'smem constant byte address 0x4 - core index']
  #allocation1 [shape = 'u32[72,128]{1,0:T(1,128)}', space=vmem, size = 0x9000, scoped, tag = 'internal scratch']
  %s0 = inlined_call_operand.vmem [shape: bf16[2,4,12,16], index: 0, kind: input, shape index: {}]
  %s1 = inlined_call_operand.vmem [shape: bf16[9,16,32], index: 1, kind: input, shape index: {}]
  %s2 = inlined_call_operand.vmem [shape: f32[1,32], index: 2, kind: input, shape index: {}]
  %s3 = inlined_call_operand.vmem [shape: bf16[2,6,32], index: 3, kind: output, shape index: {}]
  %s4 = sld [smem:[#allocation0]]
  $region45: #{deeplabv3_forward.11} parent=0
    _
  %s6 = ssub.s32 1, %s4
  %s7 = scalar_select 0, %s6, %s4
  loop: start=0, step=1, limit=4
  $region2: #{deeplabv3_forward.11} parent=0 // loop_pre_header
    _
  $region3: #{deeplabv3_forward.11} parent=0 // loop_header
    %s9 = sphi 0, %s13
    %p10 = scmp.ge.s32.totalorder %s9, 4
    %s16 = sphi 0, %s28
    %s17 = sphi 0, %s24
    %s18 = sphi 0, %s16
    %s19 = sphi 0, %s17
    %s20 = sphi 0, %s18
    %s21 = sphi 0, %s19
    %s31 = sphi 0, %s33
    %s34 = sphi 0, %s31
    %s35 = sphi 0, %s34
    %s51 = sphi 0, %s35
    %s57 = sphi 0, %s59
    %s60 = sphi 0, %s57
    %s61 = sphi 0, %s60
    %s77 = sphi 0, %s61
    %s83 = sphi 0, %s85
    %s86 = sphi 0, %s83
    %s87 = sphi 0, %s86
    %s103 = sphi 0, %s87
    %s111 = sphi 0, %s113
    %s114 = sphi 0, %s111
    %s115 = sphi 0, %s114
    %s131 = sphi 0, %s115
  $region4: #{deeplabv3_forward.11} parent=0 // loop_header_branch
    %12 = sbr.rel (%p10) target = $region8
  $region5: #{deeplabv3_forward.11} parent=0 // loop_body
    %s14 = ssub.s32 %s9, 1
    %s15 = ssub.s32 %s9, 2
    %s22 = sadd.s32 1, %s17
    %p23 = scmp.ge.s32.totalorder %s22, 1
    %s24 = scalar_select %p23, 0, %s22
    %s25 = sadd.s32 1, %s16
    %s26 = scalar_select %p23, %s25, %s16
    %p27 = scmp.ge.s32.totalorder %s26, 2
    %s28 = scalar_select %p27, 0, %s26
    %s29 = ssub.s32 %s16, %s28
    %p30 = scmp.eq.s32.totalorder %s29, 0
    %s32 = sadd.s32 %s31, 1
    %s33 = scalar_select %p30, %s31, %s32
    %p36 = pneg %p30
    %p37 = scmp.eq.s32.totalorder %s9, 1
    %p38 = por %p36, %p37
    %p39 = scmp.ne.s32.totalorder %s31, %s34
    %p40 = scmp.eq.s32.totalorder %s9, 0
    %p41 = por %p39, %p40
    %p42 = scmp.ne.s32.totalorder %s31, %s34
    %p43 = scmp.eq.s32.totalorder %s14, 1
    %p44 = por %p42, %p43
    %p45 = scmp.ne.s32.totalorder %s34, %s35
    %p46 = scmp.eq.s32.totalorder %s14, 0
    %p47 = por %p45, %p46
    %p48 = scmp.ne.s32.totalorder %s34, %s35
    %p49 = scmp.eq.s32.totalorder %s15, 1
    %p50 = por %p48, %p49
    %p52 = scmp.ne.s32.totalorder %s35, %s51
    %p53 = scmp.eq.s32.totalorder %s15, 0
    %p54 = por %p52, %p53
    %s55 = ssub.s32 %s17, %s24
    %p56 = scmp.eq.s32.totalorder %s55, 0
    %s58 = sadd.s32 %s57, 1
    %s59 = scalar_select %p56, %s57, %s58
    %p62 = pneg %p56
    %p63 = scmp.eq.s32.totalorder %s9, 1
    %p64 = por %p62, %p63
    %p65 = scmp.ne.s32.totalorder %s57, %s60
    %p66 = scmp.eq.s32.totalorder %s9, 0
    %p67 = por %p65, %p66
    %p68 = scmp.ne.s32.totalorder %s57, %s60
    %p69 = scmp.eq.s32.totalorder %s14, 1
    %p70 = por %p68, %p69
    %p71 = scmp.ne.s32.totalorder %s60, %s61
    %p72 = scmp.eq.s32.totalorder %s14, 0
    %p73 = por %p71, %p72
    %p74 = scmp.ne.s32.totalorder %s60, %s61
    %p75 = scmp.eq.s32.totalorder %s15, 1
    %p76 = por %p74, %p75
    %p78 = scmp.ne.s32.totalorder %s61, %s77
    %p79 = scmp.eq.s32.totalorder %s15, 0
    %p80 = por %p78, %p79
    %s81 = ssub.s32 %s17, %s24
    %p82 = scmp.eq.s32.totalorder %s81, 0
    %s84 = sadd.s32 %s83, 1
    %s85 = scalar_select %p82, %s83, %s84
    %p88 = pneg %p82
    %p89 = scmp.eq.s32.totalorder %s9, 1
    %p90 = por %p88, %p89
    %p91 = scmp.ne.s32.totalorder %s83, %s86
    %p92 = scmp.eq.s32.totalorder %s9, 0
    %p93 = por %p91, %p92
    %p94 = scmp.ne.s32.totalorder %s83, %s86
    %p95 = scmp.eq.s32.totalorder %s14, 1
    %p96 = por %p94, %p95
    %p97 = scmp.ne.s32.totalorder %s86, %s87
    %p98 = scmp.eq.s32.totalorder %s14, 0
    %p99 = por %p97, %p98
    %p100 = scmp.ne.s32.totalorder %s86, %s87
    %p101 = scmp.eq.s32.totalorder %s15, 1
    %p102 = por %p100, %p101
    %p104 = scmp.ne.s32.totalorder %s87, %s103
    %p105 = scmp.eq.s32.totalorder %s15, 0
    %p106 = por %p104, %p105
    %s107 = ssub.s32 %s16, %s28
    %s108 = ssub.s32 %s17, %s24
    %s109 = sor.u32 %s107, %s108
    %p110 = scmp.eq.s32.totalorder %s109, 0
    %s112 = sadd.s32 %s111, 1
    %s113 = scalar_select %p110, %s111, %s112
    %p116 = pneg %p110
    %p117 = scmp.eq.s32.totalorder %s9, 1
    %p118 = por %p116, %p117
    %p119 = scmp.ne.s32.totalorder %s111, %s114
    %p120 = scmp.eq.s32.totalorder %s9, 0
    %p121 = por %p119, %p120
    %p122 = scmp.ne.s32.totalorder %s111, %s114
    %p123 = scmp.eq.s32.totalorder %s14, 1
    %p124 = por %p122, %p123
    %p125 = scmp.ne.s32.totalorder %s114, %s115
    %p126 = scmp.eq.s32.totalorder %s14, 0
    %p127 = por %p125, %p126
    %p128 = scmp.ne.s32.totalorder %s114, %s115
    %p129 = scmp.eq.s32.totalorder %s15, 1
    %p130 = por %p128, %p129
    %p132 = scmp.ne.s32.totalorder %s115, %s131
    %p133 = scmp.eq.s32.totalorder %s15, 0
    %p134 = por %p132, %p133
    %p135 = scmp.le.s32.totalorder 1, %s9
    %p136 = scmp.lt.s32.totalorder %s9, 3
    %p137 = pnand %p135, %p136
    %p138 = pneg %p137
    // Predicated region
    $region9: #{deeplabv3_forward.11} parent=5 // pred_check
      _
    $region10: #{deeplabv3_forward.11} parent=5 // pred_check_branch
      %140 = sbr.rel (%p137) target = $region12
    $region11: #{deeplabv3_forward.11} parent=5 // pred_region
      %s141 = ssub.s32 %s9, 1
      // Predicated region
      $region13: #{deeplabv3_forward.11} parent=11 // pred_check
        %p142 = pneg %p73
      $region14: #{deeplabv3_forward.11} parent=11 // pred_check_branch
        %144 = sbr.rel (%p142) target = $region16
      $region15: #{deeplabv3_forward.11} parent=11 // pred_region
        %p145 = scmp.lt.s32.totalorder %s19, 0
        %s146 = scalar_select %p145, %s19, 0
        %s147 = smul.addr %s146, 4
        %s148 = scalar_lea.vmem %s1, %s147
      $region16: #{deeplabv3_forward.11} parent=11 // pred_fallthru
        _
      // Predicated region
      $region17: #{deeplabv3_forward.11} parent=11 // pred_check
        %p149 = pneg %p99
      $region18: #{deeplabv3_forward.11} parent=11 // pred_check_branch
        %151 = sbr.rel (%p149) target = $region20
      $region19: #{deeplabv3_forward.11} parent=11 // pred_region
        %p152 = scmp.lt.s32.totalorder %s19, 0
        %s153 = scalar_select %p152, %s19, 0
        %s154 = scalar_lea.vmem %s2, %s153
      $region20: #{deeplabv3_forward.11} parent=11 // pred_fallthru
        _
    $region12: #{deeplabv3_forward.11} parent=5 // pred_fallthru
      _
    %p155 = scmp.lt.s32.totalorder %s9, 2
    // Predicated region
    $region21: #{deeplabv3_forward.11} parent=5 // pred_check
      %p156 = pneg %p155
    $region22: #{deeplabv3_forward.11} parent=5 // pred_check_branch
      %158 = sbr.rel (%p156) target = $region24
    $region23: #{deeplabv3_forward.11} parent=5 // pred_region
      // Predicated region
      $region25: #{deeplabv3_forward.11} parent=23 // pred_check
        %p159 = pneg %p41
      $region26: #{deeplabv3_forward.11} parent=23 // pred_check_branch
        %161 = sbr.rel (%p159) target = $region28
      $region27: #{deeplabv3_forward.11} parent=23 // pred_region
        %p162 = scmp.lt.s32.totalorder %s16, 1
        %s163 = scalar_select %p162, %s16, 1
        %s164 = smul.addr %s163, 8
        %s165 = smul.addr %s164, 4
        %s166 = scalar_lea.vmem %s0, %s165
      $region28: #{deeplabv3_forward.11} parent=23 // pred_fallthru
        _
    $region24: #{deeplabv3_forward.11} parent=5 // pred_fallthru
      _
    %p167 = scmp.le.s32.totalorder 1, %s9
    %p168 = scmp.lt.s32.totalorder %s9, 3
    %p169 = pnand %p167, %p168
    %p170 = pneg %p169
    // Predicated region
    $region29: #{deeplabv3_forward.11} parent=5 // pred_check
      _
    $region30: #{deeplabv3_forward.11} parent=5 // pred_check_branch
      %172 = sbr.rel (%p169) target = $region32
    $region31: #{deeplabv3_forward.11} parent=5 // pred_region
      %s173 = ssub.s32 %s9, 1
      %p174 = scmp.lt.s32.totalorder %s18, 1
      %s175 = scalar_select %p174, %s18, 1
      %s176 = smul.addr %s175, 8
      %s177 = smul.addr %s176, 4
      %s178 = scalar_lea.vmem %s0, %s177
      %p179 = pneg %p47
      %p180 = pneg %p44
      %p181 = scmp.lt.s32.totalorder %s19, 0
      %s182 = scalar_select %p181, %s19, 0
      %s183 = smul.addr %s182, 4
      %s184 = scalar_lea.vmem %s1, %s183
      %p185 = pneg %p73
      %p186 = pneg %p70
      %p187 = scmp.lt.s32.totalorder %s19, 0
      %s188 = scalar_select %p187, %s19, 0
      %s189 = scalar_lea.vmem %s2, %s188
      %p190 = pneg %p99
      %p191 = pneg %p96
      %p192 = pneg %p127
      %p193 = pneg %p124
      %p194 = scmp.lt.s32.totalorder %s18, 1
      %s195 = scalar_select %p194, %s18, 1
      %p196 = scmp.lt.s32.totalorder %s19, 0
      %s197 = scalar_select %p196, %s19, 0
      %s198 = sadd.s32 %s197, %s195
      %s199 = smul.addr %s198, 4
      %s200 = scalar_lea.vmem %s3, %s199
      %p201 = scmp.lt.s32.totalorder %s18, 1
      %s202 = scalar_select %p201, %s18, 1
      %s203 = smul.addr %s202, 8
      %s204 = smul.addr %s203, 4
      %s205 = scalar_lea.vmem %s0, %s204
      %p206 = scmp.lt.s32.totalorder %s19, 0
      %s207 = scalar_select %p206, %s19, 0
      %s208 = smul.addr %s207, 4
      %s209 = scalar_lea.vmem %s1, %s208
      %p210 = scmp.lt.s32.totalorder %s19, 0
      %s211 = scalar_select %p210, %s19, 0
      %s212 = scalar_lea.vmem %s2, %s211
      %p213 = scmp.lt.s32.totalorder %s18, 1
      %s214 = scalar_select %p213, %s18, 1
      %p215 = scmp.lt.s32.totalorder %s19, 0
      %s216 = scalar_select %p215, %s19, 0
      %s217 = sadd.s32 %s216, %s214
      %s218 = smul.addr %s217, 4
      %s219 = scalar_lea.vmem %s3, %s218
      %v221 = vld [vmem:[%s205] sm:$0x7]
      %v222 = vld [vmem:[%s209] sm:$0xf]
      %v223 = vld [vmem:[%s209 + $0x4] sm:$0xf]
      %s224 = scalar_lea.vmem %s205, 8
      %v225 = vld [vmem:[%s224] sm:$0x7]
      %s226 = scalar_lea.vmem %s209, 8
      %v227 = vld [vmem:[%s226] sm:$0xf]
      %v228 = vld [vmem:[%s226 + $0x4] sm:$0xf]
      %v231 = vunpack.c.l.b16 %v227
      %v232 = vunpack.c.l.b16 %v228
      %v233 = vpack.c.b16 %v232, %v231
      %vm235 = vcmask 130048
      %v237 = vsel %vm235, %v225, 0
      %239 = vmatpush.bf16.msra.mxu0 0
      %240 = vmatpush.bf16.msra.mxu0 0
      %241 = vmatpush.bf16.msra.mxu0 0
      %242 = vmatpush.bf16.msra.mxu0 0
      %243 = vmatpush.bf16.msra.mxu0 0
      %244 = vmatpush.bf16.msra.mxu0 0
      %245 = vmatpush.bf16.msra.mxu0 0
      %246 = vmatpush.bf16.msra.mxu0 %v233
      %247 = vmatmul.bf16.gmra.mxu0 %v237
      %v248 = vpop.f32.mrf.mxu0
      %v249 = vadd.f32 0.0, %v248
      %v250 = vpop.f32.mrf.mxu0
      %251 = vdwg.mxu0
      %v254 = vunpack.c.l.b16 %v222
      %v255 = vunpack.c.l.b16 %v223
      %v256 = vpack.c.b16 %v255, %v254
      %v259 = vsel %vm235, %v221, 0
      %261 = vmatpush.bf16.msra.mxu0 0
      %262 = vmatpush.bf16.msra.mxu0 0
      %263 = vmatpush.bf16.msra.mxu0 0
      %264 = vmatpush.bf16.msra.mxu0 0
      %265 = vmatpush.bf16.msra.mxu0 0
      %266 = vmatpush.bf16.msra.mxu0 0
      %267 = vmatpush.bf16.msra.mxu0 0
      %268 = vmatpush.bf16.msra.mxu0 %v256
      %269 = vmatmul.bf16.gmra.mxu0 %v259
      %v270 = vpop.f32.mrf.mxu0
      %v271 = vadd.f32 %v249, %v270
      %v272 = vpop.f32.mrf.mxu0
      %273 = vdwg.mxu0
      %v274 = vld [vmem:[%s205] sm:$0xf]
      %s275 = scalar_lea.vmem %s209, 16
      %v276 = vld [vmem:[%s275] sm:$0xf]
      %v277 = vld [vmem:[%s275 + $0x4] sm:$0xf]
      %v279 = vunpack.c.l.b16 %v274
      %v280 = vpack.c.b16 %v279, %v279
      %v282 = vshrl.u32 %v280, 16
      %v284 = vshll.u32 %v280, 16
      %v286 = vrot.slane %v284, 1
      %v287 = vor.u32 %v282, %v286
      %v290 = vunpack.c.l.b16 %v276
      %v291 = vunpack.c.l.b16 %v277
      %v292 = vpack.c.b16 %v291, %v290
      %v295 = vsel %vm235, %v287, 0
      %297 = vmatpush.bf16.msra.mxu0 0
      %298 = vmatpush.bf16.msra.mxu0 0
      %299 = vmatpush.bf16.msra.mxu0 0
      %300 = vmatpush.bf16.msra.mxu0 0
      %301 = vmatpush.bf16.msra.mxu0 0
      %302 = vmatpush.bf16.msra.mxu0 0
      %303 = vmatpush.bf16.msra.mxu0 0
      %304 = vmatpush.bf16.msra.mxu0 %v292
      %305 = vmatmul.bf16.gmra.mxu0 %v295
      %v306 = vpop.f32.mrf.mxu0
      %v307 = vadd.f32 0.0, %v306
      %v308 = vpop.f32.mrf.mxu0
      %309 = vdwg.mxu0
      %v310 = vadd.f32 %v271, %v307
      %s311 = scalar_lea.vmem %s205, 16
      %v312 = vld [vmem:[%s311] sm:$0x7]
      %s313 = scalar_lea.vmem %s209, 24
      %v314 = vld [vmem:[%s313] sm:$0xf]
      %v315 = vld [vmem:[%s313 + $0x4] sm:$0xf]
      %v318 = vunpack.c.l.b16 %v314
      %v319 = vunpack.c.l.b16 %v315
      %v320 = vpack.c.b16 %v319, %v318
      %v323 = vsel %vm235, %v312, 0
      %325 = vmatpush.bf16.msra.mxu0 0
      %326 = vmatpush.bf16.msra.mxu0 0
      %327 = vmatpush.bf16.msra.mxu0 0
      %328 = vmatpush.bf16.msra.mxu0 0
      %329 = vmatpush.bf16.msra.mxu0 0
      %330 = vmatpush.bf16.msra.mxu0 0
      %331 = vmatpush.bf16.msra.mxu0 0
      %332 = vmatpush.bf16.msra.mxu0 %v320
      %333 = vmatmul.bf16.gmra.mxu0 %v323
      %v334 = vpop.f32.mrf.mxu0
      %v335 = vadd.f32 0.0, %v334
      %v336 = vpop.f32.mrf.mxu0
      %337 = vdwg.mxu0
      %v338 = vadd.f32 %v310, %v335
      %s339 = scalar_lea.vmem %s205, 24
      %v340 = vld [vmem:[%s339] sm:$0x7]
      %s341 = scalar_lea.vmem %s209, 32
      %v342 = vld [vmem:[%s341] sm:$0xf]
      %v343 = vld [vmem:[%s341 + $0x4] sm:$0xf]
      %v346 = vunpack.c.l.b16 %v342
      %v347 = vunpack.c.l.b16 %v343
      %v348 = vpack.c.b16 %v347, %v346
      %v351 = vsel %vm235, %v340, 0
      %353 = vmatpush.bf16.msra.mxu0 0
      %354 = vmatpush.bf16.msra.mxu0 0
      %355 = vmatpush.bf16.msra.mxu0 0
      %356 = vmatpush.bf16.msra.mxu0 0
      %357 = vmatpush.bf16.msra.mxu0 0
      %358 = vmatpush.bf16.msra.mxu0 0
      %359 = vmatpush.bf16.msra.mxu0 0
      %360 = vmatpush.bf16.msra.mxu0 %v348
      %361 = vmatmul.bf16.gmra.mxu0 %v351
      %v362 = vpop.f32.mrf.mxu0
      %v363 = vadd.f32 0.0, %v362
      %v364 = vpop.f32.mrf.mxu0
      %365 = vdwg.mxu0
      %v366 = vadd.f32 %v338, %v363
      %v367 = vld [vmem:[%s311] sm:$0xf]
      %s368 = scalar_lea.vmem %s209, 40
      %v369 = vld [vmem:[%s368] sm:$0xf]
      %v370 = vld [vmem:[%s368 + $0x4] sm:$0xf]
      %v372 = vunpack.c.l.b16 %v367
      %v373 = vpack.c.b16 %v372, %v372
      %v375 = vshrl.u32 %v373, 16
      %v377 = vshll.u32 %v373, 16
      %v379 = vrot.slane %v377, 1
      %v380 = vor.u32 %v375, %v379
      %v383 = vunpack.c.l.b16 %v369
      %v384 = vunpack.c.l.b16 %v370
      %v385 = vpack.c.b16 %v384, %v383
      %v388 = vsel %vm235, %v380, 0
      %390 = vmatpush.bf16.msra.mxu0 0
      %391 = vmatpush.bf16.msra.mxu0 0
      %392 = vmatpush.bf16.msra.mxu0 0
      %393 = vmatpush.bf16.msra.mxu0 0
      %394 = vmatpush.bf16.msra.mxu0 0
      %395 = vmatpush.bf16.msra.mxu0 0
      %396 = vmatpush.bf16.msra.mxu0 0
      %397 = vmatpush.bf16.msra.mxu0 %v385
      %398 = vmatmul.bf16.gmra.mxu0 %v388
      %v399 = vpop.f32.mrf.mxu0
      %v400 = vadd.f32 0.0, %v399
      %v401 = vpop.f32.mrf.mxu0
      %402 = vdwg.mxu0
      %v403 = vadd.f32 %v366, %v400
      %v404 = vld [vmem:[%s205] sm:$0xe]
      %v405 = vld [vmem:[%s205 + $0x4] sm:$0x1]
      %s406 = scalar_lea.vmem %s209, 48
      %v407 = vld [vmem:[%s406] sm:$0xf]
      %v408 = vld [vmem:[%s406 + $0x4] sm:$0xf]
      %v411 = vunpack.c.l.b16 %v404
      %v412 = vunpack.c.l.b16 %v405
      %v413 = vpack.c.b16 %v412, %v411
      %v415 = vshrl.u32 %v413, 16
      %v417 = vrot.slane %v415, 1
      %v418 = vshll.u32 %v413, 16
      %v420 = vrot.slane %v418, 2
      %v421 = vor.u32 %v417, %v420
      %v424 = vunpack.c.l.b16 %v407
      %v425 = vunpack.c.l.b16 %v408
      %v426 = vpack.c.b16 %v425, %v424
      %v429 = vsel %vm235, %v421, 0
      %431 = vmatpush.bf16.msra.mxu0 0
      %432 = vmatpush.bf16.msra.mxu0 0
      %433 = vmatpush.bf16.msra.mxu0 0
      %434 = vmatpush.bf16.msra.mxu0 0
      %435 = vmatpush.bf16.msra.mxu0 0
      %436 = vmatpush.bf16.msra.mxu0 0
      %437 = vmatpush.bf16.msra.mxu0 0
      %438 = vmatpush.bf16.msra.mxu0 %v426
      %439 = vmatmul.bf16.gmra.mxu0 %v429
      %v440 = vpop.f32.mrf.mxu0
      %v441 = vadd.f32 0.0, %v440
      %v442 = vpop.f32.mrf.mxu0
      %443 = vdwg.mxu0
      %v444 = vadd.f32 %v403, %v441
      %v445 = vld [vmem:[%s224] sm:$0xe]
      %v446 = vld [vmem:[%s224 + $0x4] sm:$0x1]
      %s447 = scalar_lea.vmem %s209, 56
      %v448 = vld [vmem:[%s447] sm:$0xf]
      %v449 = vld [vmem:[%s447 + $0x4] sm:$0xf]
      %v452 = vunpack.c.l.b16 %v445
      %v453 = vunpack.c.l.b16 %v446
      %v454 = vpack.c.b16 %v453, %v452
      %v456 = vshrl.u32 %v454, 16
      %v458 = vrot.slane %v456, 1
      %v459 = vshll.u32 %v454, 16
      %v461 = vrot.slane %v459, 2
      %v462 = vor.u32 %v458, %v461
      %v465 = vunpack.c.l.b16 %v448
      %v466 = vunpack.c.l.b16 %v449
      %v467 = vpack.c.b16 %v466, %v465
      %v470 = vsel %vm235, %v462, 0
      %472 = vmatpush.bf16.msra.mxu0 0
      %473 = vmatpush.bf16.msra.mxu0 0
      %474 = vmatpush.bf16.msra.mxu0 0
      %475 = vmatpush.bf16.msra.mxu0 0
      %476 = vmatpush.bf16.msra.mxu0 0
      %477 = vmatpush.bf16.msra.mxu0 0
      %478 = vmatpush.bf16.msra.mxu0 0
      %479 = vmatpush.bf16.msra.mxu0 %v467
      %480 = vmatmul.bf16.gmra.mxu0 %v470
      %v481 = vpop.f32.mrf.mxu0
      %v482 = vadd.f32 0.0, %v481
      %v483 = vpop.f32.mrf.mxu0
      %484 = vdwg.mxu0
      %v485 = vadd.f32 %v444, %v482
      %v486 = vld [vmem:[%s205] sm:$0xc]
      %s487 = scalar_lea.vmem %s209, 64
      %v488 = vld [vmem:[%s487] sm:$0xf]
      %v489 = vld [vmem:[%s487 + $0x4] sm:$0xf]
      %v491 = vunpack.c.l.b16 %v486
      %v492 = vpack.c.b16 %v412, %v491
      %v493 = vrot.slane %v492, 2
      %v496 = vunpack.c.l.b16 %v488
      %v497 = vunpack.c.l.b16 %v489
      %v498 = vpack.c.b16 %v497, %v496
      %v501 = vsel %vm235, %v493, 0
      %503 = vmatpush.bf16.msra.mxu0 0
      %504 = vmatpush.bf16.msra.mxu0 0
      %505 = vmatpush.bf16.msra.mxu0 0
      %506 = vmatpush.bf16.msra.mxu0 0
      %507 = vmatpush.bf16.msra.mxu0 0
      %508 = vmatpush.bf16.msra.mxu0 0
      %509 = vmatpush.bf16.msra.mxu0 0
      %510 = vmatpush.bf16.msra.mxu0 %v498
      %511 = vmatmul.bf16.gmra.mxu0 %v501
      %v512 = vpop.f32.mrf.mxu0
      %v513 = vadd.f32 0.0, %v512
      %v514 = vpop.f32.mrf.mxu0
      %515 = vdwg.mxu0
      %v516 = vadd.f32 %v485, %v513
      %v517 = vld [vmem:[%s212] sm:$0x1]
      %v519 = vperm.slane %v517, 0
      %v521 = vadd.f32 %v516, %v519
      %v522 = vmax.f32 %v521, 0.0
      %v523 = vpack.c.bf16 %v522, %v522
      %vm524 = vcmask 256000
      %525 = vst.msk [vmem:[%s219] sm:$0x7] %vm524, %v523
      %p526 = scmp.lt.s32.totalorder %s18, 1
      %s527 = scalar_select %p526, %s18, 1
      %p528 = scmp.lt.s32.totalorder %s19, 0
      %s529 = scalar_select %p528, %s19, 0
      %s530 = sadd.s32 %s529, %s527
      %s531 = smul.addr %s530, 4
      %s532 = scalar_lea.vmem %s3, %s531
      // Predicated region
      $region33: #{deeplabv3_forward.11} parent=31 // pred_check
        %p533 = pneg %p124
      $region34: #{deeplabv3_forward.11} parent=31 // pred_check_branch
        %535 = sbr.rel (%p533) target = $region36
      $region35: #{deeplabv3_forward.11} parent=31 // pred_region
        _
      $region36: #{deeplabv3_forward.11} parent=31 // pred_fallthru
        _
    $region32: #{deeplabv3_forward.11} parent=5 // pred_fallthru
      _
    %p536 = scmp.le.s32.totalorder 2, %s9
    // Predicated region
    $region37: #{deeplabv3_forward.11} parent=5 // pred_check
      %p537 = pneg %p536
    $region38: #{deeplabv3_forward.11} parent=5 // pred_check_branch
      %539 = sbr.rel (%p537) target = $region40
    $region39: #{deeplabv3_forward.11} parent=5 // pred_region
      %s540 = ssub.s32 %s9, 2
      // Predicated region
      $region41: #{deeplabv3_forward.11} parent=39 // pred_check
        %p541 = pneg %p130
      $region42: #{deeplabv3_forward.11} parent=39 // pred_check_branch
        %543 = sbr.rel (%p541) target = $region44
      $region43: #{deeplabv3_forward.11} parent=39 // pred_region
        %p544 = scmp.lt.s32.totalorder %s20, 1
        %s545 = scalar_select %p544, %s20, 1
        %p546 = scmp.lt.s32.totalorder %s21, 0
        %s547 = scalar_select %p546, %s21, 0
        %s548 = sadd.s32 %s547, %s545
        %s549 = smul.addr %s548, 4
        %s550 = scalar_lea.vmem %s3, %s549
      $region44: #{deeplabv3_forward.11} parent=39 // pred_fallthru
        _
    $region40: #{deeplabv3_forward.11} parent=5 // pred_fallthru
      _
  $region6: #{deeplabv3_forward.11} parent=0 // loop_footer
    %s13 = sadd.s32 1, %s9
  $region7: #{deeplabv3_forward.11} parent=0 // loop_footer_branch
    %8 = sbr.rel target = $region3
  $region8: #{deeplabv3_forward.11} parent=0 // loop_exit
    _

// kernel: deeplabv3_forward.9
$region0: #{deeplabv3_forward.9}
  #allocation0 [shape = 'u32[]', space=smem, size = 0x4, offset = 0x4, fixed_abs, tag = 'smem constant byte address 0x4 - core index']
  #allocation1 [shape = 'u32[72,128]{1,0:T(1,128)}', space=vmem, size = 0x9000, scoped, tag = 'internal scratch']
  %s0 = inlined_call_operand.vmem [shape: bf16[2,4,90,4], index: 0, kind: input, shape index: {}]
  %s1 = inlined_call_operand.vmem [shape: bf16[9,4,8], index: 1, kind: input, shape index: {}]
  %s2 = inlined_call_operand.vmem [shape: f32[1,8], index: 2, kind: input, shape index: {}]
  %s3 = inlined_call_operand.vmem [shape: bf16[2,72,8], index: 3, kind: output, shape index: {}]
  %s4 = sld [smem:[#allocation0]]
  $region45: #{deeplabv3_forward.9} parent=0
    _
  %s6 = ssub.s32 1, %s4
  %s7 = scalar_select 0, %s6, %s4
  loop: start=0, step=1, limit=4
  $region2: #{deeplabv3_forward.9} parent=0 // loop_pre_header
    _
  $region3: #{deeplabv3_forward.9} parent=0 // loop_header
    %s9 = sphi 0, %s13
    %p10 = scmp.ge.s32.totalorder %s9, 4
    %s16 = sphi 0, %s28
    %s17 = sphi 0, %s24
    %s18 = sphi 0, %s16
    %s19 = sphi 0, %s17
    %s20 = sphi 0, %s18
    %s21 = sphi 0, %s19
    %s31 = sphi 0, %s33
    %s34 = sphi 0, %s31
    %s35 = sphi 0, %s34
    %s51 = sphi 0, %s35
    %s57 = sphi 0, %s59
    %s60 = sphi 0, %s57
    %s61 = sphi 0, %s60
    %s77 = sphi 0, %s61
    %s83 = sphi 0, %s85
    %s86 = sphi 0, %s83
    %s87 = sphi 0, %s86
    %s103 = sphi 0, %s87
    %s111 = sphi 0, %s113
    %s114 = sphi 0, %s111
    %s115 = sphi 0, %s114
    %s131 = sphi 0, %s115
  $region4: #{deeplabv3_forward.9} parent=0 // loop_header_branch
    %12 = sbr.rel (%p10) target = $region8
  $region5: #{deeplabv3_forward.9} parent=0 // loop_body
    %s14 = ssub.s32 %s9, 1
    %s15 = ssub.s32 %s9, 2
    %s22 = sadd.s32 1, %s17
    %p23 = scmp.ge.s32.totalorder %s22, 1
    %s24 = scalar_select %p23, 0, %s22
    %s25 = sadd.s32 1, %s16
    %s26 = scalar_select %p23, %s25, %s16
    %p27 = scmp.ge.s32.totalorder %s26, 2
    %s28 = scalar_select %p27, 0, %s26
    %s29 = ssub.s32 %s16, %s28
    %p30 = scmp.eq.s32.totalorder %s29, 0
    %s32 = sadd.s32 %s31, 1
    %s33 = scalar_select %p30, %s31, %s32
    %p36 = pneg %p30
    %p37 = scmp.eq.s32.totalorder %s9, 1
    %p38 = por %p36, %p37
    %p39 = scmp.ne.s32.totalorder %s31, %s34
    %p40 = scmp.eq.s32.totalorder %s9, 0
    %p41 = por %p39, %p40
    %p42 = scmp.ne.s32.totalorder %s31, %s34
    %p43 = scmp.eq.s32.totalorder %s14, 1
    %p44 = por %p42, %p43
    %p45 = scmp.ne.s32.totalorder %s34, %s35
    %p46 = scmp.eq.s32.totalorder %s14, 0
    %p47 = por %p45, %p46
    %p48 = scmp.ne.s32.totalorder %s34, %s35
    %p49 = scmp.eq.s32.totalorder %s15, 1
    %p50 = por %p48, %p49
    %p52 = scmp.ne.s32.totalorder %s35, %s51
    %p53 = scmp.eq.s32.totalorder %s15, 0
    %p54 = por %p52, %p53
    %s55 = ssub.s32 %s17, %s24
    %p56 = scmp.eq.s32.totalorder %s55, 0
    %s58 = sadd.s32 %s57, 1
    %s59 = scalar_select %p56, %s57, %s58
    %p62 = pneg %p56
    %p63 = scmp.eq.s32.totalorder %s9, 1
    %p64 = por %p62, %p63
    %p65 = scmp.ne.s32.totalorder %s57, %s60
    %p66 = scmp.eq.s32.totalorder %s9, 0
    %p67 = por %p65, %p66
    %p68 = scmp.ne.s32.totalorder %s57, %s60
    %p69 = scmp.eq.s32.totalorder %s14, 1
    %p70 = por %p68, %p69
    %p71 = scmp.ne.s32.totalorder %s60, %s61
    %p72 = scmp.eq.s32.totalorder %s14, 0
    %p73 = por %p71, %p72
    %p74 = scmp.ne.s32.totalorder %s60, %s61
    %p75 = scmp.eq.s32.totalorder %s15, 1
    %p76 = por %p74, %p75
    %p78 = scmp.ne.s32.totalorder %s61, %s77
    %p79 = scmp.eq.s32.totalorder %s15, 0
    %p80 = por %p78, %p79
    %s81 = ssub.s32 %s17, %s24
    %p82 = scmp.eq.s32.totalorder %s81, 0
    %s84 = sadd.s32 %s83, 1
    %s85 = scalar_select %p82, %s83, %s84
    %p88 = pneg %p82
    %p89 = scmp.eq.s32.totalorder %s9, 1
    %p90 = por %p88, %p89
    %p91 = scmp.ne.s32.totalorder %s83, %s86
    %p92 = scmp.eq.s32.totalorder %s9, 0
    %p93 = por %p91, %p92
    %p94 = scmp.ne.s32.totalorder %s83, %s86
    %p95 = scmp.eq.s32.totalorder %s14, 1
    %p96 = por %p94, %p95
    %p97 = scmp.ne.s32.totalorder %s86, %s87
    %p98 = scmp.eq.s32.totalorder %s14, 0
    %p99 = por %p97, %p98
    %p100 = scmp.ne.s32.totalorder %s86, %s87
    %p101 = scmp.eq.s32.totalorder %s15, 1
    %p102 = por %p100, %p101
    %p104 = scmp.ne.s32.totalorder %s87, %s103
    %p105 = scmp.eq.s32.totalorder %s15, 0
    %p106 = por %p104, %p105
    %s107 = ssub.s32 %s16, %s28
    %s108 = ssub.s32 %s17, %s24
    %s109 = sor.u32 %s107, %s108
    %p110 = scmp.eq.s32.totalorder %s109, 0
    %s112 = sadd.s32 %s111, 1
    %s113 = scalar_select %p110, %s111, %s112
    %p116 = pneg %p110
    %p117 = scmp.eq.s32.totalorder %s9, 1
    %p118 = por %p116, %p117
    %p119 = scmp.ne.s32.totalorder %s111, %s114
    %p120 = scmp.eq.s32.totalorder %s9, 0
    %p121 = por %p119, %p120
    %p122 = scmp.ne.s32.totalorder %s111, %s114
    %p123 = scmp.eq.s32.totalorder %s14, 1
    %p124 = por %p122, %p123
    %p125 = scmp.ne.s32.totalorder %s114, %s115
    %p126 = scmp.eq.s32.totalorder %s14, 0
    %p127 = por %p125, %p126
    %p128 = scmp.ne.s32.totalorder %s114, %s115
    %p129 = scmp.eq.s32.totalorder %s15, 1
    %p130 = por %p128, %p129
    %p132 = scmp.ne.s32.totalorder %s115, %s131
    %p133 = scmp.eq.s32.totalorder %s15, 0
    %p134 = por %p132, %p133
    %p135 = scmp.le.s32.totalorder 1, %s9
    %p136 = scmp.lt.s32.totalorder %s9, 3
    %p137 = pnand %p135, %p136
    %p138 = pneg %p137
    // Predicated region
    $region9: #{deeplabv3_forward.9} parent=5 // pred_check
      _
    $region10: #{deeplabv3_forward.9} parent=5 // pred_check_branch
      %140 = sbr.rel (%p137) target = $region12
    $region11: #{deeplabv3_forward.9} parent=5 // pred_region
      %s141 = ssub.s32 %s9, 1
      // Predicated region
      $region13: #{deeplabv3_forward.9} parent=11 // pred_check
        %p142 = pneg %p73
      $region14: #{deeplabv3_forward.9} parent=11 // pred_check_branch
        %144 = sbr.rel (%p142) target = $region16
      $region15: #{deeplabv3_forward.9} parent=11 // pred_region
        %p145 = scmp.lt.s32.totalorder %s19, 0
        %s146 = scalar_select %p145, %s19, 0
        %s147 = smul.addr %s146, 2
        %s148 = scalar_lea.vmem %s1, %s147
      $region16: #{deeplabv3_forward.9} parent=11 // pred_fallthru
        _
      // Predicated region
      $region17: #{deeplabv3_forward.9} parent=11 // pred_check
        %p149 = pneg %p99
      $region18: #{deeplabv3_forward.9} parent=11 // pred_check_branch
        %151 = sbr.rel (%p149) target = $region20
      $region19: #{deeplabv3_forward.9} parent=11 // pred_region
        %p152 = scmp.lt.s32.totalorder %s19, 0
        %s153 = scalar_select %p152, %s19, 0
        %s154 = scalar_lea.vmem %s2, %s153
      $region20: #{deeplabv3_forward.9} parent=11 // pred_fallthru
        _
    $region12: #{deeplabv3_forward.9} parent=5 // pred_fallthru
      _
    %p155 = scmp.lt.s32.totalorder %s9, 2
    // Predicated region
    $region21: #{deeplabv3_forward.9} parent=5 // pred_check
      %p156 = pneg %p155
    $region22: #{deeplabv3_forward.9} parent=5 // pred_check_branch
      %158 = sbr.rel (%p156) target = $region24
    $region23: #{deeplabv3_forward.9} parent=5 // pred_region
      // Predicated region
      $region25: #{deeplabv3_forward.9} parent=23 // pred_check
        %p159 = pneg %p41
      $region26: #{deeplabv3_forward.9} parent=23 // pred_check_branch
        %161 = sbr.rel (%p159) target = $region28
      $region27: #{deeplabv3_forward.9} parent=23 // pred_region
        %p162 = scmp.lt.s32.totalorder %s16, 1
        %s163 = scalar_select %p162, %s16, 1
        %s164 = smul.addr %s163, 48
        %s165 = smul.addr %s164, 4
        %s166 = scalar_lea.vmem %s0, %s165
      $region28: #{deeplabv3_forward.9} parent=23 // pred_fallthru
        _
    $region24: #{deeplabv3_forward.9} parent=5 // pred_fallthru
      _
    %p167 = scmp.le.s32.totalorder 1, %s9
    %p168 = scmp.lt.s32.totalorder %s9, 3
    %p169 = pnand %p167, %p168
    %p170 = pneg %p169
    // Predicated region
    $region29: #{deeplabv3_forward.9} parent=5 // pred_check
      _
    $region30: #{deeplabv3_forward.9} parent=5 // pred_check_branch
      %172 = sbr.rel (%p169) target = $region32
    $region31: #{deeplabv3_forward.9} parent=5 // pred_region
      %s173 = ssub.s32 %s9, 1
      %p174 = scmp.lt.s32.totalorder %s18, 1
      %s175 = scalar_select %p174, %s18, 1
      %s176 = smul.addr %s175, 48
      %s177 = smul.addr %s176, 4
      %s178 = scalar_lea.vmem %s0, %s177
      %p179 = pneg %p47
      %p180 = pneg %p44
      %p181 = scmp.lt.s32.totalorder %s19, 0
      %s182 = scalar_select %p181, %s19, 0
      %s183 = smul.addr %s182, 2
      %s184 = scalar_lea.vmem %s1, %s183
      %p185 = pneg %p73
      %p186 = pneg %p70
      %p187 = scmp.lt.s32.totalorder %s19, 0
      %s188 = scalar_select %p187, %s19, 0
      %s189 = scalar_lea.vmem %s2, %s188
      %p190 = pneg %p99
      %p191 = pneg %p96
      %p192 = pneg %p127
      %p193 = pneg %p124
      %p194 = scmp.lt.s32.totalorder %s18, 1
      %s195 = scalar_select %p194, %s18, 1
      %p196 = scmp.lt.s32.totalorder %s19, 0
      %s197 = scalar_select %p196, %s19, 0
      %s198 = smul.addr %s195, 9
      %s199 = sadd.s32 %s197, %s198
      %s200 = smul.addr %s199, 4
      %s201 = scalar_lea.vmem %s3, %s200
      %p202 = scmp.lt.s32.totalorder %s18, 1
      %s203 = scalar_select %p202, %s18, 1
      %s204 = smul.addr %s203, 48
      %s205 = smul.addr %s204, 4
      %s206 = scalar_lea.vmem %s0, %s205
      %p207 = scmp.lt.s32.totalorder %s19, 0
      %s208 = scalar_select %p207, %s19, 0
      %s209 = smul.addr %s208, 2
      %s210 = scalar_lea.vmem %s1, %s209
      %p211 = scmp.lt.s32.totalorder %s19, 0
      %s212 = scalar_select %p211, %s19, 0
      %s213 = scalar_lea.vmem %s2, %s212
      %p214 = scmp.lt.s32.totalorder %s18, 1
      %s215 = scalar_select %p214, %s18, 1
      %p216 = scmp.lt.s32.totalorder %s19, 0
      %s217 = scalar_select %p216, %s19, 0
      %s218 = smul.addr %s215, 9
      %s219 = sadd.s32 %s217, %s218
      %s220 = smul.addr %s219, 4
      %s221 = scalar_lea.vmem %s3, %s220
      %v223 = vld [vmem:[%s206] sm:$0xf]
      %v224 = vld [vmem:[%s206 + $0x4] sm:$0xf]
      %v225 = vld [vmem:[%s206 + $0x8] sm:$0xf]
      %v226 = vld [vmem:[%s206 + $0xc] sm:$0xf]
      %v227 = vld [vmem:[%s206 + $0x10] sm:$0xf]
      %v228 = vld [vmem:[%s206 + $0x14] sm:$0xf]
      %v229 = vld [vmem:[%s206 + $0x18] sm:$0xf]
      %v230 = vld [vmem:[%s206 + $0x1c] sm:$0xf]
      %v231 = vld [vmem:[%s206 + $0x20] sm:$0xf]
      %v232 = vld [vmem:[%s210] sm:$0x3]
      %s233 = scalar_lea.vmem %s206, 48
      %v234 = vld [vmem:[%s233] sm:$0xf]
      %v235 = vld [vmem:[%s233 + $0x4] sm:$0xf]
      %v236 = vld [vmem:[%s233 + $0x8] sm:$0xf]
      %v237 = vld [vmem:[%s233 + $0xc] sm:$0xf]
      %v238 = vld [vmem:[%s233 + $0x10] sm:$0xf]
      %v239 = vld [vmem:[%s233 + $0x14] sm:$0xf]
      %v240 = vld [vmem:[%s233 + $0x18] sm:$0xf]
      %v241 = vld [vmem:[%s233 + $0x1c] sm:$0xf]
      %v242 = vld [vmem:[%s233 + $0x20] sm:$0xf]
      %s243 = scalar_lea.vmem %s210, 2
      %v244 = vld [vmem:[%s243] sm:$0x3]
      %v254 = vunpack.c.l.b16 %v234
      %v255 = vunpack.c.l.b16 %v235
      %v256 = vunpack.c.l.b16 %v236
      %v257 = vunpack.c.l.b16 %v237
      %v258 = vunpack.c.l.b16 %v238
      %v259 = vunpack.c.l.b16 %v239
      %v260 = vunpack.c.l.b16 %v240
      %v261 = vunpack.c.l.b16 %v241
      %v262 = vunpack.c.l.b16 %v242
      %v263 = vpack.c.b16 %v255, %v254
      %v264 = vpack.c.b16 %v257, %v256
      %v265 = vpack.c.b16 %v259, %v258
      %v266 = vpack.c.b16 %v261, %v260
      %v267 = vpack.c.b16 %v262, %v262
      %vm268 = vcmask 31744
      %v270 = vsel %vm268, %v263, 0
      %v273 = vsel %vm268, %v264, 0
      %v276 = vsel %vm268, %v265, 0
      %v279 = vsel %vm268, %v266, 0
      %v282 = vsel %vm268, %v267, 0
      %vm284 = vcmask 1041408
      %v286 = vsel %vm284, %v244, 0
      %288 = vmatpush.bf16.msra.mxu0 0
      %289 = vmatpush.bf16.msra.mxu0 0
      %290 = vmatpush.bf16.msra.mxu0 0
      %291 = vmatpush.bf16.msra.mxu0 0
      %292 = vmatpush.bf16.msra.mxu0 0
      %293 = vmatpush.bf16.msra.mxu0 0
      %294 = vmatpush.bf16.msra.mxu0 0
      %295 = vmatpush.bf16.msra.mxu0 %v286
      %296 = vmatmul.bf16.gmra.mxu0 %v270
      %v297 = vpop.f32.mrf.mxu0
      %v298 = vadd.f32 0.0, %v297
      %v299 = vpop.f32.mrf.mxu0
      %v300 = vadd.f32 0.0, %v299
      %301 = vmatmul.bf16.gmra.mxu0 %v273
      %v302 = vpop.f32.mrf.mxu0
      %v303 = vadd.f32 0.0, %v302
      %v304 = vpop.f32.mrf.mxu0
      %v305 = vadd.f32 0.0, %v304
      %306 = vmatmul.bf16.gmra.mxu0 %v276
      %v307 = vpop.f32.mrf.mxu0
      %v308 = vadd.f32 0.0, %v307
      %v309 = vpop.f32.mrf.mxu0
      %v310 = vadd.f32 0.0, %v309
      %311 = vmatmul.bf16.gmra.mxu0 %v279
      %v312 = vpop.f32.mrf.mxu0
      %v313 = vadd.f32 0.0, %v312
      %v314 = vpop.f32.mrf.mxu0
      %v315 = vadd.f32 0.0, %v314
      %316 = vmatmul.bf16.gmra.mxu0 %v282
      %v317 = vpop.f32.mrf.mxu0
      %v318 = vadd.f32 0.0, %v317
      %v319 = vpop.f32.mrf.mxu0
      %320 = vdwg.mxu0
      %v330 = vunpack.c.l.b16 %v223
      %v331 = vunpack.c.l.b16 %v224
      %v332 = vunpack.c.l.b16 %v225
      %v333 = vunpack.c.l.b16 %v226
      %v334 = vunpack.c.l.b16 %v227
      %v335 = vunpack.c.l.b16 %v228
      %v336 = vunpack.c.l.b16 %v229
      %v337 = vunpack.c.l.b16 %v230
      %v338 = vunpack.c.l.b16 %v231
      %v339 = vpack.c.b16 %v331, %v330
      %v340 = vpack.c.b16 %v333, %v332
      %v341 = vpack.c.b16 %v335, %v334
      %v342 = vpack.c.b16 %v337, %v336
      %v343 = vpack.c.b16 %v338, %v338
      %v345 = vsel %vm268, %v339, 0
      %v348 = vsel %vm268, %v340, 0
      %v351 = vsel %vm268, %v341, 0
      %v354 = vsel %vm268, %v342, 0
      %v357 = vsel %vm268, %v343, 0
      %v360 = vsel %vm284, %v232, 0
      %362 = vmatpush.bf16.msra.mxu0 0
      %363 = vmatpush.bf16.msra.mxu0 0
      %364 = vmatpush.bf16.msra.mxu0 0
      %365 = vmatpush.bf16.msra.mxu0 0
      %366 = vmatpush.bf16.msra.mxu0 0
      %367 = vmatpush.bf16.msra.mxu0 0
      %368 = vmatpush.bf16.msra.mxu0 0
      %369 = vmatpush.bf16.msra.mxu0 %v360
      %370 = vmatmul.bf16.gmra.mxu0 %v345
      %v371 = vpop.f32.mrf.mxu0
      %v372 = vadd.f32 %v298, %v371
      %v373 = vpop.f32.mrf.mxu0
      %v374 = vadd.f32 %v300, %v373
      %375 = vmatmul.bf16.gmra.mxu0 %v348
      %v376 = vpop.f32.mrf.mxu0
      %v377 = vadd.f32 %v303, %v376
      %v378 = vpop.f32.mrf.mxu0
      %v379 = vadd.f32 %v305, %v378
      %380 = vmatmul.bf16.gmra.mxu0 %v351
      %v381 = vpop.f32.mrf.mxu0
      %v382 = vadd.f32 %v308, %v381
      %v383 = vpop.f32.mrf.mxu0
      %v384 = vadd.f32 %v310, %v383
      %385 = vmatmul.bf16.gmra.mxu0 %v354
      %v386 = vpop.f32.mrf.mxu0
      %v387 = vadd.f32 %v313, %v386
      %v388 = vpop.f32.mrf.mxu0
      %v389 = vadd.f32 %v315, %v388
      %390 = vmatmul.bf16.gmra.mxu0 %v357
      %v391 = vpop.f32.mrf.mxu0
      %v392 = vadd.f32 %v318, %v391
      %v393 = vpop.f32.mrf.mxu0
      %394 = vdwg.mxu0
      %v395 = vld [vmem:[%s206] sm:$0xf]
      %v396 = vld [vmem:[%s206 + $0x4] sm:$0xf]
      %v397 = vld [vmem:[%s206 + $0x8] sm:$0xf]
      %v398 = vld [vmem:[%s206 + $0xc] sm:$0xf]
      %v399 = vld [vmem:[%s206 + $0x10] sm:$0xf]
      %v400 = vld [vmem:[%s206 + $0x14] sm:$0xf]
      %v401 = vld [vmem:[%s206 + $0x18] sm:$0xf]
      %v402 = vld [vmem:[%s206 + $0x1c] sm:$0xf]
      %v403 = vld [vmem:[%s206 + $0x20] sm:$0xf]
      %v404 = vld [vmem:[%s206 + $0x24] sm:$0x1]
      %s405 = scalar_lea.vmem %s210, 4
      %v406 = vld [vmem:[%s405] sm:$0x3]
      %v417 = vunpack.c.l.b16 %v395
      %v418 = vunpack.c.l.b16 %v396
      %v419 = vunpack.c.l.b16 %v397
      %v420 = vunpack.c.l.b16 %v398
      %v421 = vunpack.c.l.b16 %v399
      %v422 = vunpack.c.l.b16 %v400
      %v423 = vunpack.c.l.b16 %v401
      %v424 = vunpack.c.l.b16 %v402
      %v425 = vunpack.c.l.b16 %v403
      %v426 = vunpack.c.l.b16 %v404
      %v427 = vpack.c.b16 %v418, %v417
      %v428 = vpack.c.b16 %v420, %v419
      %v429 = vpack.c.b16 %v422, %v421
      %v430 = vpack.c.b16 %v424, %v423
      %v431 = vpack.c.b16 %v426, %v425
      %vm432 = vsmask.f32 7424
      %v434 = vshrl.u32 %v427, 16
      %v436 = vshll.u32 %v427, 16
      %v438 = vrot.slane %v436, 1
      %v439 = vor.u32 %v434, %v438
      %v441 = vshll.u32 %v428, 16
      %v443 = vrot.slane %v441, 1
      %v444 = vsel %vm432, %v439, %v443
      %v445 = vshrl.u32 %v428, 16
      %v447 = vor.u32 %v445, %v443
      %v449 = vshll.u32 %v429, 16
      %v451 = vrot.slane %v449, 1
      %v452 = vsel %vm432, %v447, %v451
      %v453 = vshrl.u32 %v429, 16
      %v455 = vor.u32 %v453, %v451
      %v457 = vshll.u32 %v430, 16
      %v459 = vrot.slane %v457, 1
      %v460 = vsel %vm432, %v455, %v459
      %v461 = vshrl.u32 %v430, 16
      %v463 = vor.u32 %v461, %v459
      %v465 = vshll.u32 %v431, 16
      %v467 = vrot.slane %v465, 1
      %v468 = vsel %vm432, %v463, %v467
      %v469 = vshrl.u32 %v431, 16
      %v471 = vor.u32 %v469, %v467
      %v473 = vsel %vm268, %v444, 0
      %v476 = vsel %vm268, %v452, 0
      %v479 = vsel %vm268, %v460, 0
      %v482 = vsel %vm268, %v468, 0
      %v485 = vsel %vm268, %v471, 0
      %v488 = vsel %vm284, %v406, 0
      %490 = vmatpush.bf16.msra.mxu0 0
      %491 = vmatpush.bf16.msra.mxu0 0
      %492 = vmatpush.bf16.msra.mxu0 0
      %493 = vmatpush.bf16.msra.mxu0 0
      %494 = vmatpush.bf16.msra.mxu0 0
      %495 = vmatpush.bf16.msra.mxu0 0
      %496 = vmatpush.bf16.msra.mxu0 0
      %497 = vmatpush.bf16.msra.mxu0 %v488
      %498 = vmatmul.bf16.gmra.mxu0 %v473
      %v499 = vpop.f32.mrf.mxu0
      %v500 = vadd.f32 0.0, %v499
      %v501 = vpop.f32.mrf.mxu0
      %v502 = vadd.f32 0.0, %v501
      %503 = vmatmul.bf16.gmra.mxu0 %v476
      %v504 = vpop.f32.mrf.mxu0
      %v505 = vadd.f32 0.0, %v504
      %v506 = vpop.f32.mrf.mxu0
      %v507 = vadd.f32 0.0, %v506
      %508 = vmatmul.bf16.gmra.mxu0 %v479
      %v509 = vpop.f32.mrf.mxu0
      %v510 = vadd.f32 0.0, %v509
      %v511 = vpop.f32.mrf.mxu0
      %v512 = vadd.f32 0.0, %v511
      %513 = vmatmul.bf16.gmra.mxu0 %v482
      %v514 = vpop.f32.mrf.mxu0
      %v515 = vadd.f32 0.0, %v514
      %v516 = vpop.f32.mrf.mxu0
      %v517 = vadd.f32 0.0, %v516
      %518 = vmatmul.bf16.gmra.mxu0 %v485
      %v519 = vpop.f32.mrf.mxu0
      %v520 = vadd.f32 0.0, %v519
      %v521 = vpop.f32.mrf.mxu0
      %522 = vdwg.mxu0
      %v523 = vadd.f32 %v372, %v500
      %v524 = vadd.f32 %v374, %v502
      %v525 = vadd.f32 %v377, %v505
      %v526 = vadd.f32 %v379, %v507
      %v527 = vadd.f32 %v382, %v510
      %v528 = vadd.f32 %v384, %v512
      %v529 = vadd.f32 %v387, %v515
      %v530 = vadd.f32 %v389, %v517
      %v531 = vadd.f32 %v392, %v520
      %s532 = scalar_lea.vmem %s206, 96
      %v533 = vld [vmem:[%s532] sm:$0xf]
      %v534 = vld [vmem:[%s532 + $0x4] sm:$0xf]
      %v535 = vld [vmem:[%s532 + $0x8] sm:$0xf]
      %v536 = vld [vmem:[%s532 + $0xc] sm:$0xf]
      %v537 = vld [vmem:[%s532 + $0x10] sm:$0xf]
      %v538 = vld [vmem:[%s532 + $0x14] sm:$0xf]
      %v539 = vld [vmem:[%s532 + $0x18] sm:$0xf]
      %v540 = vld [vmem:[%s532 + $0x1c] sm:$0xf]
      %v541 = vld [vmem:[%s532 + $0x20] sm:$0xf]
      %s542 = scalar_lea.vmem %s210, 6
      %v543 = vld [vmem:[%s542] sm:$0x3]
      %v553 = vunpack.c.l.b16 %v533
      %v554 = vunpack.c.l.b16 %v534
      %v555 = vunpack.c.l.b16 %v535
      %v556 = vunpack.c.l.b16 %v536
      %v557 = vunpack.c.l.b16 %v537
      %v558 = vunpack.c.l.b16 %v538
      %v559 = vunpack.c.l.b16 %v539
      %v560 = vunpack.c.l.b16 %v540
      %v561 = vunpack.c.l.b16 %v541
      %v562 = vpack.c.b16 %v554, %v553
      %v563 = vpack.c.b16 %v556, %v555
      %v564 = vpack.c.b16 %v558, %v557
      %v565 = vpack.c.b16 %v560, %v559
      %v566 = vpack.c.b16 %v561, %v561
      %v568 = vsel %vm268, %v562, 0
      %v571 = vsel %vm268, %v563, 0
      %v574 = vsel %vm268, %v564, 0
      %v577 = vsel %vm268, %v565, 0
      %v580 = vsel %vm268, %v566, 0
      %v583 = vsel %vm284, %v543, 0
      %585 = vmatpush.bf16.msra.mxu0 0
      %586 = vmatpush.bf16.msra.mxu0 0
      %587 = vmatpush.bf16.msra.mxu0 0
      %588 = vmatpush.bf16.msra.mxu0 0
      %589 = vmatpush.bf16.msra.mxu0 0
      %590 = vmatpush.bf16.msra.mxu0 0
      %591 = vmatpush.bf16.msra.mxu0 0
      %592 = vmatpush.bf16.msra.mxu0 %v583
      %593 = vmatmul.bf16.gmra.mxu0 %v568
      %v594 = vpop.f32.mrf.mxu0
      %v595 = vadd.f32 0.0, %v594
      %v596 = vpop.f32.mrf.mxu0
      %v597 = vadd.f32 0.0, %v596
      %598 = vmatmul.bf16.gmra.mxu0 %v571
      %v599 = vpop.f32.mrf.mxu0
      %v600 = vadd.f32 0.0, %v599
      %v601 = vpop.f32.mrf.mxu0
      %v602 = vadd.f32 0.0, %v601
      %603 = vmatmul.bf16.gmra.mxu0 %v574
      %v604 = vpop.f32.mrf.mxu0
      %v605 = vadd.f32 0.0, %v604
      %v606 = vpop.f32.mrf.mxu0
      %v607 = vadd.f32 0.0, %v606
      %608 = vmatmul.bf16.gmra.mxu0 %v577
      %v609 = vpop.f32.mrf.mxu0
      %v610 = vadd.f32 0.0, %v609
      %v611 = vpop.f32.mrf.mxu0
      %v612 = vadd.f32 0.0, %v611
      %613 = vmatmul.bf16.gmra.mxu0 %v580
      %v614 = vpop.f32.mrf.mxu0
      %v615 = vadd.f32 0.0, %v614
      %v616 = vpop.f32.mrf.mxu0
      %617 = vdwg.mxu0
      %v618 = vadd.f32 %v523, %v595
      %v619 = vadd.f32 %v524, %v597
      %v620 = vadd.f32 %v525, %v600
      %v621 = vadd.f32 %v526, %v602
      %v622 = vadd.f32 %v527, %v605
      %v623 = vadd.f32 %v528, %v607
      %v624 = vadd.f32 %v529, %v610
      %v625 = vadd.f32 %v530, %v612
      %v626 = vadd.f32 %v531, %v615
      %s627 = scalar_lea.vmem %s206, 144
      %v628 = vld [vmem:[%s627] sm:$0xf]
      %v629 = vld [vmem:[%s627 + $0x4] sm:$0xf]
      %v630 = vld [vmem:[%s627 + $0x8] sm:$0xf]
      %v631 = vld [vmem:[%s627 + $0xc] sm:$0xf]
      %v632 = vld [vmem:[%s627 + $0x10] sm:$0xf]
      %v633 = vld [vmem:[%s627 + $0x14] sm:$0xf]
      %v634 = vld [vmem:[%s627 + $0x18] sm:$0xf]
      %v635 = vld [vmem:[%s627 + $0x1c] sm:$0xf]
      %v636 = vld [vmem:[%s627 + $0x20] sm:$0xf]
      %s637 = scalar_lea.vmem %s210, 8
      %v638 = vld [vmem:[%s637] sm:$0x3]
      %v648 = vunpack.c.l.b16 %v628
      %v649 = vunpack.c.l.b16 %v629
      %v650 = vunpack.c.l.b16 %v630
      %v651 = vunpack.c.l.b16 %v631
      %v652 = vunpack.c.l.b16 %v632
      %v653 = vunpack.c.l.b16 %v633
      %v654 = vunpack.c.l.b16 %v634
      %v655 = vunpack.c.l.b16 %v635
      %v656 = vunpack.c.l.b16 %v636
      %v657 = vpack.c.b16 %v649, %v648
      %v658 = vpack.c.b16 %v651, %v650
      %v659 = vpack.c.b16 %v653, %v652
      %v660 = vpack.c.b16 %v655, %v654
      %v661 = vpack.c.b16 %v656, %v656
      %v663 = vsel %vm268, %v657, 0
      %v666 = vsel %vm268, %v658, 0
      %v669 = vsel %vm268, %v659, 0
      %v672 = vsel %vm268, %v660, 0
      %v675 = vsel %vm268, %v661, 0
      %v678 = vsel %vm284, %v638, 0
      %680 = vmatpush.bf16.msra.mxu0 0
      %681 = vmatpush.bf16.msra.mxu0 0
      %682 = vmatpush.bf16.msra.mxu0 0
      %683 = vmatpush.bf16.msra.mxu0 0
      %684 = vmatpush.bf16.msra.mxu0 0
      %685 = vmatpush.bf16.msra.mxu0 0
      %686 = vmatpush.bf16.msra.mxu0 0
      %687 = vmatpush.bf16.msra.mxu0 %v678
      %688 = vmatmul.bf16.gmra.mxu0 %v663
      %v689 = vpop.f32.mrf.mxu0
      %v690 = vadd.f32 0.0, %v689
      %v691 = vpop.f32.mrf.mxu0
      %v692 = vadd.f32 0.0, %v691
      %693 = vmatmul.bf16.gmra.mxu0 %v666
      %v694 = vpop.f32.mrf.mxu0
      %v695 = vadd.f32 0.0, %v694
      %v696 = vpop.f32.mrf.mxu0
      %v697 = vadd.f32 0.0, %v696
      %698 = vmatmul.bf16.gmra.mxu0 %v669
      %v699 = vpop.f32.mrf.mxu0
      %v700 = vadd.f32 0.0, %v699
      %v701 = vpop.f32.mrf.mxu0
      %v702 = vadd.f32 0.0, %v701
      %703 = vmatmul.bf16.gmra.mxu0 %v672
      %v704 = vpop.f32.mrf.mxu0
      %v705 = vadd.f32 0.0, %v704
      %v706 = vpop.f32.mrf.mxu0
      %v707 = vadd.f32 0.0, %v706
      %708 = vmatmul.bf16.gmra.mxu0 %v675
      %v709 = vpop.f32.mrf.mxu0
      %v710 = vadd.f32 0.0, %v709
      %v711 = vpop.f32.mrf.mxu0
      %712 = vdwg.mxu0
      %v713 = vadd.f32 %v618, %v690
      %v714 = vadd.f32 %v619, %v692
      %v715 = vadd.f32 %v620, %v695
      %v716 = vadd.f32 %v621, %v697
      %v717 = vadd.f32 %v622, %v700
      %v718 = vadd.f32 %v623, %v702
      %v719 = vadd.f32 %v624, %v705
      %v720 = vadd.f32 %v625, %v707
      %v721 = vadd.f32 %v626, %v710
      %v722 = vld [vmem:[%s532] sm:$0xf]
      %v723 = vld [vmem:[%s532 + $0x4] sm:$0xf]
      %v724 = vld [vmem:[%s532 + $0x8] sm:$0xf]
      %v725 = vld [vmem:[%s532 + $0xc] sm:$0xf]
      %v726 = vld [vmem:[%s532 + $0x10] sm:$0xf]
      %v727 = vld [vmem:[%s532 + $0x14] sm:$0xf]
      %v728 = vld [vmem:[%s532 + $0x18] sm:$0xf]
      %v729 = vld [vmem:[%s532 + $0x1c] sm:$0xf]
      %v730 = vld [vmem:[%s532 + $0x20] sm:$0xf]
      %v731 = vld [vmem:[%s532 + $0x24] sm:$0x1]
      %s732 = scalar_lea.vmem %s210, 10
      %v733 = vld [vmem:[%s732] sm:$0x3]
      %v744 = vunpack.c.l.b16 %v722
      %v745 = vunpack.c.l.b16 %v723
      %v746 = vunpack.c.l.b16 %v724
      %v747 = vunpack.c.l.b16 %v725
      %v748 = vunpack.c.l.b16 %v726
      %v749 = vunpack.c.l.b16 %v727
      %v750 = vunpack.c.l.b16 %v728
      %v751 = vunpack.c.l.b16 %v729
      %v752 = vunpack.c.l.b16 %v730
      %v753 = vunpack.c.l.b16 %v731
      %v754 = vpack.c.b16 %v745, %v744
      %v755 = vpack.c.b16 %v747, %v746
      %v756 = vpack.c.b16 %v749, %v748
      %v757 = vpack.c.b16 %v751, %v750
      %v758 = vpack.c.b16 %v753, %v752
      %v760 = vshrl.u32 %v754, 16
      %v762 = vshll.u32 %v754, 16
      %v764 = vrot.slane %v762, 1
      %v765 = vor.u32 %v760, %v764
      %v767 = vshll.u32 %v755, 16
      %v769 = vrot.slane %v767, 1
      %v770 = vsel %vm432, %v765, %v769
      %v771 = vshrl.u32 %v755, 16
      %v773 = vor.u32 %v771, %v769
      %v775 = vshll.u32 %v756, 16
      %v777 = vrot.slane %v775, 1
      %v778 = vsel %vm432, %v773, %v777
      %v779 = vshrl.u32 %v756, 16
      %v781 = vor.u32 %v779, %v777
      %v783 = vshll.u32 %v757, 16
      %v785 = vrot.slane %v783, 1
      %v786 = vsel %vm432, %v781, %v785
      %v787 = vshrl.u32 %v757, 16
      %v789 = vor.u32 %v787, %v785
      %v791 = vshll.u32 %v758, 16
      %v793 = vrot.slane %v791, 1
      %v794 = vsel %vm432, %v789, %v793
      %v795 = vshrl.u32 %v758, 16
      %v797 = vor.u32 %v795, %v793
      %v799 = vsel %vm268, %v770, 0
      %v802 = vsel %vm268, %v778, 0
      %v805 = vsel %vm268, %v786, 0
      %v808 = vsel %vm268, %v794, 0
      %v811 = vsel %vm268, %v797, 0
      %v814 = vsel %vm284, %v733, 0
      %816 = vmatpush.bf16.msra.mxu0 0
      %817 = vmatpush.bf16.msra.mxu0 0
      %818 = vmatpush.bf16.msra.mxu0 0
      %819 = vmatpush.bf16.msra.mxu0 0
      %820 = vmatpush.bf16.msra.mxu0 0
      %821 = vmatpush.bf16.msra.mxu0 0
      %822 = vmatpush.bf16.msra.mxu0 0
      %823 = vmatpush.bf16.msra.mxu0 %v814
      %824 = vmatmul.bf16.gmra.mxu0 %v799
      %v825 = vpop.f32.mrf.mxu0
      %v826 = vadd.f32 0.0, %v825
      %v827 = vpop.f32.mrf.mxu0
      %v828 = vadd.f32 0.0, %v827
      %829 = vmatmul.bf16.gmra.mxu0 %v802
      %v830 = vpop.f32.mrf.mxu0
      %v831 = vadd.f32 0.0, %v830
      %v832 = vpop.f32.mrf.mxu0
      %v833 = vadd.f32 0.0, %v832
      %834 = vmatmul.bf16.gmra.mxu0 %v805
      %v835 = vpop.f32.mrf.mxu0
      %v836 = vadd.f32 0.0, %v835
      %v837 = vpop.f32.mrf.mxu0
      %v838 = vadd.f32 0.0, %v837
      %839 = vmatmul.bf16.gmra.mxu0 %v808
      %v840 = vpop.f32.mrf.mxu0
      %v841 = vadd.f32 0.0, %v840
      %v842 = vpop.f32.mrf.mxu0
      %v843 = vadd.f32 0.0, %v842
      %844 = vmatmul.bf16.gmra.mxu0 %v811
      %v845 = vpop.f32.mrf.mxu0
      %v846 = vadd.f32 0.0, %v845
      %v847 = vpop.f32.mrf.mxu0
      %848 = vdwg.mxu0
      %v849 = vadd.f32 %v713, %v826
      %v850 = vadd.f32 %v714, %v828
      %v851 = vadd.f32 %v715, %v831
      %v852 = vadd.f32 %v716, %v833
      %v853 = vadd.f32 %v717, %v836
      %v854 = vadd.f32 %v718, %v838
      %v855 = vadd.f32 %v719, %v841
      %v856 = vadd.f32 %v720, %v843
      %v857 = vadd.f32 %v721, %v846
      %v858 = vld [vmem:[%s206 + $0x4] sm:$0xf]
      %v859 = vld [vmem:[%s206 + $0x8] sm:$0xf]
      %v860 = vld [vmem:[%s206 + $0xc] sm:$0xf]
      %v861 = vld [vmem:[%s206 + $0x10] sm:$0xf]
      %v862 = vld [vmem:[%s206 + $0x14] sm:$0xf]
      %v863 = vld [vmem:[%s206 + $0x18] sm:$0xf]
      %v864 = vld [vmem:[%s206 + $0x1c] sm:$0xf]
      %v865 = vld [vmem:[%s206 + $0x20] sm:$0xf]
      %v866 = vld [vmem:[%s206 + $0x24] sm:$0xf]
      %v867 = vld [vmem:[%s206 + $0x28] sm:$0x1]
      %s868 = scalar_lea.vmem %s210, 12
      %v869 = vld [vmem:[%s868] sm:$0x3]
      %v880 = vunpack.c.l.b16 %v858
      %v881 = vunpack.c.l.b16 %v859
      %v882 = vunpack.c.l.b16 %v860
      %v883 = vunpack.c.l.b16 %v861
      %v884 = vunpack.c.l.b16 %v862
      %v885 = vunpack.c.l.b16 %v863
      %v886 = vunpack.c.l.b16 %v864
      %v887 = vunpack.c.l.b16 %v865
      %v888 = vunpack.c.l.b16 %v866
      %v889 = vunpack.c.l.b16 %v867
      %v890 = vpack.c.b16 %v881, %v880
      %v891 = vpack.c.b16 %v883, %v882
      %v892 = vpack.c.b16 %v885, %v884
      %v893 = vpack.c.b16 %v887, %v886
      %v894 = vpack.c.b16 %v889, %v888
      %v896 = vshrl.u32 %v890, 16
      %v898 = vshll.u32 %v890, 16
      %v900 = vrot.slane %v898, 1
      %v901 = vor.u32 %v896, %v900
      %v903 = vshll.u32 %v891, 16
      %v905 = vrot.slane %v903, 1
      %v906 = vsel %vm432, %v901, %v905
      %v907 = vshrl.u32 %v891, 16
      %v909 = vor.u32 %v907, %v905
      %v911 = vshll.u32 %v892, 16
      %v913 = vrot.slane %v911, 1
      %v914 = vsel %vm432, %v909, %v913
      %v915 = vshrl.u32 %v892, 16
      %v917 = vor.u32 %v915, %v913
      %v919 = vshll.u32 %v893, 16
      %v921 = vrot.slane %v919, 1
      %v922 = vsel %vm432, %v917, %v921
      %v923 = vshrl.u32 %v893, 16
      %v925 = vor.u32 %v923, %v921
      %v927 = vshll.u32 %v894, 16
      %v929 = vrot.slane %v927, 1
      %v930 = vsel %vm432, %v925, %v929
      %v931 = vshrl.u32 %v894, 16
      %v933 = vor.u32 %v931, %v929
      %v935 = vsel %vm268, %v906, 0
      %v938 = vsel %vm268, %v914, 0
      %v941 = vsel %vm268, %v922, 0
      %v944 = vsel %vm268, %v930, 0
      %v947 = vsel %vm268, %v933, 0
      %v950 = vsel %vm284, %v869, 0
      %952 = vmatpush.bf16.msra.mxu0 0
      %953 = vmatpush.bf16.msra.mxu0 0
      %954 = vmatpush.bf16.msra.mxu0 0
      %955 = vmatpush.bf16.msra.mxu0 0
      %956 = vmatpush.bf16.msra.mxu0 0
      %957 = vmatpush.bf16.msra.mxu0 0
      %958 = vmatpush.bf16.msra.mxu0 0
      %959 = vmatpush.bf16.msra.mxu0 %v950
      %960 = vmatmul.bf16.gmra.mxu0 %v935
      %v961 = vpop.f32.mrf.mxu0
      %v962 = vadd.f32 0.0, %v961
      %v963 = vpop.f32.mrf.mxu0
      %v964 = vadd.f32 0.0, %v963
      %965 = vmatmul.bf16.gmra.mxu0 %v938
      %v966 = vpop.f32.mrf.mxu0
      %v967 = vadd.f32 0.0, %v966
      %v968 = vpop.f32.mrf.mxu0
      %v969 = vadd.f32 0.0, %v968
      %970 = vmatmul.bf16.gmra.mxu0 %v941
      %v971 = vpop.f32.mrf.mxu0
      %v972 = vadd.f32 0.0, %v971
      %v973 = vpop.f32.mrf.mxu0
      %v974 = vadd.f32 0.0, %v973
      %975 = vmatmul.bf16.gmra.mxu0 %v944
      %v976 = vpop.f32.mrf.mxu0
      %v977 = vadd.f32 0.0, %v976
      %v978 = vpop.f32.mrf.mxu0
      %v979 = vadd.f32 0.0, %v978
      %980 = vmatmul.bf16.gmra.mxu0 %v947
      %v981 = vpop.f32.mrf.mxu0
      %v982 = vadd.f32 0.0, %v981
      %v983 = vpop.f32.mrf.mxu0
      %984 = vdwg.mxu0
      %v985 = vadd.f32 %v849, %v962
      %v986 = vadd.f32 %v850, %v964
      %v987 = vadd.f32 %v851, %v967
      %v988 = vadd.f32 %v852, %v969
      %v989 = vadd.f32 %v853, %v972
      %v990 = vadd.f32 %v854, %v974
      %v991 = vadd.f32 %v855, %v977
      %v992 = vadd.f32 %v856, %v979
      %v993 = vadd.f32 %v857, %v982
      %v994 = vld [vmem:[%s233 + $0x4] sm:$0xf]
      %v995 = vld [vmem:[%s233 + $0x8] sm:$0xf]
      %v996 = vld [vmem:[%s233 + $0xc] sm:$0xf]
      %v997 = vld [vmem:[%s233 + $0x10] sm:$0xf]
      %v998 = vld [vmem:[%s233 + $0x14] sm:$0xf]
      %v999 = vld [vmem:[%s233 + $0x18] sm:$0xf]
      %v1000 = vld [vmem:[%s233 + $0x1c] sm:$0xf]
      %v1001 = vld [vmem:[%s233 + $0x20] sm:$0xf]
      %v1002 = vld [vmem:[%s233 + $0x24] sm:$0xf]
      %v1003 = vld [vmem:[%s233 + $0x28] sm:$0x1]
      %s1004 = scalar_lea.vmem %s210, 14
      %v1005 = vld [vmem:[%s1004] sm:$0x3]
      %v1016 = vunpack.c.l.b16 %v994
      %v1017 = vunpack.c.l.b16 %v995
      %v1018 = vunpack.c.l.b16 %v996
      %v1019 = vunpack.c.l.b16 %v997
      %v1020 = vunpack.c.l.b16 %v998
      %v1021 = vunpack.c.l.b16 %v999
      %v1022 = vunpack.c.l.b16 %v1000
      %v1023 = vunpack.c.l.b16 %v1001
      %v1024 = vunpack.c.l.b16 %v1002
      %v1025 = vunpack.c.l.b16 %v1003
      %v1026 = vpack.c.b16 %v1017, %v1016
      %v1027 = vpack.c.b16 %v1019, %v1018
      %v1028 = vpack.c.b16 %v1021, %v1020
      %v1029 = vpack.c.b16 %v1023, %v1022
      %v1030 = vpack.c.b16 %v1025, %v1024
      %v1032 = vshrl.u32 %v1026, 16
      %v1034 = vshll.u32 %v1026, 16
      %v1036 = vrot.slane %v1034, 1
      %v1037 = vor.u32 %v1032, %v1036
      %v1039 = vshll.u32 %v1027, 16
      %v1041 = vrot.slane %v1039, 1
      %v1042 = vsel %vm432, %v1037, %v1041
      %v1043 = vshrl.u32 %v1027, 16
      %v1045 = vor.u32 %v1043, %v1041
      %v1047 = vshll.u32 %v1028, 16
      %v1049 = vrot.slane %v1047, 1
      %v1050 = vsel %vm432, %v1045, %v1049
      %v1051 = vshrl.u32 %v1028, 16
      %v1053 = vor.u32 %v1051, %v1049
      %v1055 = vshll.u32 %v1029, 16
      %v1057 = vrot.slane %v1055, 1
      %v1058 = vsel %vm432, %v1053, %v1057
      %v1059 = vshrl.u32 %v1029, 16
      %v1061 = vor.u32 %v1059, %v1057
      %v1063 = vshll.u32 %v1030, 16
      %v1065 = vrot.slane %v1063, 1
      %v1066 = vsel %vm432, %v1061, %v1065
      %v1067 = vshrl.u32 %v1030, 16
      %v1069 = vor.u32 %v1067, %v1065
      %v1071 = vsel %vm268, %v1042, 0
      %v1074 = vsel %vm268, %v1050, 0
      %v1077 = vsel %vm268, %v1058, 0
      %v1080 = vsel %vm268, %v1066, 0
      %v1083 = vsel %vm268, %v1069, 0
      %v1086 = vsel %vm284, %v1005, 0
      %1088 = vmatpush.bf16.msra.mxu0 0
      %1089 = vmatpush.bf16.msra.mxu0 0
      %1090 = vmatpush.bf16.msra.mxu0 0
      %1091 = vmatpush.bf16.msra.mxu0 0
      %1092 = vmatpush.bf16.msra.mxu0 0
      %1093 = vmatpush.bf16.msra.mxu0 0
      %1094 = vmatpush.bf16.msra.mxu0 0
      %1095 = vmatpush.bf16.msra.mxu0 %v1086
      %1096 = vmatmul.bf16.gmra.mxu0 %v1071
      %v1097 = vpop.f32.mrf.mxu0
      %v1098 = vadd.f32 0.0, %v1097
      %v1099 = vpop.f32.mrf.mxu0
      %v1100 = vadd.f32 0.0, %v1099
      %1101 = vmatmul.bf16.gmra.mxu0 %v1074
      %v1102 = vpop.f32.mrf.mxu0
      %v1103 = vadd.f32 0.0, %v1102
      %v1104 = vpop.f32.mrf.mxu0
      %v1105 = vadd.f32 0.0, %v1104
      %1106 = vmatmul.bf16.gmra.mxu0 %v1077
      %v1107 = vpop.f32.mrf.mxu0
      %v1108 = vadd.f32 0.0, %v1107
      %v1109 = vpop.f32.mrf.mxu0
      %v1110 = vadd.f32 0.0, %v1109
      %1111 = vmatmul.bf16.gmra.mxu0 %v1080
      %v1112 = vpop.f32.mrf.mxu0
      %v1113 = vadd.f32 0.0, %v1112
      %v1114 = vpop.f32.mrf.mxu0
      %v1115 = vadd.f32 0.0, %v1114
      %1116 = vmatmul.bf16.gmra.mxu0 %v1083
      %v1117 = vpop.f32.mrf.mxu0
      %v1118 = vadd.f32 0.0, %v1117
      %v1119 = vpop.f32.mrf.mxu0
      %1120 = vdwg.mxu0
      %v1121 = vadd.f32 %v985, %v1098
      %v1122 = vadd.f32 %v986, %v1100
      %v1123 = vadd.f32 %v987, %v1103
      %v1124 = vadd.f32 %v988, %v1105
      %v1125 = vadd.f32 %v989, %v1108
      %v1126 = vadd.f32 %v990, %v1110
      %v1127 = vadd.f32 %v991, %v1113
      %v1128 = vadd.f32 %v992, %v1115
      %v1129 = vadd.f32 %v993, %v1118
      %v1130 = vld [vmem:[%s206 + $0x4] sm:$0xe]
      %s1131 = scalar_lea.vmem %s210, 16
      %v1132 = vld [vmem:[%s1131] sm:$0x3]
      %v1134 = vunpack.c.l.b16 %v1130
      %v1135 = vpack.c.b16 %v881, %v1134
      %vm1136 = vcmask 1046528
      %v1137 = vrot.slane %v1135, 1
      %v1138 = vrot.slane %v891, 1
      %v1139 = vsel %vm1136, %v1137, %v1138
      %v1140 = vrot.slane %v892, 1
      %v1141 = vsel %vm1136, %v1138, %v1140
      %v1142 = vrot.slane %v893, 1
      %v1143 = vsel %vm1136, %v1140, %v1142
      %v1144 = vrot.slane %v894, 1
      %v1145 = vsel %vm1136, %v1142, %v1144
      %v1147 = vsel %vm268, %v1139, 0
      %v1150 = vsel %vm268, %v1141, 0
      %v1153 = vsel %vm268, %v1143, 0
      %v1156 = vsel %vm268, %v1145, 0
      %v1159 = vsel %vm268, %v1144, 0
      %v1162 = vsel %vm284, %v1132, 0
      %1164 = vmatpush.bf16.msra.mxu0 0
      %1165 = vmatpush.bf16.msra.mxu0 0
      %1166 = vmatpush.bf16.msra.mxu0 0
      %1167 = vmatpush.bf16.msra.mxu0 0
      %1168 = vmatpush.bf16.msra.mxu0 0
      %1169 = vmatpush.bf16.msra.mxu0 0
      %1170 = vmatpush.bf16.msra.mxu0 0
      %1171 = vmatpush.bf16.msra.mxu0 %v1162
      %1172 = vmatmul.bf16.gmra.mxu0 %v1147
      %v1173 = vpop.f32.mrf.mxu0
      %v1174 = vadd.f32 0.0, %v1173
      %v1175 = vpop.f32.mrf.mxu0
      %v1176 = vadd.f32 0.0, %v1175
      %1177 = vmatmul.bf16.gmra.mxu0 %v1150
      %v1178 = vpop.f32.mrf.mxu0
      %v1179 = vadd.f32 0.0, %v1178
      %v1180 = vpop.f32.mrf.mxu0
      %v1181 = vadd.f32 0.0, %v1180
      %1182 = vmatmul.bf16.gmra.mxu0 %v1153
      %v1183 = vpop.f32.mrf.mxu0
      %v1184 = vadd.f32 0.0, %v1183
      %v1185 = vpop.f32.mrf.mxu0
      %v1186 = vadd.f32 0.0, %v1185
      %1187 = vmatmul.bf16.gmra.mxu0 %v1156
      %v1188 = vpop.f32.mrf.mxu0
      %v1189 = vadd.f32 0.0, %v1188
      %v1190 = vpop.f32.mrf.mxu0
      %v1191 = vadd.f32 0.0, %v1190
      %1192 = vmatmul.bf16.gmra.mxu0 %v1159
      %v1193 = vpop.f32.mrf.mxu0
      %v1194 = vadd.f32 0.0, %v1193
      %v1195 = vpop.f32.mrf.mxu0
      %1196 = vdwg.mxu0
      %v1197 = vadd.f32 %v1121, %v1174
      %v1198 = vadd.f32 %v1122, %v1176
      %v1199 = vadd.f32 %v1123, %v1179
      %v1200 = vadd.f32 %v1124, %v1181
      %v1201 = vadd.f32 %v1125, %v1184
      %v1202 = vadd.f32 %v1126, %v1186
      %v1203 = vadd.f32 %v1127, %v1189
      %v1204 = vadd.f32 %v1128, %v1191
      %v1205 = vadd.f32 %v1129, %v1194
      %v1206 = vld [vmem:[%s213] sm:$0x1]
      %v1208 = vperm.slane %v1206, 0
      %v1210 = vadd.f32 %v1197, %v1208
      %v1211 = vadd.f32 %v1198, %v1208
      %v1212 = vadd.f32 %v1199, %v1208
      %v1213 = vadd.f32 %v1200, %v1208
      %v1214 = vadd.f32 %v1201, %v1208
      %v1215 = vadd.f32 %v1202, %v1208
      %v1216 = vadd.f32 %v1203, %v1208
      %v1217 = vadd.f32 %v1204, %v1208
      %v1218 = vadd.f32 %v1205, %v1208
      %v1219 = vmax.f32 %v1210, 0.0
      %v1220 = vmax.f32 %v1211, 0.0
      %v1221 = vmax.f32 %v1212, 0.0
      %v1222 = vmax.f32 %v1213, 0.0
      %v1223 = vmax.f32 %v1214, 0.0
      %v1224 = vmax.f32 %v1215, 0.0
      %v1225 = vmax.f32 %v1216, 0.0
      %v1226 = vmax.f32 %v1217, 0.0
      %v1227 = vmax.f32 %v1218, 0.0
      %v1228 = vpack.c.bf16 %v1219, %v1219
      %v1229 = vpack.c.bf16 %v1220, %v1220
      %v1230 = vpack.c.bf16 %v1221, %v1221
      %v1231 = vpack.c.bf16 %v1222, %v1222
      %v1232 = vpack.c.bf16 %v1223, %v1223
      %v1233 = vpack.c.bf16 %v1224, %v1224
      %v1234 = vpack.c.bf16 %v1225, %v1225
      %v1235 = vpack.c.bf16 %v1226, %v1226
      %v1236 = vpack.c.bf16 %v1227, %v1227
      %vm1237 = vcmask 60416
      %1238 = vst.msk [vmem:[%s221] sm:$0xf] %vm1237, %v1228
      %1239 = vst.msk [vmem:[%s221 + $0x4] sm:$0xf] %vm1237, %v1229
      %1240 = vst.msk [vmem:[%s221 + $0x8] sm:$0xf] %vm1237, %v1230
      %1241 = vst.msk [vmem:[%s221 + $0xc] sm:$0xf] %vm1237, %v1231
      %1242 = vst.msk [vmem:[%s221 + $0x10] sm:$0xf] %vm1237, %v1232
      %1243 = vst.msk [vmem:[%s221 + $0x14] sm:$0xf] %vm1237, %v1233
      %1244 = vst.msk [vmem:[%s221 + $0x18] sm:$0xf] %vm1237, %v1234
      %1245 = vst.msk [vmem:[%s221 + $0x1c] sm:$0xf] %vm1237, %v1235
      %1246 = vst.msk [vmem:[%s221 + $0x20] sm:$0xf] %vm1237, %v1236
      %p1247 = scmp.lt.s32.totalorder %s18, 1
      %s1248 = scalar_select %p1247, %s18, 1
      %p1249 = scmp.lt.s32.totalorder %s19, 0
      %s1250 = scalar_select %p1249, %s19, 0
      %s1251 = smul.addr %s1248, 9
      %s1252 = sadd.s32 %s1250, %s1251
      %s1253 = smul.addr %s1252, 4
      %s1254 = scalar_lea.vmem %s3, %s1253
      // Predicated region
      $region33: #{deeplabv3_forward.9} parent=31 // pred_check
        %p1255 = pneg %p124
      $region34: #{deeplabv3_forward.9} parent=31 // pred_check_branch
        %1257 = sbr.rel (%p1255) target = $region36
      $region35: #{deeplabv3_forward.9} parent=31 // pred_region
        _
      $region36: #{deeplabv3_forward.9} parent=31 // pred_fallthru
        _
    $region32: #{deeplabv3_forward.9} parent=5 // pred_fallthru
      _
    %p1258 = scmp.le.s32.totalorder 2, %s9
    // Predicated region
    $region37: #{deeplabv3_forward.9} parent=5 // pred_check
      %p1259 = pneg %p1258
    $region38: #{deeplabv3_forward.9} parent=5 // pred_check_branch
      %1261 = sbr.rel (%p1259) target = $region40
    $region39: #{deeplabv3_forward.9} parent=5 // pred_region
      %s1262 = ssub.s32 %s9, 2
      // Predicated region
      $region41: #{deeplabv3_forward.9} parent=39 // pred_check
        %p1263 = pneg %p130
      $region42: #{deeplabv3_forward.9} parent=39 // pred_check_branch
        %1265 = sbr.rel (%p1263) target = $region44
      $region43: #{deeplabv3_forward.9} parent=39 // pred_region
        %p1266 = scmp.lt.s32.totalorder %s20, 1
        %s1267 = scalar_select %p1266, %s20, 1
        %p1268 = scmp.lt.s32.totalorder %s21, 0
        %s1269 = scalar_select %p1268, %s21, 0
        %s1270 = smul.addr %s1267, 9
        %s1271 = sadd.s32 %s1269, %s1270
        %s1272 = smul.addr %s1271, 4
        %s1273 = scalar_lea.vmem %s3, %s1272
      $region44: #{deeplabv3_forward.9} parent=39 // pred_fallthru
        _
    $region40: #{deeplabv3_forward.9} parent=5 // pred_fallthru
      _
  $region6: #{deeplabv3_forward.9} parent=0 // loop_footer
    %s13 = sadd.s32 1, %s9
  $region7: #{deeplabv3_forward.9} parent=0 // loop_footer_branch
    %8 = sbr.rel target = $region3
  $region8: #{deeplabv3_forward.9} parent=0 // loop_exit
    _

// kernel: deeplabv3_forward.12
$region0: #{deeplabv3_forward.12}
  #allocation0 [shape = 'u32[]', space=smem, size = 0x4, offset = 0x4, fixed_abs, tag = 'smem constant byte address 0x4 - core index']
  #allocation1 [shape = 'u32[72,128]{1,0:T(1,128)}', space=vmem, size = 0x9000, scoped, tag = 'internal scratch']
  %s0 = inlined_call_operand.vmem [shape: bf16[2,1,20,32], index: 0, kind: input, shape index: {}]
  %s1 = inlined_call_operand.vmem [shape: bf16[9,32,32], index: 1, kind: input, shape index: {}]
  %s2 = inlined_call_operand.vmem [shape: f32[1,32], index: 2, kind: input, shape index: {}]
  %s3 = inlined_call_operand.vmem [shape: bf16[32,5], index: 3, kind: input, shape index: {}]
  %s4 = inlined_call_operand.vmem [shape: f32[1,5], index: 4, kind: input, shape index: {}]
  %s5 = inlined_call_operand.vmem [shape: bf16[2,8,5], index: 5, kind: output, shape index: {}]
  %s6 = sld [smem:[#allocation0]]
  $region53: #{deeplabv3_forward.12} parent=0
    _
  %s8 = ssub.s32 1, %s6
  %s9 = scalar_select 0, %s8, %s6
  loop: start=0, step=1, limit=4
  $region2: #{deeplabv3_forward.12} parent=0 // loop_pre_header
    _
  $region3: #{deeplabv3_forward.12} parent=0 // loop_header
    %s11 = sphi 0, %s15
    %p12 = scmp.ge.s32.totalorder %s11, 4
    %s21 = sphi 0, %s23
    %s24 = sphi 0, %s21
    %s25 = sphi 0, %s24
    %s41 = sphi 0, %s25
    %s45 = sphi 0, %s45
    %s47 = sphi 0, %s45
    %s48 = sphi 0, %s47
    %s62 = sphi 0, %s48
    %s66 = sphi 0, %s66
    %s68 = sphi 0, %s66
    %s69 = sphi 0, %s68
    %s83 = sphi 0, %s69
    %s87 = sphi 0, %s87
    %s89 = sphi 0, %s87
    %s90 = sphi 0, %s89
    %s104 = sphi 0, %s90
    %s108 = sphi 0, %s108
    %s110 = sphi 0, %s108
    %s111 = sphi 0, %s110
    %s125 = sphi 0, %s111
    %s131 = sphi 0, %s133
    %s134 = sphi 0, %s131
    %s135 = sphi 0, %s134
    %s151 = sphi 0, %s135
  $region4: #{deeplabv3_forward.12} parent=0 // loop_header_branch
    %14 = sbr.rel (%p12) target = $region8
  $region5: #{deeplabv3_forward.12} parent=0 // loop_body
    %s16 = ssub.s32 %s11, 1
    %s17 = ssub.s32 %s11, 2
    %s18 = sadd.s32 %s11, 1
    %s19 = ssub.s32 %s11, %s18
    %p20 = scmp.eq.s32.totalorder %s19, 0
    %s22 = sadd.s32 %s21, 1
    %s23 = scalar_select %p20, %s21, %s22
    %p26 = pneg %p20
    %p27 = scmp.eq.s32.totalorder %s11, 1
    %p28 = por %p26, %p27
    %p29 = scmp.ne.s32.totalorder %s21, %s24
    %p30 = scmp.eq.s32.totalorder %s11, 0
    %p31 = por %p29, %p30
    %p32 = scmp.ne.s32.totalorder %s21, %s24
    %p33 = scmp.eq.s32.totalorder %s16, 1
    %p34 = por %p32, %p33
    %p35 = scmp.ne.s32.totalorder %s24, %s25
    %p36 = scmp.eq.s32.totalorder %s16, 0
    %p37 = por %p35, %p36
    %p38 = scmp.ne.s32.totalorder %s24, %s25
    %p39 = scmp.eq.s32.totalorder %s17, 1
    %p40 = por %p38, %p39
    %p42 = scmp.ne.s32.totalorder %s25, %s41
    %p43 = scmp.eq.s32.totalorder %s17, 0
    %p44 = por %p42, %p43
    %s46 = sadd.s32 %s45, 1
    %p49 = scmp.eq.s32.totalorder %s11, 1
    %p50 = scmp.ne.s32.totalorder %s45, %s47
    %p51 = scmp.eq.s32.totalorder %s11, 0
    %p52 = por %p50, %p51
    %p53 = scmp.ne.s32.totalorder %s45, %s47
    %p54 = scmp.eq.s32.totalorder %s16, 1
    %p55 = por %p53, %p54
    %p56 = scmp.ne.s32.totalorder %s47, %s48
    %p57 = scmp.eq.s32.totalorder %s16, 0
    %p58 = por %p56, %p57
    %p59 = scmp.ne.s32.totalorder %s47, %s48
    %p60 = scmp.eq.s32.totalorder %s17, 1
    %p61 = por %p59, %p60
    %p63 = scmp.ne.s32.totalorder %s48, %s62
    %p64 = scmp.eq.s32.totalorder %s17, 0
    %p65 = por %p63, %p64
    %s67 = sadd.s32 %s66, 1
    %p70 = scmp.eq.s32.totalorder %s11, 1
    %p71 = scmp.ne.s32.totalorder %s66, %s68
    %p72 = scmp.eq.s32.totalorder %s11, 0
    %p73 = por %p71, %p72
    %p74 = scmp.ne.s32.totalorder %s66, %s68
    %p75 = scmp.eq.s32.totalorder %s16, 1
    %p76 = por %p74, %p75
    %p77 = scmp.ne.s32.totalorder %s68, %s69
    %p78 = scmp.eq.s32.totalorder %s16, 0
    %p79 = por %p77, %p78
    %p80 = scmp.ne.s32.totalorder %s68, %s69
    %p81 = scmp.eq.s32.totalorder %s17, 1
    %p82 = por %p80, %p81
    %p84 = scmp.ne.s32.totalorder %s69, %s83
    %p85 = scmp.eq.s32.totalorder %s17, 0
    %p86 = por %p84, %p85
    %s88 = sadd.s32 %s87, 1
    %p91 = scmp.eq.s32.totalorder %s11, 1
    %p92 = scmp.ne.s32.totalorder %s87, %s89
    %p93 = scmp.eq.s32.totalorder %s11, 0
    %p94 = por %p92, %p93
    %p95 = scmp.ne.s32.totalorder %s87, %s89
    %p96 = scmp.eq.s32.totalorder %s16, 1
    %p97 = por %p95, %p96
    %p98 = scmp.ne.s32.totalorder %s89, %s90
    %p99 = scmp.eq.s32.totalorder %s16, 0
    %p100 = por %p98, %p99
    %p101 = scmp.ne.s32.totalorder %s89, %s90
    %p102 = scmp.eq.s32.totalorder %s17, 1
    %p103 = por %p101, %p102
    %p105 = scmp.ne.s32.totalorder %s90, %s104
    %p106 = scmp.eq.s32.totalorder %s17, 0
    %p107 = por %p105, %p106
    %s109 = sadd.s32 %s108, 1
    %p112 = scmp.eq.s32.totalorder %s11, 1
    %p113 = scmp.ne.s32.totalorder %s108, %s110
    %p114 = scmp.eq.s32.totalorder %s11, 0
    %p115 = por %p113, %p114
    %p116 = scmp.ne.s32.totalorder %s108, %s110
    %p117 = scmp.eq.s32.totalorder %s16, 1
    %p118 = por %p116, %p117
    %p119 = scmp.ne.s32.totalorder %s110, %s111
    %p120 = scmp.eq.s32.totalorder %s16, 0
    %p121 = por %p119, %p120
    %p122 = scmp.ne.s32.totalorder %s110, %s111
    %p123 = scmp.eq.s32.totalorder %s17, 1
    %p124 = por %p122, %p123
    %p126 = scmp.ne.s32.totalorder %s111, %s125
    %p127 = scmp.eq.s32.totalorder %s17, 0
    %p128 = por %p126, %p127
    %s129 = ssub.s32 %s11, %s18
    %p130 = scmp.eq.s32.totalorder %s129, 0
    %s132 = sadd.s32 %s131, 1
    %s133 = scalar_select %p130, %s131, %s132
    %p136 = pneg %p130
    %p137 = scmp.eq.s32.totalorder %s11, 1
    %p138 = por %p136, %p137
    %p139 = scmp.ne.s32.totalorder %s131, %s134
    %p140 = scmp.eq.s32.totalorder %s11, 0
    %p141 = por %p139, %p140
    %p142 = scmp.ne.s32.totalorder %s131, %s134
    %p143 = scmp.eq.s32.totalorder %s16, 1
    %p144 = por %p142, %p143
    %p145 = scmp.ne.s32.totalorder %s134, %s135
    %p146 = scmp.eq.s32.totalorder %s16, 0
    %p147 = por %p145, %p146
    %p148 = scmp.ne.s32.totalorder %s134, %s135
    %p149 = scmp.eq.s32.totalorder %s17, 1
    %p150 = por %p148, %p149
    %p152 = scmp.ne.s32.totalorder %s135, %s151
    %p153 = scmp.eq.s32.totalorder %s17, 0
    %p154 = por %p152, %p153
    %p155 = scmp.le.s32.totalorder 1, %s11
    %p156 = scmp.lt.s32.totalorder %s11, 3
    %p157 = pnand %p155, %p156
    %p158 = pneg %p157
    // Predicated region
    $region9: #{deeplabv3_forward.12} parent=5 // pred_check
      _
    $region10: #{deeplabv3_forward.12} parent=5 // pred_check_branch
      %160 = sbr.rel (%p157) target = $region12
    $region11: #{deeplabv3_forward.12} parent=5 // pred_region
      %s161 = ssub.s32 %s11, 1
      // Predicated region
      $region13: #{deeplabv3_forward.12} parent=11 // pred_check
        %p162 = pneg %p58
      $region14: #{deeplabv3_forward.12} parent=11 // pred_check_branch
        %164 = sbr.rel (%p162) target = $region16
      $region15: #{deeplabv3_forward.12} parent=11 // pred_region
        _
      $region16: #{deeplabv3_forward.12} parent=11 // pred_fallthru
        _
      // Predicated region
      $region17: #{deeplabv3_forward.12} parent=11 // pred_check
        %p165 = pneg %p79
      $region18: #{deeplabv3_forward.12} parent=11 // pred_check_branch
        %167 = sbr.rel (%p165) target = $region20
      $region19: #{deeplabv3_forward.12} parent=11 // pred_region
        _
      $region20: #{deeplabv3_forward.12} parent=11 // pred_fallthru
        _
      // Predicated region
      $region21: #{deeplabv3_forward.12} parent=11 // pred_check
        %p168 = pneg %p100
      $region22: #{deeplabv3_forward.12} parent=11 // pred_check_branch
        %170 = sbr.rel (%p168) target = $region24
      $region23: #{deeplabv3_forward.12} parent=11 // pred_region
        _
      $region24: #{deeplabv3_forward.12} parent=11 // pred_fallthru
        _
      // Predicated region
      $region25: #{deeplabv3_forward.12} parent=11 // pred_check
        %p171 = pneg %p121
      $region26: #{deeplabv3_forward.12} parent=11 // pred_check_branch
        %173 = sbr.rel (%p171) target = $region28
      $region27: #{deeplabv3_forward.12} parent=11 // pred_region
        _
      $region28: #{deeplabv3_forward.12} parent=11 // pred_fallthru
        _
    $region12: #{deeplabv3_forward.12} parent=5 // pred_fallthru
      _
    %p174 = scmp.lt.s32.totalorder %s11, 2
    // Predicated region
    $region29: #{deeplabv3_forward.12} parent=5 // pred_check
      %p175 = pneg %p174
    $region30: #{deeplabv3_forward.12} parent=5 // pred_check_branch
      %177 = sbr.rel (%p175) target = $region32
    $region31: #{deeplabv3_forward.12} parent=5 // pred_region
      // Predicated region
      $region33: #{deeplabv3_forward.12} parent=31 // pred_check
        %p178 = pneg %p31
      $region34: #{deeplabv3_forward.12} parent=31 // pred_check_branch
        %180 = sbr.rel (%p178) target = $region36
      $region35: #{deeplabv3_forward.12} parent=31 // pred_region
        %p181 = scmp.lt.s32.totalorder %s11, 1
        %s182 = scalar_select %p181, %s11, 1
        %s183 = smul.addr %s182, 3
        %s184 = smul.addr %s183, 4
        %s185 = scalar_lea.vmem %s0, %s184
      $region36: #{deeplabv3_forward.12} parent=31 // pred_fallthru
        _
    $region32: #{deeplabv3_forward.12} parent=5 // pred_fallthru
      _
    %p186 = scmp.le.s32.totalorder 1, %s11
    %p187 = scmp.lt.s32.totalorder %s11, 3
    %p188 = pnand %p186, %p187
    %p189 = pneg %p188
    // Predicated region
    $region37: #{deeplabv3_forward.12} parent=5 // pred_check
      _
    $region38: #{deeplabv3_forward.12} parent=5 // pred_check_branch
      %191 = sbr.rel (%p188) target = $region40
    $region39: #{deeplabv3_forward.12} parent=5 // pred_region
      %s192 = ssub.s32 %s11, 1
      %p193 = scmp.lt.s32.totalorder %s16, 1
      %s194 = scalar_select %p193, %s16, 1
      %s195 = smul.addr %s194, 3
      %s196 = smul.addr %s195, 4
      %s197 = scalar_lea.vmem %s0, %s196
      %p198 = pneg %p37
      %p199 = pneg %p34
      %p200 = pneg %p58
      %p201 = pneg %p55
      %p202 = pneg %p79
      %p203 = pneg %p76
      %p204 = pneg %p100
      %p205 = pneg %p97
      %p206 = pneg %p121
      %p207 = pneg %p118
      %p208 = pneg %p147
      %p209 = pneg %p144
      %p210 = scmp.lt.s32.totalorder %s16, 1
      %s211 = scalar_select %p210, %s16, 1
      %s212 = smul.addr %s211, 4
      %s213 = scalar_lea.vmem %s5, %s212
      %p214 = scmp.lt.s32.totalorder %s16, 1
      %s215 = scalar_select %p214, %s16, 1
      %s216 = smul.addr %s215, 3
      %s217 = smul.addr %s216, 4
      %s218 = scalar_lea.vmem %s0, %s217
      %p219 = scmp.lt.s32.totalorder %s16, 1
      %s220 = scalar_select %p219, %s16, 1
      %s221 = smul.addr %s220, 4
      %s222 = scalar_lea.vmem %s5, %s221
      %v224 = vld [vmem:[%s218] sm:$0xf]
      %v225 = vld [vmem:[%s1] sm:$0xf]
      %v226 = vld [vmem:[%s1 + $0x4] sm:$0xf]
      %v227 = vld [vmem:[%s1 + $0x8] sm:$0xf]
      %v228 = vld [vmem:[%s1 + $0xc] sm:$0xf]
      %v229 = vld [vmem:[%s218 + $0x4] sm:$0x1]
      %s230 = scalar_lea.vmem %s1, 16
      %v231 = vld [vmem:[%s230] sm:$0xf]
      %v232 = vld [vmem:[%s230 + $0x4] sm:$0xf]
      %v233 = vld [vmem:[%s230 + $0x8] sm:$0xf]
      %v234 = vld [vmem:[%s230 + $0xc] sm:$0xf]
      %v237 = vunpack.c.l.b16 %v224
      %v238 = vunpack.c.l.b16 %v229
      %v239 = vpack.c.b16 %v238, %v237
      %v241 = vshrl.u32 %v239, 16
      %v243 = vshll.u32 %v239, 16
      %v245 = vrot.slane %v243, 1
      %v246 = vor.u32 %v241, %v245
      %v251 = vunpack.c.l.b16 %v231
      %v252 = vunpack.c.l.b16 %v232
      %v253 = vunpack.c.l.b16 %v233
      %v254 = vunpack.c.l.b16 %v234
      %v255 = vpack.c.b16 %v252, %v251
      %v256 = vpack.c.b16 %v254, %v253
      %vm259 = vcmask 261120
      %v261 = vsel %vm259, %v246, 0
      %263 = vmatpush.bf16.msra.mxu0 0
      %264 = vmatpush.bf16.msra.mxu0 0
      %265 = vmatpush.bf16.msra.mxu0 0
      %266 = vmatpush.bf16.msra.mxu0 0
      %267 = vmatpush.bf16.msra.mxu0 0
      %268 = vmatpush.bf16.msra.mxu0 0
      %269 = vmatpush.bf16.msra.mxu0 %v256
      %270 = vmatpush.bf16.msra.mxu0 %v255
      %271 = vmatmul.bf16.gmra.mxu0 %v261
      %v272 = vpop.f32.mrf.mxu0
      %v273 = vadd.f32 0.0, %v272
      %v274 = vpop.f32.mrf.mxu0
      %275 = vdwg.mxu0
      %v280 = vunpack.c.l.b16 %v225
      %v281 = vunpack.c.l.b16 %v226
      %v282 = vunpack.c.l.b16 %v227
      %v283 = vunpack.c.l.b16 %v228
      %v284 = vpack.c.b16 %v281, %v280
      %v285 = vpack.c.b16 %v283, %v282
      %v289 = vsel %vm259, %v224, 0
      %291 = vmatpush.bf16.msra.mxu0 0
      %292 = vmatpush.bf16.msra.mxu0 0
      %293 = vmatpush.bf16.msra.mxu0 0
      %294 = vmatpush.bf16.msra.mxu0 0
      %295 = vmatpush.bf16.msra.mxu0 0
      %296 = vmatpush.bf16.msra.mxu0 0
      %297 = vmatpush.bf16.msra.mxu0 %v285
      %298 = vmatpush.bf16.msra.mxu0 %v284
      %299 = vmatmul.bf16.gmra.mxu0 %v289
      %v300 = vpop.f32.mrf.mxu0
      %v301 = vadd.f32 %v273, %v300
      %v302 = vpop.f32.mrf.mxu0
      %303 = vdwg.mxu0
      %v304 = vld [vmem:[%s218] sm:$0xe]
      %s305 = scalar_lea.vmem %s1, 32
      %v306 = vld [vmem:[%s305] sm:$0xf]
      %v307 = vld [vmem:[%s305 + $0x4] sm:$0xf]
      %v308 = vld [vmem:[%s305 + $0x8] sm:$0xf]
      %v309 = vld [vmem:[%s305 + $0xc] sm:$0xf]
      %v311 = vunpack.c.l.b16 %v304
      %v312 = vpack.c.b16 %v238, %v311
      %v313 = vrot.slane %v312, 1
      %v318 = vunpack.c.l.b16 %v306
      %v319 = vunpack.c.l.b16 %v307
      %v320 = vunpack.c.l.b16 %v308
      %v321 = vunpack.c.l.b16 %v309
      %v322 = vpack.c.b16 %v319, %v318
      %v323 = vpack.c.b16 %v321, %v320
      %v327 = vsel %vm259, %v313, 0
      %329 = vmatpush.bf16.msra.mxu0 0
      %330 = vmatpush.bf16.msra.mxu0 0
      %331 = vmatpush.bf16.msra.mxu0 0
      %332 = vmatpush.bf16.msra.mxu0 0
      %333 = vmatpush.bf16.msra.mxu0 0
      %334 = vmatpush.bf16.msra.mxu0 0
      %335 = vmatpush.bf16.msra.mxu0 %v323
      %336 = vmatpush.bf16.msra.mxu0 %v322
      %337 = vmatmul.bf16.gmra.mxu0 %v327
      %v338 = vpop.f32.mrf.mxu0
      %v339 = vadd.f32 0.0, %v338
      %v340 = vpop.f32.mrf.mxu0
      %341 = vdwg.mxu0
      %v342 = vadd.f32 %v301, %v339
      %v343 = vld [vmem:[%s218] sm:$0xc]
      %v344 = vld [vmem:[%s218 + $0x4] sm:$0x3]
      %s345 = scalar_lea.vmem %s1, 48
      %v346 = vld [vmem:[%s345] sm:$0xf]
      %v347 = vld [vmem:[%s345 + $0x4] sm:$0xf]
      %v348 = vld [vmem:[%s345 + $0x8] sm:$0xf]
      %v349 = vld [vmem:[%s345 + $0xc] sm:$0xf]
      %v352 = vunpack.c.l.b16 %v343
      %v353 = vunpack.c.l.b16 %v344
      %v354 = vpack.c.b16 %v353, %v352
      %v355 = vrot.slane %v354, 2
      %v360 = vunpack.c.l.b16 %v346
      %v361 = vunpack.c.l.b16 %v347
      %v362 = vunpack.c.l.b16 %v348
      %v363 = vunpack.c.l.b16 %v349
      %v364 = vpack.c.b16 %v361, %v360
      %v365 = vpack.c.b16 %v363, %v362
      %v369 = vsel %vm259, %v355, 0
      %371 = vmatpush.bf16.msra.mxu0 0
      %372 = vmatpush.bf16.msra.mxu0 0
      %373 = vmatpush.bf16.msra.mxu0 0
      %374 = vmatpush.bf16.msra.mxu0 0
      %375 = vmatpush.bf16.msra.mxu0 0
      %376 = vmatpush.bf16.msra.mxu0 0
      %377 = vmatpush.bf16.msra.mxu0 %v365
      %378 = vmatpush.bf16.msra.mxu0 %v364
      %379 = vmatmul.bf16.gmra.mxu0 %v369
      %v380 = vpop.f32.mrf.mxu0
      %v381 = vadd.f32 0.0, %v380
      %v382 = vpop.f32.mrf.mxu0
      %383 = vdwg.mxu0
      %v384 = vadd.f32 %v342, %v381
      %v385 = vld [vmem:[%s218 + $0x4] sm:$0x7]
      %s386 = scalar_lea.vmem %s1, 64
      %v387 = vld [vmem:[%s386] sm:$0xf]
      %v388 = vld [vmem:[%s386 + $0x4] sm:$0xf]
      %v389 = vld [vmem:[%s386 + $0x8] sm:$0xf]
      %v390 = vld [vmem:[%s386 + $0xc] sm:$0xf]
      %v392 = vunpack.c.l.b16 %v385
      %v393 = vpack.c.b16 %v392, %v352
      %v395 = vshrl.u32 %v393, 16
      %v397 = vrot.slane %v395, 2
      %v398 = vshll.u32 %v393, 16
      %v400 = vrot.slane %v398, 3
      %v401 = vor.u32 %v397, %v400
      %v406 = vunpack.c.l.b16 %v387
      %v407 = vunpack.c.l.b16 %v388
      %v408 = vunpack.c.l.b16 %v389
      %v409 = vunpack.c.l.b16 %v390
      %v410 = vpack.c.b16 %v407, %v406
      %v411 = vpack.c.b16 %v409, %v408
      %v415 = vsel %vm259, %v401, 0
      %417 = vmatpush.bf16.msra.mxu0 0
      %418 = vmatpush.bf16.msra.mxu0 0
      %419 = vmatpush.bf16.msra.mxu0 0
      %420 = vmatpush.bf16.msra.mxu0 0
      %421 = vmatpush.bf16.msra.mxu0 0
      %422 = vmatpush.bf16.msra.mxu0 0
      %423 = vmatpush.bf16.msra.mxu0 %v411
      %424 = vmatpush.bf16.msra.mxu0 %v410
      %425 = vmatmul.bf16.gmra.mxu0 %v415
      %v426 = vpop.f32.mrf.mxu0
      %v427 = vadd.f32 0.0, %v426
      %v428 = vpop.f32.mrf.mxu0
      %429 = vdwg.mxu0
      %v430 = vadd.f32 %v384, %v427
      %v431 = vld [vmem:[%s218] sm:$0x8]
      %s432 = scalar_lea.vmem %s1, 80
      %v433 = vld [vmem:[%s432] sm:$0xf]
      %v434 = vld [vmem:[%s432 + $0x4] sm:$0xf]
      %v435 = vld [vmem:[%s432 + $0x8] sm:$0xf]
      %v436 = vld [vmem:[%s432 + $0xc] sm:$0xf]
      %v438 = vunpack.c.l.b16 %v431
      %v439 = vpack.c.b16 %v392, %v438
      %v440 = vrot.slane %v439, 3
      %v445 = vunpack.c.l.b16 %v433
      %v446 = vunpack.c.l.b16 %v434
      %v447 = vunpack.c.l.b16 %v435
      %v448 = vunpack.c.l.b16 %v436
      %v449 = vpack.c.b16 %v446, %v445
      %v450 = vpack.c.b16 %v448, %v447
      %v454 = vsel %vm259, %v440, 0
      %456 = vmatpush.bf16.msra.mxu0 0
      %457 = vmatpush.bf16.msra.mxu0 0
      %458 = vmatpush.bf16.msra.mxu0 0
      %459 = vmatpush.bf16.msra.mxu0 0
      %460 = vmatpush.bf16.msra.mxu0 0
      %461 = vmatpush.bf16.msra.mxu0 0
      %462 = vmatpush.bf16.msra.mxu0 %v450
      %463 = vmatpush.bf16.msra.mxu0 %v449
      %464 = vmatmul.bf16.gmra.mxu0 %v454
      %v465 = vpop.f32.mrf.mxu0
      %v466 = vadd.f32 0.0, %v465
      %v467 = vpop.f32.mrf.mxu0
      %468 = vdwg.mxu0
      %v469 = vadd.f32 %v430, %v466
      %v470 = vld [vmem:[%s218 + $0x4] sm:$0xf]
      %s471 = scalar_lea.vmem %s1, 96
      %v472 = vld [vmem:[%s471] sm:$0xf]
      %v473 = vld [vmem:[%s471 + $0x4] sm:$0xf]
      %v474 = vld [vmem:[%s471 + $0x8] sm:$0xf]
      %v475 = vld [vmem:[%s471 + $0xc] sm:$0xf]
      %v480 = vunpack.c.l.b16 %v472
      %v481 = vunpack.c.l.b16 %v473
      %v482 = vunpack.c.l.b16 %v474
      %v483 = vunpack.c.l.b16 %v475
      %v484 = vpack.c.b16 %v481, %v480
      %v485 = vpack.c.b16 %v483, %v482
      %v489 = vsel %vm259, %v470, 0
      %491 = vmatpush.bf16.msra.mxu0 0
      %492 = vmatpush.bf16.msra.mxu0 0
      %493 = vmatpush.bf16.msra.mxu0 0
      %494 = vmatpush.bf16.msra.mxu0 0
      %495 = vmatpush.bf16.msra.mxu0 0
      %496 = vmatpush.bf16.msra.mxu0 0
      %497 = vmatpush.bf16.msra.mxu0 %v485
      %498 = vmatpush.bf16.msra.mxu0 %v484
      %499 = vmatmul.bf16.gmra.mxu0 %v489
      %v500 = vpop.f32.mrf.mxu0
      %v501 = vadd.f32 0.0, %v500
      %v502 = vpop.f32.mrf.mxu0
      %503 = vdwg.mxu0
      %v504 = vadd.f32 %v469, %v501
      %v505 = vld [vmem:[%s218 + $0x4] sm:$0xf]
      %v506 = vld [vmem:[%s218 + $0x8] sm:$0x1]
      %s507 = scalar_lea.vmem %s1, 112
      %v508 = vld [vmem:[%s507] sm:$0xf]
      %v509 = vld [vmem:[%s507 + $0x4] sm:$0xf]
      %v510 = vld [vmem:[%s507 + $0x8] sm:$0xf]
      %v511 = vld [vmem:[%s507 + $0xc] sm:$0xf]
      %v514 = vunpack.c.l.b16 %v505
      %v515 = vunpack.c.l.b16 %v506
      %v516 = vpack.c.b16 %v515, %v514
      %v518 = vshrl.u32 %v516, 16
      %v520 = vshll.u32 %v516, 16
      %v522 = vrot.slane %v520, 1
      %v523 = vor.u32 %v518, %v522
      %v528 = vunpack.c.l.b16 %v508
      %v529 = vunpack.c.l.b16 %v509
      %v530 = vunpack.c.l.b16 %v510
      %v531 = vunpack.c.l.b16 %v511
      %v532 = vpack.c.b16 %v529, %v528
      %v533 = vpack.c.b16 %v531, %v530
      %v537 = vsel %vm259, %v523, 0
      %539 = vmatpush.bf16.msra.mxu0 0
      %540 = vmatpush.bf16.msra.mxu0 0
      %541 = vmatpush.bf16.msra.mxu0 0
      %542 = vmatpush.bf16.msra.mxu0 0
      %543 = vmatpush.bf16.msra.mxu0 0
      %544 = vmatpush.bf16.msra.mxu0 0
      %545 = vmatpush.bf16.msra.mxu0 %v533
      %546 = vmatpush.bf16.msra.mxu0 %v532
      %547 = vmatmul.bf16.gmra.mxu0 %v537
      %v548 = vpop.f32.mrf.mxu0
      %v549 = vadd.f32 0.0, %v548
      %v550 = vpop.f32.mrf.mxu0
      %551 = vdwg.mxu0
      %v552 = vadd.f32 %v504, %v549
      %v553 = vld [vmem:[%s218 + $0x4] sm:$0xe]
      %s554 = scalar_lea.vmem %s1, 128
      %v555 = vld [vmem:[%s554] sm:$0xf]
      %v556 = vld [vmem:[%s554 + $0x4] sm:$0xf]
      %v557 = vld [vmem:[%s554 + $0x8] sm:$0xf]
      %v558 = vld [vmem:[%s554 + $0xc] sm:$0xf]
      %v560 = vunpack.c.l.b16 %v553
      %v561 = vpack.c.b16 %v515, %v560
      %v562 = vrot.slane %v561, 1
      %v567 = vunpack.c.l.b16 %v555
      %v568 = vunpack.c.l.b16 %v556
      %v569 = vunpack.c.l.b16 %v557
      %v570 = vunpack.c.l.b16 %v558
      %v571 = vpack.c.b16 %v568, %v567
      %v572 = vpack.c.b16 %v570, %v569
      %v576 = vsel %vm259, %v562, 0
      %578 = vmatpush.bf16.msra.mxu0 0
      %579 = vmatpush.bf16.msra.mxu0 0
      %580 = vmatpush.bf16.msra.mxu0 0
      %581 = vmatpush.bf16.msra.mxu0 0
      %582 = vmatpush.bf16.msra.mxu0 0
      %583 = vmatpush.bf16.msra.mxu0 0
      %584 = vmatpush.bf16.msra.mxu0 %v572
      %585 = vmatpush.bf16.msra.mxu0 %v571
      %586 = vmatmul.bf16.gmra.mxu0 %v576
      %v587 = vpop.f32.mrf.mxu0
      %v588 = vadd.f32 0.0, %v587
      %v589 = vpop.f32.mrf.mxu0
      %590 = vdwg.mxu0
      %v591 = vadd.f32 %v552, %v588
      %v592 = vld [vmem:[%s2] sm:$0x1]
      %v594 = vperm.slane %v592, 0
      %v596 = vadd.f32 %v591, %v594
      %v597 = vmax.f32 %v596, 0.0
      %v598 = vpack.c.bf16 %v597, %v597
      %v599 = vld [vmem:[%s3] sm:$0xf]
      %v600 = vld [vmem:[%s3 + $0x4] sm:$0xf]
      %v601 = vld [vmem:[%s3 + $0x8] sm:$0xf]
      %v602 = vld [vmem:[%s3 + $0xc] sm:$0xf]
      %v603 = vld [vmem:[%s4] sm:$0x1]
      %v605 = vperm.slane %v603, 0
      %v611 = vunpack.c.l.b16 %v599
      %v612 = vunpack.c.l.b16 %v600
      %v613 = vunpack.c.l.b16 %v601
      %v614 = vunpack.c.l.b16 %v602
      %v615 = vpack.c.b16 %v612, %v611
      %v616 = vpack.c.b16 %v614, %v613
      %v620 = vsel %vm259, %v598, 0
      %622 = vmatpush.bf16.msra.mxu0 0
      %623 = vmatpush.bf16.msra.mxu0 0
      %624 = vmatpush.bf16.msra.mxu0 0
      %625 = vmatpush.bf16.msra.mxu0 0
      %626 = vmatpush.bf16.msra.mxu0 0
      %627 = vmatpush.bf16.msra.mxu0 0
      %628 = vmatpush.bf16.msra.mxu0 %v616
      %629 = vmatpush.bf16.msra.mxu0 %v615
      %630 = vmatmul.bf16.gmra.mxu0 %v620
      %v631 = vpop.f32.mrf.mxu0
      %v632 = vadd.f32 %v605, %v631
      %v633 = vpop.f32.mrf.mxu0
      %634 = vdwg.mxu0
      %v635 = vpack.c.bf16 %v632, %v632
      %vm636 = vcmask 35840
      %637 = vst.msk [vmem:[%s222] sm:$0xf] %vm636, %v635
      %p638 = scmp.lt.s32.totalorder %s16, 1
      %s639 = scalar_select %p638, %s16, 1
      %s640 = smul.addr %s639, 4
      %s641 = scalar_lea.vmem %s5, %s640
      // Predicated region
      $region41: #{deeplabv3_forward.12} parent=39 // pred_check
        %p642 = pneg %p144
      $region42: #{deeplabv3_forward.12} parent=39 // pred_check_branch
        %644 = sbr.rel (%p642) target = $region44
      $region43: #{deeplabv3_forward.12} parent=39 // pred_region
        _
      $region44: #{deeplabv3_forward.12} parent=39 // pred_fallthru
        _
    $region40: #{deeplabv3_forward.12} parent=5 // pred_fallthru
      _
    %p645 = scmp.le.s32.totalorder 2, %s11
    // Predicated region
    $region45: #{deeplabv3_forward.12} parent=5 // pred_check
      %p646 = pneg %p645
    $region46: #{deeplabv3_forward.12} parent=5 // pred_check_branch
      %648 = sbr.rel (%p646) target = $region48
    $region47: #{deeplabv3_forward.12} parent=5 // pred_region
      %s649 = ssub.s32 %s11, 2
      // Predicated region
      $region49: #{deeplabv3_forward.12} parent=47 // pred_check
        %p650 = pneg %p150
      $region50: #{deeplabv3_forward.12} parent=47 // pred_check_branch
        %652 = sbr.rel (%p650) target = $region52
      $region51: #{deeplabv3_forward.12} parent=47 // pred_region
        %p653 = scmp.lt.s32.totalorder %s17, 1
        %s654 = scalar_select %p653, %s17, 1
        %s655 = smul.addr %s654, 4
        %s656 = scalar_lea.vmem %s5, %s655
      $region52: #{deeplabv3_forward.12} parent=47 // pred_fallthru
        _
    $region48: #{deeplabv3_forward.12} parent=5 // pred_fallthru
      _
  $region6: #{deeplabv3_forward.12} parent=0 // loop_footer
    %s15 = sadd.s32 1, %s11
  $region7: #{deeplabv3_forward.12} parent=0 // loop_footer_branch
    %10 = sbr.rel target = $region3
  $region8: #{deeplabv3_forward.12} parent=0 // loop_exit
    _

// kernel: deeplabv3_forward.13
$region0: #{deeplabv3_forward.13}
  #allocation0 [shape = 'u32[]', space=smem, size = 0x4, offset = 0x4, fixed_abs, tag = 'smem constant byte address 0x4 - core index']
  #allocation1 [shape = 'u32[72,128]{1,0:T(1,128)}', space=vmem, size = 0x9000, scoped, tag = 'internal scratch']
  #allocation2 [shape = 'f32[16,128]{1,0:T(8,128)}', space=vmem, size = 0x2000, scoped, tag = 'scratch operand']
  %s0 = inlined_call_operand.vmem [shape: bf16[16,128], index: 0, kind: input, shape index: {}]
  %s1 = inlined_call_operand.vmem [shape: bf16[128,128], index: 1, kind: input, shape index: {}]
  %s2 = inlined_call_operand.vmem [shape: f32[1,128], index: 2, kind: input, shape index: {}]
  %s3 = inlined_call_operand.vmem [shape: bf16[16,128], index: 3, kind: output, shape index: {}]
  %s4 = sld [smem:[#allocation0]]
  $region30: #{deeplabv3_forward.13} parent=0
    _
  %s6 = ssub.s32 1, %s4
  %s7 = scalar_select 0, %s6, %s4
  // Predicated region
  $region2: #{deeplabv3_forward.13} parent=0 // pred_check
    _
  $region3: #{deeplabv3_forward.13} parent=0 // pred_check_branch
    %9 = sbr.rel (0) target = $region5
  $region4: #{deeplabv3_forward.13} parent=0 // pred_region
    _
  $region5: #{deeplabv3_forward.13} parent=0 // pred_fallthru
    _
  // Predicated region
  $region6: #{deeplabv3_forward.13} parent=0 // pred_check
    _
  $region7: #{deeplabv3_forward.13} parent=0 // pred_check_branch
    %11 = sbr.rel (0) target = $region9
  $region8: #{deeplabv3_forward.13} parent=0 // pred_region
    _
  $region9: #{deeplabv3_forward.13} parent=0 // pred_fallthru
    _
  // Predicated region
  $region10: #{deeplabv3_forward.13} parent=0 // pred_check
    _
  $region11: #{deeplabv3_forward.13} parent=0 // pred_check_branch
    %13 = sbr.rel (0) target = $region13
  $region12: #{deeplabv3_forward.13} parent=0 // pred_region
    _
  $region13: #{deeplabv3_forward.13} parent=0 // pred_fallthru
    _
  %p14 = scmp.eq.s32.totalorder 0, 0
  // Predicated region
  $region14: #{deeplabv3_forward.13} parent=0 // pred_check
    %p15 = pneg %p14
  $region15: #{deeplabv3_forward.13} parent=0 // pred_check_branch
    %17 = sbr.rel (%p15) target = $region17
  $region16: #{deeplabv3_forward.13} parent=0 // pred_region
    %18 = vst [vmem:[#allocation2] sm:$0xff] 0.0
    %19 = vst [vmem:[#allocation2 + $0x8] sm:$0xff] 0.0
  $region17: #{deeplabv3_forward.13} parent=0 // pred_fallthru
    _
  %v20 = vld [vmem:[#allocation2] sm:$0xff]
  %v21 = vld [vmem:[#allocation2 + $0x8] sm:$0xff]
  %v22 = vld [vmem:[%s0] sm:$0xf]
  %v23 = vld [vmem:[%s0 + $0x4] sm:$0xf]
  %v24 = vld [vmem:[%s1] sm:$0xf]
  %v25 = vld [vmem:[%s1 + $0x4] sm:$0xf]
  %v26 = vld [vmem:[%s1 + $0x8] sm:$0xf]
  %v27 = vld [vmem:[%s1 + $0xc] sm:$0xf]
  %v28 = vld [vmem:[%s1 + $0x10] sm:$0xf]
  %v29 = vld [vmem:[%s1 + $0x14] sm:$0xf]
  %v30 = vld [vmem:[%s1 + $0x18] sm:$0xf]
  %v31 = vld [vmem:[%s1 + $0x1c] sm:$0xf]
  %v32 = vld [vmem:[%s1 + $0x20] sm:$0xf]
  %v33 = vld [vmem:[%s1 + $0x24] sm:$0xf]
  %v34 = vld [vmem:[%s1 + $0x28] sm:$0xf]
  %v35 = vld [vmem:[%s1 + $0x2c] sm:$0xf]
  %v36 = vld [vmem:[%s1 + $0x30] sm:$0xf]
  %v37 = vld [vmem:[%s1 + $0x34] sm:$0xf]
  %v38 = vld [vmem:[%s1 + $0x38] sm:$0xf]
  %v39 = vld [vmem:[%s1 + $0x3c] sm:$0xf]
  %v42 = vunpack.c.l.b16 %v22
  %v43 = vunpack.c.l.b16 %v23
  %v44 = vpack.c.b16 %v43, %v42
  %v62 = vunpack.c.l.b16 %v24
  %v63 = vunpack.c.l.b16 %v25
  %v64 = vunpack.c.l.b16 %v26
  %v65 = vunpack.c.l.b16 %v27
  %v66 = vunpack.c.l.b16 %v28
  %v67 = vunpack.c.l.b16 %v29
  %v68 = vunpack.c.l.b16 %v30
  %v69 = vunpack.c.l.b16 %v31
  %v70 = vunpack.c.l.b16 %v32
  %v71 = vunpack.c.l.b16 %v33
  %v72 = vunpack.c.l.b16 %v34
  %v73 = vunpack.c.l.b16 %v35
  %v74 = vunpack.c.l.b16 %v36
  %v75 = vunpack.c.l.b16 %v37
  %v76 = vunpack.c.l.b16 %v38
  %v77 = vunpack.c.l.b16 %v39
  %v78 = vpack.c.b16 %v63, %v62
  %v79 = vpack.c.b16 %v65, %v64
  %v80 = vpack.c.b16 %v67, %v66
  %v81 = vpack.c.b16 %v69, %v68
  %v82 = vpack.c.b16 %v71, %v70
  %v83 = vpack.c.b16 %v73, %v72
  %v84 = vpack.c.b16 %v75, %v74
  %v85 = vpack.c.b16 %v77, %v76
  %94 = vmatpush.bf16.msra.mxu0 %v85
  %95 = vmatpush.bf16.msra.mxu0 %v84
  %96 = vmatpush.bf16.msra.mxu0 %v83
  %97 = vmatpush.bf16.msra.mxu0 %v82
  %98 = vmatpush.bf16.msra.mxu0 %v81
  %99 = vmatpush.bf16.msra.mxu0 %v80
  %100 = vmatpush.bf16.msra.mxu0 %v79
  %101 = vmatpush.bf16.msra.mxu0 %v78
  %102 = vmatmul.bf16.gmra.mxu0 %v44
  %v103 = vpop.f32.mrf.mxu0
  %v104 = vadd.f32 0.0, %v103
  %v105 = vpop.f32.mrf.mxu0
  %v106 = vadd.f32 0.0, %v105
  %107 = vdwg.mxu0
  %v108 = vadd.f32 %v20, %v104
  %v109 = vadd.f32 %v21, %v106
  %110 = vst [vmem:[#allocation2] sm:$0xff] %v108
  %111 = vst [vmem:[#allocation2 + $0x8] sm:$0xff] %v109
  // Predicated region
  $region18: #{deeplabv3_forward.13} parent=0 // pred_check
    %p112 = pneg %p14
  $region19: #{deeplabv3_forward.13} parent=0 // pred_check_branch
    %114 = sbr.rel (%p112) target = $region21
  $region20: #{deeplabv3_forward.13} parent=0 // pred_region
    %v115 = vld [vmem:[#allocation2] sm:$0xff]
    %v116 = vld [vmem:[#allocation2 + $0x8] sm:$0xff]
    %v117 = vld [vmem:[%s2] sm:$0x1]
    %v119 = vperm.slane %v117, 0
    %v121 = vadd.f32 %v115, %v119
    %v122 = vadd.f32 %v116, %v119
    %v123 = vpack.c.bf16 %v121, %v121
    %v124 = vpack.c.bf16 %v122, %v122
    %125 = vst [vmem:[%s3] sm:$0xf] %v123
    %126 = vst [vmem:[%s3 + $0x4] sm:$0xf] %v124
  $region21: #{deeplabv3_forward.13} parent=0 // pred_fallthru
    _
  // Predicated region
  $region22: #{deeplabv3_forward.13} parent=0 // pred_check
    _
  $region23: #{deeplabv3_forward.13} parent=0 // pred_check_branch
    %128 = sbr.rel (0) target = $region25
  $region24: #{deeplabv3_forward.13} parent=0 // pred_region
    _
  $region25: #{deeplabv3_forward.13} parent=0 // pred_fallthru
    _
  // Predicated region
  $region26: #{deeplabv3_forward.13} parent=0 // pred_check
    _
  $region27: #{deeplabv3_forward.13} parent=0 // pred_check_branch
    %130 = sbr.rel (0) target = $region29
  $region28: #{deeplabv3_forward.13} parent=0 // pred_region
    _
  $region29: #{deeplabv3_forward.13} parent=0 // pred_fallthru
    _

// kernel: deeplabv3_forward.14
$region0: #{deeplabv3_forward.14}
  #allocation0 [shape = 'u32[]', space=smem, size = 0x4, offset = 0x4, fixed_abs, tag = 'smem constant byte address 0x4 - core index']
  #allocation1 [shape = 'u32[72,128]{1,0:T(1,128)}', space=vmem, size = 0x9000, scoped, tag = 'internal scratch']
  #allocation2 [shape = 'f32[16,256]{1,0:T(8,128)}', space=vmem, size = 0x4000, scoped, tag = 'scratch operand']
  %s0 = inlined_call_operand.vmem [shape: bf16[16,128], index: 0, kind: input, shape index: {}]
  %s1 = inlined_call_operand.vmem [shape: bf16[128,256], index: 1, kind: input, shape index: {}]
  %s2 = inlined_call_operand.vmem [shape: f32[1,256], index: 2, kind: input, shape index: {}]
  %s3 = inlined_call_operand.vmem [shape: f32[16,256], index: 3, kind: output, shape index: {}]
  %s4 = sld [smem:[#allocation0]]
  $region30: #{deeplabv3_forward.14} parent=0
    _
  %s6 = ssub.s32 1, %s4
  %s7 = scalar_select 0, %s6, %s4
  // Predicated region
  $region2: #{deeplabv3_forward.14} parent=0 // pred_check
    _
  $region3: #{deeplabv3_forward.14} parent=0 // pred_check_branch
    %9 = sbr.rel (0) target = $region5
  $region4: #{deeplabv3_forward.14} parent=0 // pred_region
    _
  $region5: #{deeplabv3_forward.14} parent=0 // pred_fallthru
    _
  // Predicated region
  $region6: #{deeplabv3_forward.14} parent=0 // pred_check
    _
  $region7: #{deeplabv3_forward.14} parent=0 // pred_check_branch
    %11 = sbr.rel (0) target = $region9
  $region8: #{deeplabv3_forward.14} parent=0 // pred_region
    _
  $region9: #{deeplabv3_forward.14} parent=0 // pred_fallthru
    _
  // Predicated region
  $region10: #{deeplabv3_forward.14} parent=0 // pred_check
    _
  $region11: #{deeplabv3_forward.14} parent=0 // pred_check_branch
    %13 = sbr.rel (0) target = $region13
  $region12: #{deeplabv3_forward.14} parent=0 // pred_region
    _
  $region13: #{deeplabv3_forward.14} parent=0 // pred_fallthru
    _
  %p14 = scmp.eq.s32.totalorder 0, 0
  // Predicated region
  $region14: #{deeplabv3_forward.14} parent=0 // pred_check
    %p15 = pneg %p14
  $region15: #{deeplabv3_forward.14} parent=0 // pred_check_branch
    %17 = sbr.rel (%p15) target = $region17
  $region16: #{deeplabv3_forward.14} parent=0 // pred_region
    %18 = vst [vmem:[#allocation2] sm:$0xff] 0.0
    %19 = vst [vmem:[#allocation2 + $0x8] sm:$0xff] 0.0
    %20 = vst [vmem:[#allocation2 + $0x10] sm:$0xff] 0.0
    %21 = vst [vmem:[#allocation2 + $0x18] sm:$0xff] 0.0
  $region17: #{deeplabv3_forward.14} parent=0 // pred_fallthru
    _
  %v22 = vld [vmem:[#allocation2] sm:$0xff]
  %v23 = vld [vmem:[#allocation2 + $0x8] sm:$0xff]
  %v24 = vld [vmem:[#allocation2 + $0x10] sm:$0xff]
  %v25 = vld [vmem:[#allocation2 + $0x18] sm:$0xff]
  %v26 = vld [vmem:[%s0] sm:$0xf]
  %v27 = vld [vmem:[%s0 + $0x4] sm:$0xf]
  %v28 = vld [vmem:[%s1] sm:$0xff]
  %v29 = vld [vmem:[%s1 + $0x8] sm:$0xff]
  %v30 = vld [vmem:[%s1 + $0x10] sm:$0xff]
  %v31 = vld [vmem:[%s1 + $0x18] sm:$0xff]
  %v32 = vld [vmem:[%s1 + $0x20] sm:$0xff]
  %v33 = vld [vmem:[%s1 + $0x28] sm:$0xff]
  %v34 = vld [vmem:[%s1 + $0x30] sm:$0xff]
  %v35 = vld [vmem:[%s1 + $0x38] sm:$0xff]
  %v36 = vld [vmem:[%s1 + $0x40] sm:$0xff]
  %v37 = vld [vmem:[%s1 + $0x48] sm:$0xff]
  %v38 = vld [vmem:[%s1 + $0x50] sm:$0xff]
  %v39 = vld [vmem:[%s1 + $0x58] sm:$0xff]
  %v40 = vld [vmem:[%s1 + $0x60] sm:$0xff]
  %v41 = vld [vmem:[%s1 + $0x68] sm:$0xff]
  %v42 = vld [vmem:[%s1 + $0x70] sm:$0xff]
  %v43 = vld [vmem:[%s1 + $0x78] sm:$0xff]
  %v46 = vunpack.c.l.b16 %v26
  %v47 = vunpack.c.l.b16 %v27
  %v48 = vpack.c.b16 %v47, %v46
  %v66 = vunpack.c.l.b16 %v28
  %v67 = vunpack.c.h.b16 %v28
  %v68 = vunpack.c.l.b16 %v29
  %v69 = vunpack.c.h.b16 %v29
  %v70 = vunpack.c.l.b16 %v30
  %v71 = vunpack.c.h.b16 %v30
  %v72 = vunpack.c.l.b16 %v31
  %v73 = vunpack.c.h.b16 %v31
  %v74 = vunpack.c.l.b16 %v32
  %v75 = vunpack.c.h.b16 %v32
  %v76 = vunpack.c.l.b16 %v33
  %v77 = vunpack.c.h.b16 %v33
  %v78 = vunpack.c.l.b16 %v34
  %v79 = vunpack.c.h.b16 %v34
  %v80 = vunpack.c.l.b16 %v35
  %v81 = vunpack.c.h.b16 %v35
  %v82 = vunpack.c.l.b16 %v36
  %v83 = vunpack.c.h.b16 %v36
  %v84 = vunpack.c.l.b16 %v37
  %v85 = vunpack.c.h.b16 %v37
  %v86 = vunpack.c.l.b16 %v38
  %v87 = vunpack.c.h.b16 %v38
  %v88 = vunpack.c.l.b16 %v39
  %v89 = vunpack.c.h.b16 %v39
  %v90 = vunpack.c.l.b16 %v40
  %v91 = vunpack.c.h.b16 %v40
  %v92 = vunpack.c.l.b16 %v41
  %v93 = vunpack.c.h.b16 %v41
  %v94 = vunpack.c.l.b16 %v42
  %v95 = vunpack.c.h.b16 %v42
  %v96 = vunpack.c.l.b16 %v43
  %v97 = vunpack.c.h.b16 %v43
  %v98 = vpack.c.b16 %v68, %v66
  %v99 = vpack.c.b16 %v69, %v67
  %v100 = vpack.c.b16 %v72, %v70
  %v101 = vpack.c.b16 %v73, %v71
  %v102 = vpack.c.b16 %v76, %v74
  %v103 = vpack.c.b16 %v77, %v75
  %v104 = vpack.c.b16 %v80, %v78
  %v105 = vpack.c.b16 %v81, %v79
  %v106 = vpack.c.b16 %v84, %v82
  %v107 = vpack.c.b16 %v85, %v83
  %v108 = vpack.c.b16 %v88, %v86
  %v109 = vpack.c.b16 %v89, %v87
  %v110 = vpack.c.b16 %v92, %v90
  %v111 = vpack.c.b16 %v93, %v91
  %v112 = vpack.c.b16 %v96, %v94
  %v113 = vpack.c.b16 %v97, %v95
  %130 = vmatpush.bf16.msra.mxu0 %v112
  %131 = vmatpush.bf16.msra.mxu0 %v110
  %132 = vmatpush.bf16.msra.mxu0 %v108
  %133 = vmatpush.bf16.msra.mxu0 %v106
  %134 = vmatpush.bf16.msra.mxu0 %v104
  %135 = vmatpush.bf16.msra.mxu0 %v102
  %136 = vmatpush.bf16.msra.mxu0 %v100
  %137 = vmatpush.bf16.msra.mxu0 %v98
  %138 = vmatmul.bf16.gmra.mxu0 %v48
  %v139 = vpop.f32.mrf.mxu0
  %v140 = vadd.f32 0.0, %v139
  %v141 = vpop.f32.mrf.mxu0
  %v142 = vadd.f32 0.0, %v141
  %143 = vdwg.mxu0
  %144 = vmatpush.bf16.msra.mxu0 %v113
  %145 = vmatpush.bf16.msra.mxu0 %v111
  %146 = vmatpush.bf16.msra.mxu0 %v109
  %147 = vmatpush.bf16.msra.mxu0 %v107
  %148 = vmatpush.bf16.msra.mxu0 %v105
  %149 = vmatpush.bf16.msra.mxu0 %v103
  %150 = vmatpush.bf16.msra.mxu0 %v101
  %151 = vmatpush.bf16.msra.mxu0 %v99
  %152 = vmatmul.bf16.gmra.mxu0 %v48
  %v153 = vpop.f32.mrf.mxu0
  %v154 = vadd.f32 0.0, %v153
  %v155 = vpop.f32.mrf.mxu0
  %v156 = vadd.f32 0.0, %v155
  %157 = vdwg.mxu0
  %v158 = vadd.f32 %v22, %v140
  %v159 = vadd.f32 %v23, %v154
  %v160 = vadd.f32 %v24, %v142
  %v161 = vadd.f32 %v25, %v156
  %162 = vst [vmem:[#allocation2] sm:$0xff] %v158
  %163 = vst [vmem:[#allocation2 + $0x8] sm:$0xff] %v159
  %164 = vst [vmem:[#allocation2 + $0x10] sm:$0xff] %v160
  %165 = vst [vmem:[#allocation2 + $0x18] sm:$0xff] %v161
  // Predicated region
  $region18: #{deeplabv3_forward.14} parent=0 // pred_check
    %p166 = pneg %p14
  $region19: #{deeplabv3_forward.14} parent=0 // pred_check_branch
    %168 = sbr.rel (%p166) target = $region21
  $region20: #{deeplabv3_forward.14} parent=0 // pred_region
    %v169 = vld [vmem:[#allocation2] sm:$0xff]
    %v170 = vld [vmem:[#allocation2 + $0x8] sm:$0xff]
    %v171 = vld [vmem:[#allocation2 + $0x10] sm:$0xff]
    %v172 = vld [vmem:[#allocation2 + $0x18] sm:$0xff]
    %v173 = vld [vmem:[%s2] sm:$0x3]
    %v175 = vperm.slane %v173, 0
    %v176 = vperm.slane %v173, 1
    %v179 = vadd.f32 %v169, %v175
    %v180 = vadd.f32 %v170, %v176
    %v181 = vadd.f32 %v171, %v175
    %v182 = vadd.f32 %v172, %v176
    %183 = vst [vmem:[%s3] sm:$0xff] %v179
    %184 = vst [vmem:[%s3 + $0x8] sm:$0xff] %v180
    %185 = vst [vmem:[%s3 + $0x10] sm:$0xff] %v181
    %186 = vst [vmem:[%s3 + $0x18] sm:$0xff] %v182
  $region21: #{deeplabv3_forward.14} parent=0 // pred_fallthru
    _
  // Predicated region
  $region22: #{deeplabv3_forward.14} parent=0 // pred_check
    _
  $region23: #{deeplabv3_forward.14} parent=0 // pred_check_branch
    %188 = sbr.rel (0) target = $region25
  $region24: #{deeplabv3_forward.14} parent=0 // pred_region
    _
  $region25: #{deeplabv3_forward.14} parent=0 // pred_fallthru
    _
  // Predicated region
  $region26: #{deeplabv3_forward.14} parent=0 // pred_check
    _
  $region27: #{deeplabv3_forward.14} parent=0 // pred_check_branch
    %190 = sbr.rel (0) target = $region29
  $region28: #{deeplabv3_forward.14} parent=0 // pred_region
    _
  $region29: #{deeplabv3_forward.14} parent=0 // pred_fallthru
    _

// kernel: deeplabv3_forward.15
$region0: #{deeplabv3_forward.15}
  #allocation0 [shape = 'u32[]', space=smem, size = 0x4, offset = 0x4, fixed_abs, tag = 'smem constant byte address 0x4 - core index']
  #allocation1 [shape = 'u32[72,128]{1,0:T(1,128)}', space=vmem, size = 0x9000, scoped, tag = 'internal scratch']
  %s0 = inlined_call_operand.vmem [shape: bf16[2,1,42,16], index: 0, kind: input, shape index: {}]
  %s1 = inlined_call_operand.vmem [shape: bf16[9,16,16], index: 1, kind: input, shape index: {}]
  %s2 = inlined_call_operand.vmem [shape: f32[1,16], index: 2, kind: input, shape index: {}]
  %s3 = inlined_call_operand.vmem [shape: bf16[16,5], index: 3, kind: input, shape index: {}]
  %s4 = inlined_call_operand.vmem [shape: f32[1,5], index: 4, kind: input, shape index: {}]
  %s5 = inlined_call_operand.vmem [shape: bf16[2,24,5], index: 5, kind: output, shape index: {}]
  %s6 = sld [smem:[#allocation0]]
  $region53: #{deeplabv3_forward.15} parent=0
    _
  %s8 = ssub.s32 1, %s6
  %s9 = scalar_select 0, %s8, %s6
  loop: start=0, step=1, limit=4
  $region2: #{deeplabv3_forward.15} parent=0 // loop_pre_header
    _
  $region3: #{deeplabv3_forward.15} parent=0 // loop_header
    %s11 = sphi 0, %s15
    %p12 = scmp.ge.s32.totalorder %s11, 4
    %s21 = sphi 0, %s23
    %s24 = sphi 0, %s21
    %s25 = sphi 0, %s24
    %s41 = sphi 0, %s25
    %s45 = sphi 0, %s45
    %s47 = sphi 0, %s45
    %s48 = sphi 0, %s47
    %s62 = sphi 0, %s48
    %s66 = sphi 0, %s66
    %s68 = sphi 0, %s66
    %s69 = sphi 0, %s68
    %s83 = sphi 0, %s69
    %s87 = sphi 0, %s87
    %s89 = sphi 0, %s87
    %s90 = sphi 0, %s89
    %s104 = sphi 0, %s90
    %s108 = sphi 0, %s108
    %s110 = sphi 0, %s108
    %s111 = sphi 0, %s110
    %s125 = sphi 0, %s111
    %s131 = sphi 0, %s133
    %s134 = sphi 0, %s131
    %s135 = sphi 0, %s134
    %s151 = sphi 0, %s135
  $region4: #{deeplabv3_forward.15} parent=0 // loop_header_branch
    %14 = sbr.rel (%p12) target = $region8
  $region5: #{deeplabv3_forward.15} parent=0 // loop_body
    %s16 = ssub.s32 %s11, 1
    %s17 = ssub.s32 %s11, 2
    %s18 = sadd.s32 %s11, 1
    %s19 = ssub.s32 %s11, %s18
    %p20 = scmp.eq.s32.totalorder %s19, 0
    %s22 = sadd.s32 %s21, 1
    %s23 = scalar_select %p20, %s21, %s22
    %p26 = pneg %p20
    %p27 = scmp.eq.s32.totalorder %s11, 1
    %p28 = por %p26, %p27
    %p29 = scmp.ne.s32.totalorder %s21, %s24
    %p30 = scmp.eq.s32.totalorder %s11, 0
    %p31 = por %p29, %p30
    %p32 = scmp.ne.s32.totalorder %s21, %s24
    %p33 = scmp.eq.s32.totalorder %s16, 1
    %p34 = por %p32, %p33
    %p35 = scmp.ne.s32.totalorder %s24, %s25
    %p36 = scmp.eq.s32.totalorder %s16, 0
    %p37 = por %p35, %p36
    %p38 = scmp.ne.s32.totalorder %s24, %s25
    %p39 = scmp.eq.s32.totalorder %s17, 1
    %p40 = por %p38, %p39
    %p42 = scmp.ne.s32.totalorder %s25, %s41
    %p43 = scmp.eq.s32.totalorder %s17, 0
    %p44 = por %p42, %p43
    %s46 = sadd.s32 %s45, 1
    %p49 = scmp.eq.s32.totalorder %s11, 1
    %p50 = scmp.ne.s32.totalorder %s45, %s47
    %p51 = scmp.eq.s32.totalorder %s11, 0
    %p52 = por %p50, %p51
    %p53 = scmp.ne.s32.totalorder %s45, %s47
    %p54 = scmp.eq.s32.totalorder %s16, 1
    %p55 = por %p53, %p54
    %p56 = scmp.ne.s32.totalorder %s47, %s48
    %p57 = scmp.eq.s32.totalorder %s16, 0
    %p58 = por %p56, %p57
    %p59 = scmp.ne.s32.totalorder %s47, %s48
    %p60 = scmp.eq.s32.totalorder %s17, 1
    %p61 = por %p59, %p60
    %p63 = scmp.ne.s32.totalorder %s48, %s62
    %p64 = scmp.eq.s32.totalorder %s17, 0
    %p65 = por %p63, %p64
    %s67 = sadd.s32 %s66, 1
    %p70 = scmp.eq.s32.totalorder %s11, 1
    %p71 = scmp.ne.s32.totalorder %s66, %s68
    %p72 = scmp.eq.s32.totalorder %s11, 0
    %p73 = por %p71, %p72
    %p74 = scmp.ne.s32.totalorder %s66, %s68
    %p75 = scmp.eq.s32.totalorder %s16, 1
    %p76 = por %p74, %p75
    %p77 = scmp.ne.s32.totalorder %s68, %s69
    %p78 = scmp.eq.s32.totalorder %s16, 0
    %p79 = por %p77, %p78
    %p80 = scmp.ne.s32.totalorder %s68, %s69
    %p81 = scmp.eq.s32.totalorder %s17, 1
    %p82 = por %p80, %p81
    %p84 = scmp.ne.s32.totalorder %s69, %s83
    %p85 = scmp.eq.s32.totalorder %s17, 0
    %p86 = por %p84, %p85
    %s88 = sadd.s32 %s87, 1
    %p91 = scmp.eq.s32.totalorder %s11, 1
    %p92 = scmp.ne.s32.totalorder %s87, %s89
    %p93 = scmp.eq.s32.totalorder %s11, 0
    %p94 = por %p92, %p93
    %p95 = scmp.ne.s32.totalorder %s87, %s89
    %p96 = scmp.eq.s32.totalorder %s16, 1
    %p97 = por %p95, %p96
    %p98 = scmp.ne.s32.totalorder %s89, %s90
    %p99 = scmp.eq.s32.totalorder %s16, 0
    %p100 = por %p98, %p99
    %p101 = scmp.ne.s32.totalorder %s89, %s90
    %p102 = scmp.eq.s32.totalorder %s17, 1
    %p103 = por %p101, %p102
    %p105 = scmp.ne.s32.totalorder %s90, %s104
    %p106 = scmp.eq.s32.totalorder %s17, 0
    %p107 = por %p105, %p106
    %s109 = sadd.s32 %s108, 1
    %p112 = scmp.eq.s32.totalorder %s11, 1
    %p113 = scmp.ne.s32.totalorder %s108, %s110
    %p114 = scmp.eq.s32.totalorder %s11, 0
    %p115 = por %p113, %p114
    %p116 = scmp.ne.s32.totalorder %s108, %s110
    %p117 = scmp.eq.s32.totalorder %s16, 1
    %p118 = por %p116, %p117
    %p119 = scmp.ne.s32.totalorder %s110, %s111
    %p120 = scmp.eq.s32.totalorder %s16, 0
    %p121 = por %p119, %p120
    %p122 = scmp.ne.s32.totalorder %s110, %s111
    %p123 = scmp.eq.s32.totalorder %s17, 1
    %p124 = por %p122, %p123
    %p126 = scmp.ne.s32.totalorder %s111, %s125
    %p127 = scmp.eq.s32.totalorder %s17, 0
    %p128 = por %p126, %p127
    %s129 = ssub.s32 %s11, %s18
    %p130 = scmp.eq.s32.totalorder %s129, 0
    %s132 = sadd.s32 %s131, 1
    %s133 = scalar_select %p130, %s131, %s132
    %p136 = pneg %p130
    %p137 = scmp.eq.s32.totalorder %s11, 1
    %p138 = por %p136, %p137
    %p139 = scmp.ne.s32.totalorder %s131, %s134
    %p140 = scmp.eq.s32.totalorder %s11, 0
    %p141 = por %p139, %p140
    %p142 = scmp.ne.s32.totalorder %s131, %s134
    %p143 = scmp.eq.s32.totalorder %s16, 1
    %p144 = por %p142, %p143
    %p145 = scmp.ne.s32.totalorder %s134, %s135
    %p146 = scmp.eq.s32.totalorder %s16, 0
    %p147 = por %p145, %p146
    %p148 = scmp.ne.s32.totalorder %s134, %s135
    %p149 = scmp.eq.s32.totalorder %s17, 1
    %p150 = por %p148, %p149
    %p152 = scmp.ne.s32.totalorder %s135, %s151
    %p153 = scmp.eq.s32.totalorder %s17, 0
    %p154 = por %p152, %p153
    %p155 = scmp.le.s32.totalorder 1, %s11
    %p156 = scmp.lt.s32.totalorder %s11, 3
    %p157 = pnand %p155, %p156
    %p158 = pneg %p157
    // Predicated region
    $region9: #{deeplabv3_forward.15} parent=5 // pred_check
      _
    $region10: #{deeplabv3_forward.15} parent=5 // pred_check_branch
      %160 = sbr.rel (%p157) target = $region12
    $region11: #{deeplabv3_forward.15} parent=5 // pred_region
      %s161 = ssub.s32 %s11, 1
      // Predicated region
      $region13: #{deeplabv3_forward.15} parent=11 // pred_check
        %p162 = pneg %p58
      $region14: #{deeplabv3_forward.15} parent=11 // pred_check_branch
        %164 = sbr.rel (%p162) target = $region16
      $region15: #{deeplabv3_forward.15} parent=11 // pred_region
        _
      $region16: #{deeplabv3_forward.15} parent=11 // pred_fallthru
        _
      // Predicated region
      $region17: #{deeplabv3_forward.15} parent=11 // pred_check
        %p165 = pneg %p79
      $region18: #{deeplabv3_forward.15} parent=11 // pred_check_branch
        %167 = sbr.rel (%p165) target = $region20
      $region19: #{deeplabv3_forward.15} parent=11 // pred_region
        _
      $region20: #{deeplabv3_forward.15} parent=11 // pred_fallthru
        _
      // Predicated region
      $region21: #{deeplabv3_forward.15} parent=11 // pred_check
        %p168 = pneg %p100
      $region22: #{deeplabv3_forward.15} parent=11 // pred_check_branch
        %170 = sbr.rel (%p168) target = $region24
      $region23: #{deeplabv3_forward.15} parent=11 // pred_region
        _
      $region24: #{deeplabv3_forward.15} parent=11 // pred_fallthru
        _
      // Predicated region
      $region25: #{deeplabv3_forward.15} parent=11 // pred_check
        %p171 = pneg %p121
      $region26: #{deeplabv3_forward.15} parent=11 // pred_check_branch
        %173 = sbr.rel (%p171) target = $region28
      $region27: #{deeplabv3_forward.15} parent=11 // pred_region
        _
      $region28: #{deeplabv3_forward.15} parent=11 // pred_fallthru
        _
    $region12: #{deeplabv3_forward.15} parent=5 // pred_fallthru
      _
    %p174 = scmp.lt.s32.totalorder %s11, 2
    // Predicated region
    $region29: #{deeplabv3_forward.15} parent=5 // pred_check
      %p175 = pneg %p174
    $region30: #{deeplabv3_forward.15} parent=5 // pred_check_branch
      %177 = sbr.rel (%p175) target = $region32
    $region31: #{deeplabv3_forward.15} parent=5 // pred_region
      // Predicated region
      $region33: #{deeplabv3_forward.15} parent=31 // pred_check
        %p178 = pneg %p31
      $region34: #{deeplabv3_forward.15} parent=31 // pred_check_branch
        %180 = sbr.rel (%p178) target = $region36
      $region35: #{deeplabv3_forward.15} parent=31 // pred_region
        %p181 = scmp.lt.s32.totalorder %s11, 1
        %s182 = scalar_select %p181, %s11, 1
        %s183 = smul.addr %s182, 6
        %s184 = smul.addr %s183, 4
        %s185 = scalar_lea.vmem %s0, %s184
      $region36: #{deeplabv3_forward.15} parent=31 // pred_fallthru
        _
    $region32: #{deeplabv3_forward.15} parent=5 // pred_fallthru
      _
    %p186 = scmp.le.s32.totalorder 1, %s11
    %p187 = scmp.lt.s32.totalorder %s11, 3
    %p188 = pnand %p186, %p187
    %p189 = pneg %p188
    // Predicated region
    $region37: #{deeplabv3_forward.15} parent=5 // pred_check
      _
    $region38: #{deeplabv3_forward.15} parent=5 // pred_check_branch
      %191 = sbr.rel (%p188) target = $region40
    $region39: #{deeplabv3_forward.15} parent=5 // pred_region
      %s192 = ssub.s32 %s11, 1
      %p193 = scmp.lt.s32.totalorder %s16, 1
      %s194 = scalar_select %p193, %s16, 1
      %s195 = smul.addr %s194, 6
      %s196 = smul.addr %s195, 4
      %s197 = scalar_lea.vmem %s0, %s196
      %p198 = pneg %p37
      %p199 = pneg %p34
      %p200 = pneg %p58
      %p201 = pneg %p55
      %p202 = pneg %p79
      %p203 = pneg %p76
      %p204 = pneg %p100
      %p205 = pneg %p97
      %p206 = pneg %p121
      %p207 = pneg %p118
      %p208 = pneg %p147
      %p209 = pneg %p144
      %p210 = scmp.lt.s32.totalorder %s16, 1
      %s211 = scalar_select %p210, %s16, 1
      %s212 = smul.addr %s211, 3
      %s213 = smul.addr %s212, 4
      %s214 = scalar_lea.vmem %s5, %s213
      %p215 = scmp.lt.s32.totalorder %s16, 1
      %s216 = scalar_select %p215, %s16, 1
      %s217 = smul.addr %s216, 6
      %s218 = smul.addr %s217, 4
      %s219 = scalar_lea.vmem %s0, %s218
      %p220 = scmp.lt.s32.totalorder %s16, 1
      %s221 = scalar_select %p220, %s16, 1
      %s222 = smul.addr %s221, 3
      %s223 = smul.addr %s222, 4
      %s224 = scalar_lea.vmem %s5, %s223
      %v226 = vld [vmem:[%s219] sm:$0xf]
      %v227 = vld [vmem:[%s219 + $0x4] sm:$0xf]
      %v228 = vld [vmem:[%s219 + $0x8] sm:$0xf]
      %v229 = vld [vmem:[%s1] sm:$0xf]
      %v230 = vld [vmem:[%s1 + $0x4] sm:$0xf]
      %v231 = vld [vmem:[%s219 + $0xc] sm:$0x1]
      %s232 = scalar_lea.vmem %s1, 8
      %v233 = vld [vmem:[%s232] sm:$0xf]
      %v234 = vld [vmem:[%s232 + $0x4] sm:$0xf]
      %v239 = vunpack.c.l.b16 %v226
      %v240 = vunpack.c.l.b16 %v227
      %v241 = vunpack.c.l.b16 %v228
      %v242 = vunpack.c.l.b16 %v231
      %v243 = vpack.c.b16 %v240, %v239
      %v244 = vpack.c.b16 %v242, %v241
      %vm245 = vsmask.f32 7424
      %v247 = vshrl.u32 %v243, 16
      %v249 = vshll.u32 %v243, 16
      %v251 = vrot.slane %v249, 1
      %v252 = vor.u32 %v247, %v251
      %v254 = vshll.u32 %v244, 16
      %v256 = vrot.slane %v254, 1
      %v257 = vsel %vm245, %v252, %v256
      %v258 = vshrl.u32 %v244, 16
      %v260 = vor.u32 %v258, %v256
      %v263 = vunpack.c.l.b16 %v233
      %v264 = vunpack.c.l.b16 %v234
      %v265 = vpack.c.b16 %v264, %v263
      %vm267 = vcmask 130048
      %v269 = vsel %vm267, %v257, 0
      %v272 = vsel %vm267, %v260, 0
      %274 = vmatpush.bf16.msra.mxu0 0
      %275 = vmatpush.bf16.msra.mxu0 0
      %276 = vmatpush.bf16.msra.mxu0 0
      %277 = vmatpush.bf16.msra.mxu0 0
      %278 = vmatpush.bf16.msra.mxu0 0
      %279 = vmatpush.bf16.msra.mxu0 0
      %280 = vmatpush.bf16.msra.mxu0 0
      %281 = vmatpush.bf16.msra.mxu0 %v265
      %282 = vmatmul.bf16.gmra.mxu0 %v269
      %v283 = vpop.f32.mrf.mxu0
      %v284 = vadd.f32 0.0, %v283
      %v285 = vpop.f32.mrf.mxu0
      %v286 = vadd.f32 0.0, %v285
      %287 = vmatmul.bf16.gmra.mxu0 %v272
      %v288 = vpop.f32.mrf.mxu0
      %v289 = vadd.f32 0.0, %v288
      %v290 = vpop.f32.mrf.mxu0
      %291 = vdwg.mxu0
      %v292 = vpack.c.b16 %v241, %v241
      %v295 = vunpack.c.l.b16 %v229
      %v296 = vunpack.c.l.b16 %v230
      %v297 = vpack.c.b16 %v296, %v295
      %v299 = vsel %vm267, %v243, 0
      %v302 = vsel %vm267, %v292, 0
      %304 = vmatpush.bf16.msra.mxu0 0
      %305 = vmatpush.bf16.msra.mxu0 0
      %306 = vmatpush.bf16.msra.mxu0 0
      %307 = vmatpush.bf16.msra.mxu0 0
      %308 = vmatpush.bf16.msra.mxu0 0
      %309 = vmatpush.bf16.msra.mxu0 0
      %310 = vmatpush.bf16.msra.mxu0 0
      %311 = vmatpush.bf16.msra.mxu0 %v297
      %312 = vmatmul.bf16.gmra.mxu0 %v299
      %v313 = vpop.f32.mrf.mxu0
      %v314 = vadd.f32 %v284, %v313
      %v315 = vpop.f32.mrf.mxu0
      %v316 = vadd.f32 %v286, %v315
      %317 = vmatmul.bf16.gmra.mxu0 %v302
      %v318 = vpop.f32.mrf.mxu0
      %v319 = vadd.f32 %v289, %v318
      %v320 = vpop.f32.mrf.mxu0
      %321 = vdwg.mxu0
      %v322 = vld [vmem:[%s219] sm:$0xe]
      %s323 = scalar_lea.vmem %s1, 16
      %v324 = vld [vmem:[%s323] sm:$0xf]
      %v325 = vld [vmem:[%s323 + $0x4] sm:$0xf]
      %v327 = vunpack.c.l.b16 %v322
      %v328 = vpack.c.b16 %v240, %v327
      %vm329 = vcmask 1046528
      %v330 = vrot.slane %v328, 1
      %v331 = vrot.slane %v244, 1
      %v332 = vsel %vm329, %v330, %v331
      %v335 = vunpack.c.l.b16 %v324
      %v336 = vunpack.c.l.b16 %v325
      %v337 = vpack.c.b16 %v336, %v335
      %v340 = vsel %vm267, %v332, 0
      %v343 = vsel %vm267, %v331, 0
      %345 = vmatpush.bf16.msra.mxu0 0
      %346 = vmatpush.bf16.msra.mxu0 0
      %347 = vmatpush.bf16.msra.mxu0 0
      %348 = vmatpush.bf16.msra.mxu0 0
      %349 = vmatpush.bf16.msra.mxu0 0
      %350 = vmatpush.bf16.msra.mxu0 0
      %351 = vmatpush.bf16.msra.mxu0 0
      %352 = vmatpush.bf16.msra.mxu0 %v337
      %353 = vmatmul.bf16.gmra.mxu0 %v340
      %v354 = vpop.f32.mrf.mxu0
      %v355 = vadd.f32 0.0, %v354
      %v356 = vpop.f32.mrf.mxu0
      %v357 = vadd.f32 0.0, %v356
      %358 = vmatmul.bf16.gmra.mxu0 %v343
      %v359 = vpop.f32.mrf.mxu0
      %v360 = vadd.f32 0.0, %v359
      %v361 = vpop.f32.mrf.mxu0
      %362 = vdwg.mxu0
      %v363 = vadd.f32 %v314, %v355
      %v364 = vadd.f32 %v316, %v357
      %v365 = vadd.f32 %v319, %v360
      %v366 = vld [vmem:[%s219] sm:$0x8]
      %v367 = vld [vmem:[%s219 + $0xc] sm:$0x7]
      %s368 = scalar_lea.vmem %s1, 24
      %v369 = vld [vmem:[%s368] sm:$0xf]
      %v370 = vld [vmem:[%s368 + $0x4] sm:$0xf]
      %v373 = vunpack.c.l.b16 %v366
      %v374 = vunpack.c.l.b16 %v367
      %v375 = vpack.c.b16 %v240, %v373
      %v376 = vpack.c.b16 %v374, %v241
      %vm377 = vcmask 1044480
      %v378 = vrot.slane %v375, 3
      %v379 = vrot.slane %v376, 3
      %v380 = vsel %vm377, %v378, %v379
      %v383 = vunpack.c.l.b16 %v369
      %v384 = vunpack.c.l.b16 %v370
      %v385 = vpack.c.b16 %v384, %v383
      %v388 = vsel %vm267, %v380, 0
      %v391 = vsel %vm267, %v379, 0
      %393 = vmatpush.bf16.msra.mxu0 0
      %394 = vmatpush.bf16.msra.mxu0 0
      %395 = vmatpush.bf16.msra.mxu0 0
      %396 = vmatpush.bf16.msra.mxu0 0
      %397 = vmatpush.bf16.msra.mxu0 0
      %398 = vmatpush.bf16.msra.mxu0 0
      %399 = vmatpush.bf16.msra.mxu0 0
      %400 = vmatpush.bf16.msra.mxu0 %v385
      %401 = vmatmul.bf16.gmra.mxu0 %v388
      %v402 = vpop.f32.mrf.mxu0
      %v403 = vadd.f32 0.0, %v402
      %v404 = vpop.f32.mrf.mxu0
      %v405 = vadd.f32 0.0, %v404
      %406 = vmatmul.bf16.gmra.mxu0 %v391
      %v407 = vpop.f32.mrf.mxu0
      %v408 = vadd.f32 0.0, %v407
      %v409 = vpop.f32.mrf.mxu0
      %410 = vdwg.mxu0
      %v411 = vadd.f32 %v363, %v403
      %v412 = vadd.f32 %v364, %v405
      %v413 = vadd.f32 %v365, %v408
      %v414 = vld [vmem:[%s219 + $0xc] sm:$0xf]
      %s415 = scalar_lea.vmem %s1, 32
      %v416 = vld [vmem:[%s415] sm:$0xf]
      %v417 = vld [vmem:[%s415 + $0x4] sm:$0xf]
      %v419 = vunpack.c.l.b16 %v414
      %v420 = vpack.c.b16 %v419, %v241
      %vm421 = vsmask.f32 4352
      %v423 = vshrl.u32 %v375, 16
      %v425 = vrot.slane %v423, 3
      %v426 = vshll.u32 %v375, 16
      %v428 = vrot.slane %v426, 4
      %v429 = vor.u32 %v425, %v428
      %v431 = vshrl.u32 %v420, 16
      %v433 = vrot.slane %v431, 3
      %v434 = vshll.u32 %v420, 16
      %v436 = vrot.slane %v434, 4
      %v437 = vor.u32 %v433, %v436
      %v438 = vsel %vm421, %v429, %v437
      %v441 = vunpack.c.l.b16 %v416
      %v442 = vunpack.c.l.b16 %v417
      %v443 = vpack.c.b16 %v442, %v441
      %v446 = vsel %vm267, %v438, 0
      %v449 = vsel %vm267, %v437, 0
      %451 = vmatpush.bf16.msra.mxu0 0
      %452 = vmatpush.bf16.msra.mxu0 0
      %453 = vmatpush.bf16.msra.mxu0 0
      %454 = vmatpush.bf16.msra.mxu0 0
      %455 = vmatpush.bf16.msra.mxu0 0
      %456 = vmatpush.bf16.msra.mxu0 0
      %457 = vmatpush.bf16.msra.mxu0 0
      %458 = vmatpush.bf16.msra.mxu0 %v443
      %459 = vmatmul.bf16.gmra.mxu0 %v446
      %v460 = vpop.f32.mrf.mxu0
      %v461 = vadd.f32 0.0, %v460
      %v462 = vpop.f32.mrf.mxu0
      %v463 = vadd.f32 0.0, %v462
      %464 = vmatmul.bf16.gmra.mxu0 %v449
      %v465 = vpop.f32.mrf.mxu0
      %v466 = vadd.f32 0.0, %v465
      %v467 = vpop.f32.mrf.mxu0
      %468 = vdwg.mxu0
      %v469 = vadd.f32 %v411, %v461
      %v470 = vadd.f32 %v412, %v463
      %v471 = vadd.f32 %v413, %v466
      %s472 = scalar_lea.vmem %s1, 40
      %v473 = vld [vmem:[%s472] sm:$0xf]
      %v474 = vld [vmem:[%s472 + $0x4] sm:$0xf]
      %v475 = vpack.c.b16 %v241, %v240
      %v476 = vpack.c.b16 %v419, %v419
      %v479 = vunpack.c.l.b16 %v473
      %v480 = vunpack.c.l.b16 %v474
      %v481 = vpack.c.b16 %v480, %v479
      %v484 = vsel %vm267, %v475, 0
      %v487 = vsel %vm267, %v476, 0
      %489 = vmatpush.bf16.msra.mxu0 0
      %490 = vmatpush.bf16.msra.mxu0 0
      %491 = vmatpush.bf16.msra.mxu0 0
      %492 = vmatpush.bf16.msra.mxu0 0
      %493 = vmatpush.bf16.msra.mxu0 0
      %494 = vmatpush.bf16.msra.mxu0 0
      %495 = vmatpush.bf16.msra.mxu0 0
      %496 = vmatpush.bf16.msra.mxu0 %v481
      %497 = vmatmul.bf16.gmra.mxu0 %v484
      %v498 = vpop.f32.mrf.mxu0
      %v499 = vadd.f32 0.0, %v498
      %v500 = vpop.f32.mrf.mxu0
      %v501 = vadd.f32 0.0, %v500
      %502 = vmatmul.bf16.gmra.mxu0 %v487
      %v503 = vpop.f32.mrf.mxu0
      %v504 = vadd.f32 0.0, %v503
      %v505 = vpop.f32.mrf.mxu0
      %506 = vdwg.mxu0
      %v507 = vadd.f32 %v469, %v499
      %v508 = vadd.f32 %v470, %v501
      %v509 = vadd.f32 %v471, %v504
      %v510 = vld [vmem:[%s219 + $0x4] sm:$0xc]
      %v511 = vld [vmem:[%s219 + $0x8] sm:$0xf]
      %v512 = vld [vmem:[%s219 + $0xc] sm:$0xf]
      %v513 = vld [vmem:[%s219 + $0x10] sm:$0x3]
      %s514 = scalar_lea.vmem %s1, 48
      %v515 = vld [vmem:[%s514] sm:$0xf]
      %v516 = vld [vmem:[%s514 + $0x4] sm:$0xf]
      %v521 = vunpack.c.l.b16 %v510
      %v522 = vunpack.c.l.b16 %v511
      %v523 = vunpack.c.l.b16 %v512
      %v524 = vunpack.c.l.b16 %v513
      %v525 = vpack.c.b16 %v522, %v521
      %v526 = vpack.c.b16 %v524, %v523
      %vm527 = vcmask 1045504
      %v528 = vrot.slane %v525, 2
      %v529 = vrot.slane %v526, 2
      %v530 = vsel %vm527, %v528, %v529
      %v533 = vunpack.c.l.b16 %v515
      %v534 = vunpack.c.l.b16 %v516
      %v535 = vpack.c.b16 %v534, %v533
      %v538 = vsel %vm267, %v530, 0
      %v541 = vsel %vm267, %v529, 0
      %543 = vmatpush.bf16.msra.mxu0 0
      %544 = vmatpush.bf16.msra.mxu0 0
      %545 = vmatpush.bf16.msra.mxu0 0
      %546 = vmatpush.bf16.msra.mxu0 0
      %547 = vmatpush.bf16.msra.mxu0 0
      %548 = vmatpush.bf16.msra.mxu0 0
      %549 = vmatpush.bf16.msra.mxu0 0
      %550 = vmatpush.bf16.msra.mxu0 %v535
      %551 = vmatmul.bf16.gmra.mxu0 %v538
      %v552 = vpop.f32.mrf.mxu0
      %v553 = vadd.f32 0.0, %v552
      %v554 = vpop.f32.mrf.mxu0
      %v555 = vadd.f32 0.0, %v554
      %556 = vmatmul.bf16.gmra.mxu0 %v541
      %v557 = vpop.f32.mrf.mxu0
      %v558 = vadd.f32 0.0, %v557
      %v559 = vpop.f32.mrf.mxu0
      %560 = vdwg.mxu0
      %v561 = vadd.f32 %v507, %v553
      %v562 = vadd.f32 %v508, %v555
      %v563 = vadd.f32 %v509, %v558
      %v564 = vld [vmem:[%s219 + $0x10] sm:$0x7]
      %s565 = scalar_lea.vmem %s1, 56
      %v566 = vld [vmem:[%s565] sm:$0xf]
      %v567 = vld [vmem:[%s565 + $0x4] sm:$0xf]
      %v569 = vunpack.c.l.b16 %v564
      %v570 = vpack.c.b16 %v569, %v523
      %vm571 = vsmask.f32 5376
      %v573 = vshrl.u32 %v525, 16
      %v575 = vrot.slane %v573, 2
      %v576 = vshll.u32 %v525, 16
      %v578 = vrot.slane %v576, 3
      %v579 = vor.u32 %v575, %v578
      %v581 = vshrl.u32 %v570, 16
      %v583 = vrot.slane %v581, 2
      %v584 = vshll.u32 %v570, 16
      %v586 = vrot.slane %v584, 3
      %v587 = vor.u32 %v583, %v586
      %v588 = vsel %vm571, %v579, %v587
      %v591 = vunpack.c.l.b16 %v566
      %v592 = vunpack.c.l.b16 %v567
      %v593 = vpack.c.b16 %v592, %v591
      %v596 = vsel %vm267, %v588, 0
      %v599 = vsel %vm267, %v587, 0
      %601 = vmatpush.bf16.msra.mxu0 0
      %602 = vmatpush.bf16.msra.mxu0 0
      %603 = vmatpush.bf16.msra.mxu0 0
      %604 = vmatpush.bf16.msra.mxu0 0
      %605 = vmatpush.bf16.msra.mxu0 0
      %606 = vmatpush.bf16.msra.mxu0 0
      %607 = vmatpush.bf16.msra.mxu0 0
      %608 = vmatpush.bf16.msra.mxu0 %v593
      %609 = vmatmul.bf16.gmra.mxu0 %v596
      %v610 = vpop.f32.mrf.mxu0
      %v611 = vadd.f32 0.0, %v610
      %v612 = vpop.f32.mrf.mxu0
      %v613 = vadd.f32 0.0, %v612
      %614 = vmatmul.bf16.gmra.mxu0 %v599
      %v615 = vpop.f32.mrf.mxu0
      %v616 = vadd.f32 0.0, %v615
      %v617 = vpop.f32.mrf.mxu0
      %618 = vdwg.mxu0
      %v619 = vadd.f32 %v561, %v611
      %v620 = vadd.f32 %v562, %v613
      %v621 = vadd.f32 %v563, %v616
      %v622 = vld [vmem:[%s219 + $0x4] sm:$0x8]
      %s623 = scalar_lea.vmem %s1, 64
      %v624 = vld [vmem:[%s623] sm:$0xf]
      %v625 = vld [vmem:[%s623 + $0x4] sm:$0xf]
      %v627 = vunpack.c.l.b16 %v622
      %v628 = vpack.c.b16 %v522, %v627
      %v629 = vrot.slane %v628, 3
      %v630 = vrot.slane %v570, 3
      %v631 = vsel %vm377, %v629, %v630
      %v634 = vunpack.c.l.b16 %v624
      %v635 = vunpack.c.l.b16 %v625
      %v636 = vpack.c.b16 %v635, %v634
      %v639 = vsel %vm267, %v631, 0
      %v642 = vsel %vm267, %v630, 0
      %644 = vmatpush.bf16.msra.mxu0 0
      %645 = vmatpush.bf16.msra.mxu0 0
      %646 = vmatpush.bf16.msra.mxu0 0
      %647 = vmatpush.bf16.msra.mxu0 0
      %648 = vmatpush.bf16.msra.mxu0 0
      %649 = vmatpush.bf16.msra.mxu0 0
      %650 = vmatpush.bf16.msra.mxu0 0
      %651 = vmatpush.bf16.msra.mxu0 %v636
      %652 = vmatmul.bf16.gmra.mxu0 %v639
      %v653 = vpop.f32.mrf.mxu0
      %v654 = vadd.f32 0.0, %v653
      %v655 = vpop.f32.mrf.mxu0
      %v656 = vadd.f32 0.0, %v655
      %657 = vmatmul.bf16.gmra.mxu0 %v642
      %v658 = vpop.f32.mrf.mxu0
      %v659 = vadd.f32 0.0, %v658
      %v660 = vpop.f32.mrf.mxu0
      %661 = vdwg.mxu0
      %v662 = vadd.f32 %v619, %v654
      %v663 = vadd.f32 %v620, %v656
      %v664 = vadd.f32 %v621, %v659
      %v665 = vld [vmem:[%s2] sm:$0x1]
      %v667 = vperm.slane %v665, 0
      %v669 = vadd.f32 %v662, %v667
      %v670 = vadd.f32 %v663, %v667
      %v671 = vadd.f32 %v664, %v667
      %v672 = vmax.f32 %v669, 0.0
      %v673 = vmax.f32 %v670, 0.0
      %v674 = vmax.f32 %v671, 0.0
      %v675 = vpack.c.bf16 %v673, %v672
      %v676 = vpack.c.bf16 %v674, %v674
      %v677 = vld [vmem:[%s3] sm:$0xf]
      %v678 = vld [vmem:[%s3 + $0x4] sm:$0xf]
      %v679 = vld [vmem:[%s4] sm:$0x1]
      %v681 = vperm.slane %v679, 0
      %v685 = vunpack.c.l.b16 %v677
      %v686 = vunpack.c.l.b16 %v678
      %v687 = vpack.c.b16 %v686, %v685
      %v690 = vsel %vm267, %v675, 0
      %v693 = vsel %vm267, %v676, 0
      %695 = vmatpush.bf16.msra.mxu0 0
      %696 = vmatpush.bf16.msra.mxu0 0
      %697 = vmatpush.bf16.msra.mxu0 0
      %698 = vmatpush.bf16.msra.mxu0 0
      %699 = vmatpush.bf16.msra.mxu0 0
      %700 = vmatpush.bf16.msra.mxu0 0
      %701 = vmatpush.bf16.msra.mxu0 0
      %702 = vmatpush.bf16.msra.mxu0 %v687
      %703 = vmatmul.bf16.gmra.mxu0 %v690
      %v704 = vpop.f32.mrf.mxu0
      %v705 = vadd.f32 %v681, %v704
      %v706 = vpop.f32.mrf.mxu0
      %v707 = vadd.f32 %v681, %v706
      %708 = vmatmul.bf16.gmra.mxu0 %v693
      %v709 = vpop.f32.mrf.mxu0
      %v710 = vadd.f32 %v681, %v709
      %v711 = vpop.f32.mrf.mxu0
      %712 = vdwg.mxu0
      %v713 = vpack.c.bf16 %v705, %v705
      %v714 = vpack.c.bf16 %v707, %v707
      %v715 = vpack.c.bf16 %v710, %v710
      %vm716 = vcmask 35840
      %717 = vst.msk [vmem:[%s224] sm:$0xf] %vm716, %v713
      %718 = vst.msk [vmem:[%s224 + $0x4] sm:$0xf] %vm716, %v714
      %719 = vst.msk [vmem:[%s224 + $0x8] sm:$0xf] %vm716, %v715
      %p720 = scmp.lt.s32.totalorder %s16, 1
      %s721 = scalar_select %p720, %s16, 1
      %s722 = smul.addr %s721, 3
      %s723 = smul.addr %s722, 4
      %s724 = scalar_lea.vmem %s5, %s723
      // Predicated region
      $region41: #{deeplabv3_forward.15} parent=39 // pred_check
        %p725 = pneg %p144
      $region42: #{deeplabv3_forward.15} parent=39 // pred_check_branch
        %727 = sbr.rel (%p725) target = $region44
      $region43: #{deeplabv3_forward.15} parent=39 // pred_region
        _
      $region44: #{deeplabv3_forward.15} parent=39 // pred_fallthru
        _
    $region40: #{deeplabv3_forward.15} parent=5 // pred_fallthru
      _
    %p728 = scmp.le.s32.totalorder 2, %s11
    // Predicated region
    $region45: #{deeplabv3_forward.15} parent=5 // pred_check
      %p729 = pneg %p728
    $region46: #{deeplabv3_forward.15} parent=5 // pred_check_branch
      %731 = sbr.rel (%p729) target = $region48
    $region47: #{deeplabv3_forward.15} parent=5 // pred_region
      %s732 = ssub.s32 %s11, 2
      // Predicated region
      $region49: #{deeplabv3_forward.15} parent=47 // pred_check
        %p733 = pneg %p150
      $region50: #{deeplabv3_forward.15} parent=47 // pred_check_branch
        %735 = sbr.rel (%p733) target = $region52
      $region51: #{deeplabv3_forward.15} parent=47 // pred_region
        %p736 = scmp.lt.s32.totalorder %s17, 1
        %s737 = scalar_select %p736, %s17, 1
        %s738 = smul.addr %s737, 3
        %s739 = smul.addr %s738, 4
        %s740 = scalar_lea.vmem %s5, %s739
      $region52: #{deeplabv3_forward.15} parent=47 // pred_fallthru
        _
    $region48: #{deeplabv3_forward.15} parent=5 // pred_fallthru
      _
  $region6: #{deeplabv3_forward.15} parent=0 // loop_footer
    %s15 = sadd.s32 1, %s11
  $region7: #{deeplabv3_forward.15} parent=0 // loop_footer_branch
    %10 = sbr.rel target = $region3
  $region8: #{deeplabv3_forward.15} parent=0 // loop_exit
    _

</llo_original>
